<compile_context>
chip_gen: v7x
topology: tpu7x:2x2x1
jax: 0.10.0
libtpu: 0.0.40
codegen_flags: <defaults>
</compile_context>

<pallas_src>
import math

import jax
import jax.numpy as jnp
from jax import lax
from jax.experimental import pallas as pl
from jax.experimental.pallas import tpu as pltpu

D_MODEL = 32
NHEAD = 4
HEAD_DIM = D_MODEL // NHEAD
NUM_LAYERS = 2
DIM_FF = 64
EPS = 1e-5          # nn.LayerNorm default
NEG_BIG = -1e30     # finite "masked" value (robust vs -inf)


def _layernorm(x, g, b):
    mu = jnp.mean(x, axis=-1, keepdims=True)
    xc = x - mu
    var = jnp.mean(xc * xc, axis=-1, keepdims=True)
    return xc * lax.rsqrt(var + EPS) * g + b


def _lego_kernel(x_ref, pe_ref, mask_ref,
                 inp_w_ref, inp_b_ref,
                 wqkv_ref, bqkv_ref, wo_ref, bo_ref,
                 ff1_w_ref, ff1_b_ref, ff2_w_ref, ff2_b_ref,
                 n1_g_ref, n1_b_ref, n2_g_ref, n2_b_ref,
                 fn_g_ref, fn_b_ref,
                 out_wT_ref, out_bT_ref,
                 o_ref):
    Bt, S, _ = x_ref.shape
    N = Bt * S

    x = x_ref[...].reshape(N, 3)          # (N, 3) flat (batch*seq, coords)
    mask = mask_ref[...]                  # (S, S) additive causal mask

    # Input projection (contraction length 3): 3 VPU broadcast-FMAs instead of
    # a degenerate MXU dot.  PE is pre-tiled to (N, D) host-side.
    inp_w = inp_w_ref[...]                # (3, D) f32
    h = (x[:, 0:1] * inp_w[0:1, :]
         + x[:, 1:2] * inp_w[1:2, :]
         + x[:, 2:3] * inp_w[2:3, :]
         + inp_b_ref[...])
    h = h + pe_ref[...]                   # (N, D) f32

    for l in range(NUM_LAYERS):
        # ---- multi-head self-attention -------------------------------------
        # Fused QKV projection: one (N,32)x(32,96) bf16 matmul; the
        # 1/sqrt(head_dim) scale is already folded into the Q columns/bias.
        qkv = (jnp.dot(h.astype(jnp.bfloat16), wqkv_ref[l],
                       preferred_element_type=jnp.float32) + bqkv_ref[l])
        q = qkv[:, 0:D_MODEL].reshape(Bt, S, D_MODEL)
        k = qkv[:, D_MODEL:2 * D_MODEL].reshape(Bt, S, D_MODEL)
        v = qkv[:, 2 * D_MODEL:3 * D_MODEL].reshape(Bt, S, D_MODEL)

        # Heads are only split (width-8 lane slices) for the batched
        # score/context einsums; the (NHEAD=4)-way Python loop issues the same
        # Bt*NHEAD tiny matmuls as a single head-batched einsum without the
        # (Bt,S,H,HD) relayout transposes.
        ctx_heads = []
        for hh in range(NHEAD):
            sl = slice(hh * HEAD_DIM, (hh + 1) * HEAD_DIM)
            qh = q[..., sl].astype(jnp.bfloat16)
            kh = k[..., sl].astype(jnp.bfloat16)
            vh = v[..., sl].astype(jnp.bfloat16)
            s = jnp.einsum('bqd,bkd->bqk', qh, kh,
                           preferred_element_type=jnp.float32)   # (Bt, S, S)
            s = s + mask[None]
            m = jnp.max(s, axis=-1, keepdims=True)
            e = jnp.exp(s - m)
            denom = jnp.sum(e, axis=-1, keepdims=True)
            p = e * pl.reciprocal(denom, approx=True)             # EUP reciprocal
            ctx_heads.append(
                jnp.einsum('bqk,bkd->bqd', p.astype(jnp.bfloat16), vh,
                           preferred_element_type=jnp.float32))   # (Bt, S, HD)
        ctx = jnp.concatenate(ctx_heads, axis=-1).reshape(N, D_MODEL)

        # Fused output projection: one (N,32)x(32,32) bf16 matmul.
        attn = (jnp.dot(ctx.astype(jnp.bfloat16), wo_ref[l],
                        preferred_element_type=jnp.float32) + bo_ref[l])

        # residual + post-LN (f32)
        h = _layernorm(h + attn, n1_g_ref[l], n1_b_ref[l])

        # ---- feed-forward ----------------------------------------------------
        ff = jnp.maximum(
            jnp.dot(h.astype(jnp.bfloat16), ff1_w_ref[l],
                    preferred_element_type=jnp.float32) + ff1_b_ref[l], 0.0)
        ff = (jnp.dot(ff.astype(jnp.bfloat16), ff2_w_ref[l],
                      preferred_element_type=jnp.float32) + ff2_b_ref[l])
        h = _layernorm(h + ff, n2_g_ref[l], n2_b_ref[l])

    # final LayerNorm + output projection as a lane-dense (3, N) slab:
    # out.T = W_out @ h.T + b_out  (output stored transposed, undone in wrapper)
    h = _layernorm(h, fn_g_ref[...], fn_b_ref[...])
    hT = h.T.astype(jnp.bfloat16)                                 # (D, N)
    out_t = (jnp.dot(out_wT_ref[...], hT,
                     preferred_element_type=jnp.float32) + out_bT_ref[...])
    o_ref[...] = out_t                                            # (3, N)


def sinusoidal_pe(seq_len, d_model):
    pos = jnp.arange(seq_len, dtype=jnp.float32)[:, None]
    div = jnp.exp(jnp.arange(0, d_model, 2, dtype=jnp.float32)
                  * (-math.log(10000.0) / d_model))
    pe = jnp.zeros((seq_len, d_model), jnp.float32)
    pe = pe.at[:, 0::2].set(jnp.sin(pos * div))
    pe = pe.at[:, 1::2].set(jnp.cos(pos * div))
    return pe


def causal_mask(s):
    i = jnp.arange(s)[:, None]
    j = jnp.arange(s)[None, :]
    return jnp.where(j > i, NEG_BIG, 0.0).astype(jnp.float32)


def init_params(key):
    """Deterministic synthetic parameters (shapes match the PyTorch module).

    MHA weights are stored fused:
      wqkv[l] = in_proj_weight.T                  (D, 3D), Q|K|V column thirds,
                with the 1/sqrt(head_dim) score scale folded into the Q third
      wo[l]   = out_proj.weight.T                 (D, D)
      out_wT  = output_proj.weight                (3, D)   (used transposed)
    All other linears are pre-transposed to (in, out).  Matmul weights are
    bf16; LayerNorm / bias parameters stay f32.
    """
    ks = iter(jax.random.split(key, 24))

    def w(shape):
        return (0.05 * jax.random.normal(next(ks), shape)).astype(jnp.float32)

    scale = 1.0 / math.sqrt(HEAD_DIM)

    wqkv = w((NUM_LAYERS, D_MODEL, 3 * D_MODEL))
    bqkv = w((NUM_LAYERS, 1, 3 * D_MODEL))
    wqkv = wqkv.at[:, :, 0:D_MODEL].multiply(scale)   # fold score scale into Q
    bqkv = bqkv.at[:, :, 0:D_MODEL].multiply(scale)

    p = {
        "inp_w": w((3, D_MODEL)),
        "inp_b": w((1, D_MODEL)),
        "wqkv": wqkv.astype(jnp.bfloat16),
        "bqkv": bqkv,
        "wo": w((NUM_LAYERS, D_MODEL, D_MODEL)).astype(jnp.bfloat16),
        "bo": w((NUM_LAYERS, 1, D_MODEL)),
        "ff1_w": w((NUM_LAYERS, D_MODEL, DIM_FF)).astype(jnp.bfloat16),
        "ff1_b": w((NUM_LAYERS, 1, DIM_FF)),
        "ff2_w": w((NUM_LAYERS, DIM_FF, D_MODEL)).astype(jnp.bfloat16),
        "ff2_b": w((NUM_LAYERS, 1, D_MODEL)),
        "n1_g": jnp.ones((NUM_LAYERS, 1, D_MODEL), jnp.float32),
        "n1_b": jnp.zeros((NUM_LAYERS, 1, D_MODEL), jnp.float32),
        "n2_g": jnp.ones((NUM_LAYERS, 1, D_MODEL), jnp.float32),
        "n2_b": jnp.zeros((NUM_LAYERS, 1, D_MODEL), jnp.float32),
        "fn_g": jnp.ones((1, D_MODEL), jnp.float32),
        "fn_b": jnp.zeros((1, D_MODEL), jnp.float32),
        "out_wT": w((3, D_MODEL)).astype(jnp.bfloat16),
        "out_bT": w((3, 1)),
    }
    return p


def _choose_batch_block(B, S, bt_max):
    """Pick (bt, nblk).

    v5e/v6e are single-TensorCore, and on v7x a 2-way split only pays when
    each half keeps a healthy slab, so: a single block for small batches
    (no forced split); otherwise blocks of <= bt_max with bt*S a multiple of
    128 so the lane-dense (3, bt*S) output block tiles the padded output.
    """
    MIN_SPLIT_BT = 16
    if B <= 2 * MIN_SPLIT_BT:
        return max(B, 1), 1
    align = 128 // math.gcd(S, 128)
    bt = min(bt_max, -(-B // 2))
    bt = -(-bt // align) * align
    nblk = -(-B // bt)
    return bt, nblk


def lego_transformer(x, params, *, bt_max=256):
    B, S, _ = x.shape
    bt, nblk = _choose_batch_block(B, S, bt_max)
    B_pad = bt * nblk
    if B_pad != B:
        x = jnp.pad(x, ((0, B_pad - B), (0, 0), (0, 0)))

    pe = sinusoidal_pe(S, D_MODEL)
    pe_tiled = jnp.tile(pe, (bt, 1))          # (bt*S, D): broadcast done host-side
    mask = causal_mask(S)

    args = [x, pe_tiled, mask,
            params["inp_w"], params["inp_b"],
            params["wqkv"], params["bqkv"], params["wo"], params["bo"],
            params["ff1_w"], params["ff1_b"], params["ff2_w"], params["ff2_b"],
            params["n1_g"], params["n1_b"], params["n2_g"], params["n2_b"],
            params["fn_g"], params["fn_b"],
            params["out_wT"], params["out_bT"]]

    def full_spec(a):
        nd = a.ndim
        return pl.BlockSpec(a.shape, lambda b, _nd=nd: (0,) * _nd)

    in_specs = ([pl.BlockSpec((bt, S, 3), lambda b: (b, 0, 0))]
                + [full_spec(a) for a in args[1:]])

    out_t = pl.pallas_call(
        _lego_kernel,
        out_shape=jax.ShapeDtypeStruct((3, B_pad * S), jnp.float32),
        grid=(nblk,),
        in_specs=in_specs,
        out_specs=pl.BlockSpec((3, bt * S), lambda b: (0, b)),
        compiler_params=pltpu.CompilerParams(
            dimension_semantics=("parallel",)),
    )(*args)

    # undo the lane-dense transposed store
    return out_t.T.reshape(B_pad, S, 3)[:B]


if __name__ == "__main__":
    key = jax.random.PRNGKey(0)
    k_x, k_p = jax.random.split(key)

    B, S = 2, 8
    x = jax.random.normal(k_x, (B, S, 3), dtype=jnp.float32)
    params = init_params(k_p)

    out = lego_transformer(x, params)
    out = jax.block_until_ready(out)

    assert out.shape == (B, S, 3)
    assert bool(jnp.all(jnp.isfinite(out)))
    print("KERNEL_OK")
</pallas_src>

<mosaic_0001>
module attributes {stable_mosaic.version = 11 : i64} {
  func.func @_lego_kernel(%arg0: i32, %arg1: memref<2x8x3xf32, #tpu.memory_space<vmem>>, %arg2: memref<16x32xf32, #tpu.memory_space<vmem>>, %arg3: memref<8x8xf32, #tpu.memory_space<vmem>>, %arg4: memref<3x32xf32, #tpu.memory_space<vmem>>, %arg5: memref<1x32xf32, #tpu.memory_space<vmem>>, %arg6: memref<2x32x96xbf16, #tpu.memory_space<vmem>>, %arg7: memref<2x1x96xf32, #tpu.memory_space<vmem>>, %arg8: memref<2x32x32xbf16, #tpu.memory_space<vmem>>, %arg9: memref<2x1x32xf32, #tpu.memory_space<vmem>>, %arg10: memref<2x32x64xbf16, #tpu.memory_space<vmem>>, %arg11: memref<2x1x64xf32, #tpu.memory_space<vmem>>, %arg12: memref<2x64x32xbf16, #tpu.memory_space<vmem>>, %arg13: memref<2x1x32xf32, #tpu.memory_space<vmem>>, %arg14: memref<2x1x32xf32, #tpu.memory_space<vmem>>, %arg15: memref<2x1x32xf32, #tpu.memory_space<vmem>>, %arg16: memref<2x1x32xf32, #tpu.memory_space<vmem>>, %arg17: memref<2x1x32xf32, #tpu.memory_space<vmem>>, %arg18: memref<1x32xf32, #tpu.memory_space<vmem>>, %arg19: memref<1x32xf32, #tpu.memory_space<vmem>>, %arg20: memref<3x32xbf16, #tpu.memory_space<vmem>>, %arg21: memref<3x1xf32, #tpu.memory_space<vmem>>, %arg22: memref<3x16xf32, #tpu.memory_space<vmem>>) attributes {dimension_semantics = [#tpu.dimension_semantics<parallel>], iteration_bounds = array<i64: 1>, scalar_prefetch = 0 : i64, scratch_operands = 0 : i64, tpu.core_type = #tpu.core_type<tc>, window_params = [{transform_indices = @transform_0, window_bounds = array<i64: 2, 8, 3>}, {pipeline_mode = #tpu.pipeline_mode<synchronous>, transform_indices = @transform_1, window_bounds = array<i64: 16, 32>}, {pipeline_mode = #tpu.pipeline_mode<synchronous>, transform_indices = @transform_2, window_bounds = array<i64: 8, 8>}, {pipeline_mode = #tpu.pipeline_mode<synchronous>, transform_indices = @transform_3, window_bounds = array<i64: 3, 32>}, {pipeline_mode = #tpu.pipeline_mode<synchronous>, transform_indices = @transform_4, window_bounds = array<i64: 1, 32>}, {pipeline_mode = #tpu.pipeline_mode<synchronous>, transform_indices = @transform_5, window_bounds = array<i64: 2, 32, 96>}, {pipeline_mode = #tpu.pipeline_mode<synchronous>, transform_indices = @transform_6, window_bounds = array<i64: 2, 1, 96>}, {pipeline_mode = #tpu.pipeline_mode<synchronous>, transform_indices = @transform_7, window_bounds = array<i64: 2, 32, 32>}, {pipeline_mode = #tpu.pipeline_mode<synchronous>, transform_indices = @transform_8, window_bounds = array<i64: 2, 1, 32>}, {pipeline_mode = #tpu.pipeline_mode<synchronous>, transform_indices = @transform_9, window_bounds = array<i64: 2, 32, 64>}, {pipeline_mode = #tpu.pipeline_mode<synchronous>, transform_indices = @transform_10, window_bounds = array<i64: 2, 1, 64>}, {pipeline_mode = #tpu.pipeline_mode<synchronous>, transform_indices = @transform_11, window_bounds = array<i64: 2, 64, 32>}, {pipeline_mode = #tpu.pipeline_mode<synchronous>, transform_indices = @transform_12, window_bounds = array<i64: 2, 1, 32>}, {pipeline_mode = #tpu.pipeline_mode<synchronous>, transform_indices = @transform_13, window_bounds = array<i64: 2, 1, 32>}, {pipeline_mode = #tpu.pipeline_mode<synchronous>, transform_indices = @transform_14, window_bounds = array<i64: 2, 1, 32>}, {pipeline_mode = #tpu.pipeline_mode<synchronous>, transform_indices = @transform_15, window_bounds = array<i64: 2, 1, 32>}, {pipeline_mode = #tpu.pipeline_mode<synchronous>, transform_indices = @transform_16, window_bounds = array<i64: 2, 1, 32>}, {pipeline_mode = #tpu.pipeline_mode<synchronous>, transform_indices = @transform_17, window_bounds = array<i64: 1, 32>}, {pipeline_mode = #tpu.pipeline_mode<synchronous>, transform_indices = @transform_18, window_bounds = array<i64: 1, 32>}, {pipeline_mode = #tpu.pipeline_mode<synchronous>, transform_indices = @transform_19, window_bounds = array<i64: 3, 32>}, {pipeline_mode = #tpu.pipeline_mode<synchronous>, transform_indices = @transform_20, window_bounds = array<i64: 3, 1>}, {transform_indices = @transform_21, window_bounds = array<i64: 3, 16>}]} {
    %c0 = arith.constant 0 : index
    %c0_0 = arith.constant 0 : index
    %c0_1 = arith.constant 0 : index
    %0 = vector.load %arg1[%c0, %c0_0, %c0_1] : memref<2x8x3xf32, #tpu.memory_space<vmem>>, vector<2x8x3xf32>
    %1 = vector.shape_cast %0 : vector<2x8x3xf32> to vector<16x3xf32>
    %c0_2 = arith.constant 0 : index
    %c0_3 = arith.constant 0 : index
    %2 = vector.load %arg3[%c0_2, %c0_3] : memref<8x8xf32, #tpu.memory_space<vmem>>, vector<8x8xf32>
    %c0_4 = arith.constant 0 : index
    %c0_5 = arith.constant 0 : index
    %3 = vector.load %arg4[%c0_4, %c0_5] : memref<3x32xf32, #tpu.memory_space<vmem>>, vector<3x32xf32>
    %4 = vector.extract_strided_slice %1 {offsets = [0, 0], sizes = [16, 1], strides = [1, 1]} : vector<16x3xf32> to vector<16x1xf32>
    %5 = vector.extract_strided_slice %3 {offsets = [0, 0], sizes = [1, 32], strides = [1, 1]} : vector<3x32xf32> to vector<1x32xf32>
    %6 = vector.broadcast %4 : vector<16x1xf32> to vector<16x32xf32>
    %7 = vector.broadcast %5 : vector<1x32xf32> to vector<16x32xf32>
    %8 = arith.mulf %6, %7 : vector<16x32xf32>
    %9 = vector.extract_strided_slice %1 {offsets = [0, 1], sizes = [16, 1], strides = [1, 1]} : vector<16x3xf32> to vector<16x1xf32>
    %10 = vector.extract_strided_slice %3 {offsets = [1, 0], sizes = [1, 32], strides = [1, 1]} : vector<3x32xf32> to vector<1x32xf32>
    %11 = vector.broadcast %9 : vector<16x1xf32> to vector<16x32xf32>
    %12 = vector.broadcast %10 : vector<1x32xf32> to vector<16x32xf32>
    %13 = arith.mulf %11, %12 : vector<16x32xf32>
    %14 = arith.addf %8, %13 : vector<16x32xf32>
    %15 = vector.extract_strided_slice %1 {offsets = [0, 2], sizes = [16, 1], strides = [1, 1]} : vector<16x3xf32> to vector<16x1xf32>
    %16 = vector.extract_strided_slice %3 {offsets = [2, 0], sizes = [1, 32], strides = [1, 1]} : vector<3x32xf32> to vector<1x32xf32>
    %17 = vector.broadcast %15 : vector<16x1xf32> to vector<16x32xf32>
    %18 = vector.broadcast %16 : vector<1x32xf32> to vector<16x32xf32>
    %19 = arith.mulf %17, %18 : vector<16x32xf32>
    %20 = arith.addf %14, %19 : vector<16x32xf32>
    %c0_6 = arith.constant 0 : index
    %c0_7 = arith.constant 0 : index
    %21 = vector.load %arg5[%c0_6, %c0_7] : memref<1x32xf32, #tpu.memory_space<vmem>>, vector<1x32xf32>
    %22 = vector.broadcast %21 : vector<1x32xf32> to vector<16x32xf32>
    %23 = arith.addf %20, %22 : vector<16x32xf32>
    %c0_8 = arith.constant 0 : index
    %c0_9 = arith.constant 0 : index
    %24 = vector.load %arg2[%c0_8, %c0_9] : memref<16x32xf32, #tpu.memory_space<vmem>>, vector<16x32xf32>
    %25 = arith.addf %23, %24 : vector<16x32xf32>
    %26 = arith.truncf %25 : vector<16x32xf32> to vector<16x32xbf16>
    %c0_10 = arith.constant 0 : index
    %c0_11 = arith.constant 0 : index
    %c0_12 = arith.constant 0 : index
    %27 = vector.load %arg6[%c0_10, %c0_11, %c0_12] : memref<2x32x96xbf16, #tpu.memory_space<vmem>>, vector<1x32x96xbf16>
    %28 = vector.shape_cast %27 : vector<1x32x96xbf16> to vector<32x96xbf16>
    %cst = arith.constant dense<0.000000e+00> : vector<16x96xf32>
    %29 = tpu.matmul %26, %28, %cst {dimension_numbers = #tpu.dot_dimension_numbers<[1], [0], [0], [1], [0, 0, 1, 1], [], []>} : vector<16x32xbf16>, vector<32x96xbf16>, vector<16x96xf32> -> vector<16x96xf32>
    %c0_13 = arith.constant 0 : index
    %c0_14 = arith.constant 0 : index
    %c0_15 = arith.constant 0 : index
    %30 = vector.load %arg7[%c0_13, %c0_14, %c0_15] : memref<2x1x96xf32, #tpu.memory_space<vmem>>, vector<1x1x96xf32>
    %31 = vector.shape_cast %30 : vector<1x1x96xf32> to vector<1x96xf32>
    %32 = vector.broadcast %31 : vector<1x96xf32> to vector<16x96xf32>
    %33 = arith.addf %29, %32 : vector<16x96xf32>
    %34 = vector.extract_strided_slice %33 {offsets = [0, 0], sizes = [16, 32], strides = [1, 1]} : vector<16x96xf32> to vector<16x32xf32>
    %35 = vector.shape_cast %34 : vector<16x32xf32> to vector<2x8x32xf32>
    %36 = vector.extract_strided_slice %33 {offsets = [0, 32], sizes = [16, 32], strides = [1, 1]} : vector<16x96xf32> to vector<16x32xf32>
    %37 = vector.shape_cast %36 : vector<16x32xf32> to vector<2x8x32xf32>
    %38 = vector.extract_strided_slice %33 {offsets = [0, 64], sizes = [16, 32], strides = [1, 1]} : vector<16x96xf32> to vector<16x32xf32>
    %39 = vector.shape_cast %38 : vector<16x32xf32> to vector<2x8x32xf32>
    %40 = vector.extract_strided_slice %35 {offsets = [0, 0, 0], sizes = [2, 8, 8], strides = [1, 1, 1]} : vector<2x8x32xf32> to vector<2x8x8xf32>
    %41 = arith.truncf %40 : vector<2x8x8xf32> to vector<2x8x8xbf16>
    %42 = vector.extract_strided_slice %37 {offsets = [0, 0, 0], sizes = [2, 8, 8], strides = [1, 1, 1]} : vector<2x8x32xf32> to vector<2x8x8xf32>
    %43 = arith.truncf %42 : vector<2x8x8xf32> to vector<2x8x8xbf16>
    %44 = vector.extract_strided_slice %39 {offsets = [0, 0, 0], sizes = [2, 8, 8], strides = [1, 1, 1]} : vector<2x8x32xf32> to vector<2x8x8xf32>
    %45 = arith.truncf %44 : vector<2x8x8xf32> to vector<2x8x8xbf16>
    "tpu.trace_start"() <{level = 10 : i32, message = "bqd,bkd->bqk"}> : () -> ()
    %cst_16 = arith.constant dense<0.000000e+00> : vector<2x8x8xf32>
    %46 = tpu.matmul %41, %43, %cst_16 {dimension_numbers = #tpu.dot_dimension_numbers<[2], [2], [1], [1], [0, 0, 0, 1, 1, 1], [0], [0]>} : vector<2x8x8xbf16>, vector<2x8x8xbf16>, vector<2x8x8xf32> -> vector<2x8x8xf32>
    "tpu.trace_stop"() : () -> ()
    %47 = vector.shape_cast %2 : vector<8x8xf32> to vector<1x8x8xf32>
    %48 = vector.broadcast %47 : vector<1x8x8xf32> to vector<2x8x8xf32>
    %49 = arith.addf %46, %48 : vector<2x8x8xf32>
    %cst_17 = arith.constant dense<0xFF800000> : vector<2x8xf32>
    %50 = vector.multi_reduction <maximumf>, %49, %cst_17 [2] : vector<2x8x8xf32> to vector<2x8xf32>
    %51 = vector.shape_cast %50 : vector<2x8xf32> to vector<2x8x1xf32>
    %52 = vector.broadcast %51 : vector<2x8x1xf32> to vector<2x8x8xf32>
    %53 = arith.subf %49, %52 : vector<2x8x8xf32>
    %54 = math.exp %53 : vector<2x8x8xf32>
    %cst_18 = arith.constant dense<0.000000e+00> : vector<2x8xf32>
    %55 = vector.multi_reduction <add>, %54, %cst_18 [2] : vector<2x8x8xf32> to vector<2x8xf32>
    %56 = vector.shape_cast %55 : vector<2x8xf32> to vector<2x8x1xf32>
    %57 = tpu.reciprocal %56 {approx = true} : vector<2x8x1xf32> -> vector<2x8x1xf32>
    %58 = vector.broadcast %57 : vector<2x8x1xf32> to vector<2x8x8xf32>
    %59 = arith.mulf %54, %58 : vector<2x8x8xf32>
    %60 = arith.truncf %59 : vector<2x8x8xf32> to vector<2x8x8xbf16>
    "tpu.trace_start"() <{level = 10 : i32, message = "bqk,bkd->bqd"}> : () -> ()
    %cst_19 = arith.constant dense<0.000000e+00> : vector<2x8x8xf32>
    %61 = tpu.matmul %60, %45, %cst_19 {dimension_numbers = #tpu.dot_dimension_numbers<[2], [1], [1], [2], [0, 0, 0, 1, 1, 2], [0], [0]>} : vector<2x8x8xbf16>, vector<2x8x8xbf16>, vector<2x8x8xf32> -> vector<2x8x8xf32>
    "tpu.trace_stop"() : () -> ()
    %62 = vector.extract_strided_slice %35 {offsets = [0, 0, 8], sizes = [2, 8, 8], strides = [1, 1, 1]} : vector<2x8x32xf32> to vector<2x8x8xf32>
    %63 = arith.truncf %62 : vector<2x8x8xf32> to vector<2x8x8xbf16>
    %64 = vector.extract_strided_slice %37 {offsets = [0, 0, 8], sizes = [2, 8, 8], strides = [1, 1, 1]} : vector<2x8x32xf32> to vector<2x8x8xf32>
    %65 = arith.truncf %64 : vector<2x8x8xf32> to vector<2x8x8xbf16>
    %66 = vector.extract_strided_slice %39 {offsets = [0, 0, 8], sizes = [2, 8, 8], strides = [1, 1, 1]} : vector<2x8x32xf32> to vector<2x8x8xf32>
    %67 = arith.truncf %66 : vector<2x8x8xf32> to vector<2x8x8xbf16>
    "tpu.trace_start"() <{level = 10 : i32, message = "bqd,bkd->bqk"}> : () -> ()
    %cst_20 = arith.constant dense<0.000000e+00> : vector<2x8x8xf32>
    %68 = tpu.matmul %63, %65, %cst_20 {dimension_numbers = #tpu.dot_dimension_numbers<[2], [2], [1], [1], [0, 0, 0, 1, 1, 1], [0], [0]>} : vector<2x8x8xbf16>, vector<2x8x8xbf16>, vector<2x8x8xf32> -> vector<2x8x8xf32>
    "tpu.trace_stop"() : () -> ()
    %69 = vector.shape_cast %2 : vector<8x8xf32> to vector<1x8x8xf32>
    %70 = vector.broadcast %69 : vector<1x8x8xf32> to vector<2x8x8xf32>
    %71 = arith.addf %68, %70 : vector<2x8x8xf32>
    %cst_21 = arith.constant dense<0xFF800000> : vector<2x8xf32>
    %72 = vector.multi_reduction <maximumf>, %71, %cst_21 [2] : vector<2x8x8xf32> to vector<2x8xf32>
    %73 = vector.shape_cast %72 : vector<2x8xf32> to vector<2x8x1xf32>
    %74 = vector.broadcast %73 : vector<2x8x1xf32> to vector<2x8x8xf32>
    %75 = arith.subf %71, %74 : vector<2x8x8xf32>
    %76 = math.exp %75 : vector<2x8x8xf32>
    %cst_22 = arith.constant dense<0.000000e+00> : vector<2x8xf32>
    %77 = vector.multi_reduction <add>, %76, %cst_22 [2] : vector<2x8x8xf32> to vector<2x8xf32>
    %78 = vector.shape_cast %77 : vector<2x8xf32> to vector<2x8x1xf32>
    %79 = tpu.reciprocal %78 {approx = true} : vector<2x8x1xf32> -> vector<2x8x1xf32>
    %80 = vector.broadcast %79 : vector<2x8x1xf32> to vector<2x8x8xf32>
    %81 = arith.mulf %76, %80 : vector<2x8x8xf32>
    %82 = arith.truncf %81 : vector<2x8x8xf32> to vector<2x8x8xbf16>
    "tpu.trace_start"() <{level = 10 : i32, message = "bqk,bkd->bqd"}> : () -> ()
    %cst_23 = arith.constant dense<0.000000e+00> : vector<2x8x8xf32>
    %83 = tpu.matmul %82, %67, %cst_23 {dimension_numbers = #tpu.dot_dimension_numbers<[2], [1], [1], [2], [0, 0, 0, 1, 1, 2], [0], [0]>} : vector<2x8x8xbf16>, vector<2x8x8xbf16>, vector<2x8x8xf32> -> vector<2x8x8xf32>
    "tpu.trace_stop"() : () -> ()
    %84 = vector.extract_strided_slice %35 {offsets = [0, 0, 16], sizes = [2, 8, 8], strides = [1, 1, 1]} : vector<2x8x32xf32> to vector<2x8x8xf32>
    %85 = arith.truncf %84 : vector<2x8x8xf32> to vector<2x8x8xbf16>
    %86 = vector.extract_strided_slice %37 {offsets = [0, 0, 16], sizes = [2, 8, 8], strides = [1, 1, 1]} : vector<2x8x32xf32> to vector<2x8x8xf32>
    %87 = arith.truncf %86 : vector<2x8x8xf32> to vector<2x8x8xbf16>
    %88 = vector.extract_strided_slice %39 {offsets = [0, 0, 16], sizes = [2, 8, 8], strides = [1, 1, 1]} : vector<2x8x32xf32> to vector<2x8x8xf32>
    %89 = arith.truncf %88 : vector<2x8x8xf32> to vector<2x8x8xbf16>
    "tpu.trace_start"() <{level = 10 : i32, message = "bqd,bkd->bqk"}> : () -> ()
    %cst_24 = arith.constant dense<0.000000e+00> : vector<2x8x8xf32>
    %90 = tpu.matmul %85, %87, %cst_24 {dimension_numbers = #tpu.dot_dimension_numbers<[2], [2], [1], [1], [0, 0, 0, 1, 1, 1], [0], [0]>} : vector<2x8x8xbf16>, vector<2x8x8xbf16>, vector<2x8x8xf32> -> vector<2x8x8xf32>
    "tpu.trace_stop"() : () -> ()
    %91 = vector.shape_cast %2 : vector<8x8xf32> to vector<1x8x8xf32>
    %92 = vector.broadcast %91 : vector<1x8x8xf32> to vector<2x8x8xf32>
    %93 = arith.addf %90, %92 : vector<2x8x8xf32>
    %cst_25 = arith.constant dense<0xFF800000> : vector<2x8xf32>
    %94 = vector.multi_reduction <maximumf>, %93, %cst_25 [2] : vector<2x8x8xf32> to vector<2x8xf32>
    %95 = vector.shape_cast %94 : vector<2x8xf32> to vector<2x8x1xf32>
    %96 = vector.broadcast %95 : vector<2x8x1xf32> to vector<2x8x8xf32>
    %97 = arith.subf %93, %96 : vector<2x8x8xf32>
    %98 = math.exp %97 : vector<2x8x8xf32>
    %cst_26 = arith.constant dense<0.000000e+00> : vector<2x8xf32>
    %99 = vector.multi_reduction <add>, %98, %cst_26 [2] : vector<2x8x8xf32> to vector<2x8xf32>
    %100 = vector.shape_cast %99 : vector<2x8xf32> to vector<2x8x1xf32>
    %101 = tpu.reciprocal %100 {approx = true} : vector<2x8x1xf32> -> vector<2x8x1xf32>
    %102 = vector.broadcast %101 : vector<2x8x1xf32> to vector<2x8x8xf32>
    %103 = arith.mulf %98, %102 : vector<2x8x8xf32>
    %104 = arith.truncf %103 : vector<2x8x8xf32> to vector<2x8x8xbf16>
    "tpu.trace_start"() <{level = 10 : i32, message = "bqk,bkd->bqd"}> : () -> ()
    %cst_27 = arith.constant dense<0.000000e+00> : vector<2x8x8xf32>
    %105 = tpu.matmul %104, %89, %cst_27 {dimension_numbers = #tpu.dot_dimension_numbers<[2], [1], [1], [2], [0, 0, 0, 1, 1, 2], [0], [0]>} : vector<2x8x8xbf16>, vector<2x8x8xbf16>, vector<2x8x8xf32> -> vector<2x8x8xf32>
    "tpu.trace_stop"() : () -> ()
    %106 = vector.extract_strided_slice %35 {offsets = [0, 0, 24], sizes = [2, 8, 8], strides = [1, 1, 1]} : vector<2x8x32xf32> to vector<2x8x8xf32>
    %107 = arith.truncf %106 : vector<2x8x8xf32> to vector<2x8x8xbf16>
    %108 = vector.extract_strided_slice %37 {offsets = [0, 0, 24], sizes = [2, 8, 8], strides = [1, 1, 1]} : vector<2x8x32xf32> to vector<2x8x8xf32>
    %109 = arith.truncf %108 : vector<2x8x8xf32> to vector<2x8x8xbf16>
    %110 = vector.extract_strided_slice %39 {offsets = [0, 0, 24], sizes = [2, 8, 8], strides = [1, 1, 1]} : vector<2x8x32xf32> to vector<2x8x8xf32>
    %111 = arith.truncf %110 : vector<2x8x8xf32> to vector<2x8x8xbf16>
    "tpu.trace_start"() <{level = 10 : i32, message = "bqd,bkd->bqk"}> : () -> ()
    %cst_28 = arith.constant dense<0.000000e+00> : vector<2x8x8xf32>
    %112 = tpu.matmul %107, %109, %cst_28 {dimension_numbers = #tpu.dot_dimension_numbers<[2], [2], [1], [1], [0, 0, 0, 1, 1, 1], [0], [0]>} : vector<2x8x8xbf16>, vector<2x8x8xbf16>, vector<2x8x8xf32> -> vector<2x8x8xf32>
    "tpu.trace_stop"() : () -> ()
    %113 = vector.shape_cast %2 : vector<8x8xf32> to vector<1x8x8xf32>
    %114 = vector.broadcast %113 : vector<1x8x8xf32> to vector<2x8x8xf32>
    %115 = arith.addf %112, %114 : vector<2x8x8xf32>
    %cst_29 = arith.constant dense<0xFF800000> : vector<2x8xf32>
    %116 = vector.multi_reduction <maximumf>, %115, %cst_29 [2] : vector<2x8x8xf32> to vector<2x8xf32>
    %117 = vector.shape_cast %116 : vector<2x8xf32> to vector<2x8x1xf32>
    %118 = vector.broadcast %117 : vector<2x8x1xf32> to vector<2x8x8xf32>
    %119 = arith.subf %115, %118 : vector<2x8x8xf32>
    %120 = math.exp %119 : vector<2x8x8xf32>
    %cst_30 = arith.constant dense<0.000000e+00> : vector<2x8xf32>
    %121 = vector.multi_reduction <add>, %120, %cst_30 [2] : vector<2x8x8xf32> to vector<2x8xf32>
    %122 = vector.shape_cast %121 : vector<2x8xf32> to vector<2x8x1xf32>
    %123 = tpu.reciprocal %122 {approx = true} : vector<2x8x1xf32> -> vector<2x8x1xf32>
    %124 = vector.broadcast %123 : vector<2x8x1xf32> to vector<2x8x8xf32>
    %125 = arith.mulf %120, %124 : vector<2x8x8xf32>
    %126 = arith.truncf %125 : vector<2x8x8xf32> to vector<2x8x8xbf16>
    "tpu.trace_start"() <{level = 10 : i32, message = "bqk,bkd->bqd"}> : () -> ()
    %cst_31 = arith.constant dense<0.000000e+00> : vector<2x8x8xf32>
    %127 = tpu.matmul %126, %111, %cst_31 {dimension_numbers = #tpu.dot_dimension_numbers<[2], [1], [1], [2], [0, 0, 0, 1, 1, 2], [0], [0]>} : vector<2x8x8xbf16>, vector<2x8x8xbf16>, vector<2x8x8xf32> -> vector<2x8x8xf32>
    "tpu.trace_stop"() : () -> ()
    %128 = tpu.concatenate %61, %83, %105, %127 in 2 : vector<2x8x8xf32>, vector<2x8x8xf32>, vector<2x8x8xf32>, vector<2x8x8xf32> -> vector<2x8x32xf32>
    %129 = vector.shape_cast %128 : vector<2x8x32xf32> to vector<16x32xf32>
    %130 = arith.truncf %129 : vector<16x32xf32> to vector<16x32xbf16>
    %c0_32 = arith.constant 0 : index
    %c0_33 = arith.constant 0 : index
    %c0_34 = arith.constant 0 : index
    %131 = vector.load %arg8[%c0_32, %c0_33, %c0_34] : memref<2x32x32xbf16, #tpu.memory_space<vmem>>, vector<1x32x32xbf16>
    %132 = vector.shape_cast %131 : vector<1x32x32xbf16> to vector<32x32xbf16>
    %cst_35 = arith.constant dense<0.000000e+00> : vector<16x32xf32>
    %133 = tpu.matmul %130, %132, %cst_35 {dimension_numbers = #tpu.dot_dimension_numbers<[1], [0], [0], [1], [0, 0, 1, 1], [], []>} : vector<16x32xbf16>, vector<32x32xbf16>, vector<16x32xf32> -> vector<16x32xf32>
    %c0_36 = arith.constant 0 : index
    %c0_37 = arith.constant 0 : index
    %c0_38 = arith.constant 0 : index
    %134 = vector.load %arg9[%c0_36, %c0_37, %c0_38] : memref<2x1x32xf32, #tpu.memory_space<vmem>>, vector<1x1x32xf32>
    %135 = vector.shape_cast %134 : vector<1x1x32xf32> to vector<1x32xf32>
    %136 = vector.broadcast %135 : vector<1x32xf32> to vector<16x32xf32>
    %137 = arith.addf %133, %136 : vector<16x32xf32>
    %138 = arith.addf %25, %137 : vector<16x32xf32>
    %c0_39 = arith.constant 0 : index
    %c0_40 = arith.constant 0 : index
    %c0_41 = arith.constant 0 : index
    %139 = vector.load %arg14[%c0_39, %c0_40, %c0_41] : memref<2x1x32xf32, #tpu.memory_space<vmem>>, vector<1x1x32xf32>
    %140 = vector.shape_cast %139 : vector<1x1x32xf32> to vector<1x32xf32>
    %c0_42 = arith.constant 0 : index
    %c0_43 = arith.constant 0 : index
    %c0_44 = arith.constant 0 : index
    %141 = vector.load %arg15[%c0_42, %c0_43, %c0_44] : memref<2x1x32xf32, #tpu.memory_space<vmem>>, vector<1x1x32xf32>
    %142 = vector.shape_cast %141 : vector<1x1x32xf32> to vector<1x32xf32>
    %cst_45 = arith.constant dense<0.000000e+00> : vector<16xf32>
    %143 = vector.multi_reduction <add>, %138, %cst_45 [1] : vector<16x32xf32> to vector<16xf32>
    %144 = vector.shape_cast %143 : vector<16xf32> to vector<16x1xf32>
    %cst_46 = arith.constant 3.200000e+01 : f32
    %145 = vector.broadcast %cst_46 : f32 to vector<16x1xf32>
    %146 = arith.divf %144, %145 : vector<16x1xf32>
    %147 = vector.broadcast %146 : vector<16x1xf32> to vector<16x32xf32>
    %148 = arith.subf %138, %147 : vector<16x32xf32>
    %149 = arith.mulf %148, %148 : vector<16x32xf32>
    %cst_47 = arith.constant dense<0.000000e+00> : vector<16xf32>
    %150 = vector.multi_reduction <add>, %149, %cst_47 [1] : vector<16x32xf32> to vector<16xf32>
    %151 = vector.shape_cast %150 : vector<16xf32> to vector<16x1xf32>
    %cst_48 = arith.constant 3.200000e+01 : f32
    %152 = vector.broadcast %cst_48 : f32 to vector<16x1xf32>
    %153 = arith.divf %151, %152 : vector<16x1xf32>
    %cst_49 = arith.constant 9.99999974E-6 : f32
    %154 = vector.broadcast %cst_49 : f32 to vector<16x1xf32>
    %155 = arith.addf %153, %154 : vector<16x1xf32>
    %156 = math.rsqrt %155 : vector<16x1xf32>
    %157 = vector.broadcast %156 : vector<16x1xf32> to vector<16x32xf32>
    %158 = arith.mulf %148, %157 : vector<16x32xf32>
    %159 = vector.broadcast %140 : vector<1x32xf32> to vector<16x32xf32>
    %160 = arith.mulf %158, %159 : vector<16x32xf32>
    %161 = vector.broadcast %142 : vector<1x32xf32> to vector<16x32xf32>
    %162 = arith.addf %160, %161 : vector<16x32xf32>
    %163 = arith.truncf %162 : vector<16x32xf32> to vector<16x32xbf16>
    %c0_50 = arith.constant 0 : index
    %c0_51 = arith.constant 0 : index
    %c0_52 = arith.constant 0 : index
    %164 = vector.load %arg10[%c0_50, %c0_51, %c0_52] : memref<2x32x64xbf16, #tpu.memory_space<vmem>>, vector<1x32x64xbf16>
    %165 = vector.shape_cast %164 : vector<1x32x64xbf16> to vector<32x64xbf16>
    %cst_53 = arith.constant dense<0.000000e+00> : vector<16x64xf32>
    %166 = tpu.matmul %163, %165, %cst_53 {dimension_numbers = #tpu.dot_dimension_numbers<[1], [0], [0], [1], [0, 0, 1, 1], [], []>} : vector<16x32xbf16>, vector<32x64xbf16>, vector<16x64xf32> -> vector<16x64xf32>
    %c0_54 = arith.constant 0 : index
    %c0_55 = arith.constant 0 : index
    %c0_56 = arith.constant 0 : index
    %167 = vector.load %arg11[%c0_54, %c0_55, %c0_56] : memref<2x1x64xf32, #tpu.memory_space<vmem>>, vector<1x1x64xf32>
    %168 = vector.shape_cast %167 : vector<1x1x64xf32> to vector<1x64xf32>
    %169 = vector.broadcast %168 : vector<1x64xf32> to vector<16x64xf32>
    %170 = arith.addf %166, %169 : vector<16x64xf32>
    %cst_57 = arith.constant 0.000000e+00 : f32
    %171 = vector.broadcast %cst_57 : f32 to vector<16x64xf32>
    %172 = arith.maximumf %170, %171 : vector<16x64xf32>
    %173 = arith.truncf %172 : vector<16x64xf32> to vector<16x64xbf16>
    %c0_58 = arith.constant 0 : index
    %c0_59 = arith.constant 0 : index
    %c0_60 = arith.constant 0 : index
    %174 = vector.load %arg12[%c0_58, %c0_59, %c0_60] : memref<2x64x32xbf16, #tpu.memory_space<vmem>>, vector<1x64x32xbf16>
    %175 = vector.shape_cast %174 : vector<1x64x32xbf16> to vector<64x32xbf16>
    %cst_61 = arith.constant dense<0.000000e+00> : vector<16x32xf32>
    %176 = tpu.matmul %173, %175, %cst_61 {dimension_numbers = #tpu.dot_dimension_numbers<[1], [0], [0], [1], [0, 0, 1, 1], [], []>} : vector<16x64xbf16>, vector<64x32xbf16>, vector<16x32xf32> -> vector<16x32xf32>
    %c0_62 = arith.constant 0 : index
    %c0_63 = arith.constant 0 : index
    %c0_64 = arith.constant 0 : index
    %177 = vector.load %arg13[%c0_62, %c0_63, %c0_64] : memref<2x1x32xf32, #tpu.memory_space<vmem>>, vector<1x1x32xf32>
    %178 = vector.shape_cast %177 : vector<1x1x32xf32> to vector<1x32xf32>
    %179 = vector.broadcast %178 : vector<1x32xf32> to vector<16x32xf32>
    %180 = arith.addf %176, %179 : vector<16x32xf32>
    %181 = arith.addf %162, %180 : vector<16x32xf32>
    %c0_65 = arith.constant 0 : index
    %c0_66 = arith.constant 0 : index
    %c0_67 = arith.constant 0 : index
    %182 = vector.load %arg16[%c0_65, %c0_66, %c0_67] : memref<2x1x32xf32, #tpu.memory_space<vmem>>, vector<1x1x32xf32>
    %183 = vector.shape_cast %182 : vector<1x1x32xf32> to vector<1x32xf32>
    %c0_68 = arith.constant 0 : index
    %c0_69 = arith.constant 0 : index
    %c0_70 = arith.constant 0 : index
    %184 = vector.load %arg17[%c0_68, %c0_69, %c0_70] : memref<2x1x32xf32, #tpu.memory_space<vmem>>, vector<1x1x32xf32>
    %185 = vector.shape_cast %184 : vector<1x1x32xf32> to vector<1x32xf32>
    %cst_71 = arith.constant dense<0.000000e+00> : vector<16xf32>
    %186 = vector.multi_reduction <add>, %181, %cst_71 [1] : vector<16x32xf32> to vector<16xf32>
    %187 = vector.shape_cast %186 : vector<16xf32> to vector<16x1xf32>
    %cst_72 = arith.constant 3.200000e+01 : f32
    %188 = vector.broadcast %cst_72 : f32 to vector<16x1xf32>
    %189 = arith.divf %187, %188 : vector<16x1xf32>
    %190 = vector.broadcast %189 : vector<16x1xf32> to vector<16x32xf32>
    %191 = arith.subf %181, %190 : vector<16x32xf32>
    %192 = arith.mulf %191, %191 : vector<16x32xf32>
    %cst_73 = arith.constant dense<0.000000e+00> : vector<16xf32>
    %193 = vector.multi_reduction <add>, %192, %cst_73 [1] : vector<16x32xf32> to vector<16xf32>
    %194 = vector.shape_cast %193 : vector<16xf32> to vector<16x1xf32>
    %cst_74 = arith.constant 3.200000e+01 : f32
    %195 = vector.broadcast %cst_74 : f32 to vector<16x1xf32>
    %196 = arith.divf %194, %195 : vector<16x1xf32>
    %cst_75 = arith.constant 9.99999974E-6 : f32
    %197 = vector.broadcast %cst_75 : f32 to vector<16x1xf32>
    %198 = arith.addf %196, %197 : vector<16x1xf32>
    %199 = math.rsqrt %198 : vector<16x1xf32>
    %200 = vector.broadcast %199 : vector<16x1xf32> to vector<16x32xf32>
    %201 = arith.mulf %191, %200 : vector<16x32xf32>
    %202 = vector.broadcast %183 : vector<1x32xf32> to vector<16x32xf32>
    %203 = arith.mulf %201, %202 : vector<16x32xf32>
    %204 = vector.broadcast %185 : vector<1x32xf32> to vector<16x32xf32>
    %205 = arith.addf %203, %204 : vector<16x32xf32>
    %206 = arith.truncf %205 : vector<16x32xf32> to vector<16x32xbf16>
    %c1 = arith.constant 1 : index
    %c0_76 = arith.constant 0 : index
    %c0_77 = arith.constant 0 : index
    %207 = vector.load %arg6[%c1, %c0_76, %c0_77] : memref<2x32x96xbf16, #tpu.memory_space<vmem>>, vector<1x32x96xbf16>
    %208 = vector.shape_cast %207 : vector<1x32x96xbf16> to vector<32x96xbf16>
    %cst_78 = arith.constant dense<0.000000e+00> : vector<16x96xf32>
    %209 = tpu.matmul %206, %208, %cst_78 {dimension_numbers = #tpu.dot_dimension_numbers<[1], [0], [0], [1], [0, 0, 1, 1], [], []>} : vector<16x32xbf16>, vector<32x96xbf16>, vector<16x96xf32> -> vector<16x96xf32>
    %c1_79 = arith.constant 1 : index
    %c0_80 = arith.constant 0 : index
    %c0_81 = arith.constant 0 : index
    %210 = vector.load %arg7[%c1_79, %c0_80, %c0_81] : memref<2x1x96xf32, #tpu.memory_space<vmem>>, vector<1x1x96xf32>
    %211 = vector.shape_cast %210 : vector<1x1x96xf32> to vector<1x96xf32>
    %212 = vector.broadcast %211 : vector<1x96xf32> to vector<16x96xf32>
    %213 = arith.addf %209, %212 : vector<16x96xf32>
    %214 = vector.extract_strided_slice %213 {offsets = [0, 0], sizes = [16, 32], strides = [1, 1]} : vector<16x96xf32> to vector<16x32xf32>
    %215 = vector.shape_cast %214 : vector<16x32xf32> to vector<2x8x32xf32>
    %216 = vector.extract_strided_slice %213 {offsets = [0, 32], sizes = [16, 32], strides = [1, 1]} : vector<16x96xf32> to vector<16x32xf32>
    %217 = vector.shape_cast %216 : vector<16x32xf32> to vector<2x8x32xf32>
    %218 = vector.extract_strided_slice %213 {offsets = [0, 64], sizes = [16, 32], strides = [1, 1]} : vector<16x96xf32> to vector<16x32xf32>
    %219 = vector.shape_cast %218 : vector<16x32xf32> to vector<2x8x32xf32>
    %220 = vector.extract_strided_slice %215 {offsets = [0, 0, 0], sizes = [2, 8, 8], strides = [1, 1, 1]} : vector<2x8x32xf32> to vector<2x8x8xf32>
    %221 = arith.truncf %220 : vector<2x8x8xf32> to vector<2x8x8xbf16>
    %222 = vector.extract_strided_slice %217 {offsets = [0, 0, 0], sizes = [2, 8, 8], strides = [1, 1, 1]} : vector<2x8x32xf32> to vector<2x8x8xf32>
    %223 = arith.truncf %222 : vector<2x8x8xf32> to vector<2x8x8xbf16>
    %224 = vector.extract_strided_slice %219 {offsets = [0, 0, 0], sizes = [2, 8, 8], strides = [1, 1, 1]} : vector<2x8x32xf32> to vector<2x8x8xf32>
    %225 = arith.truncf %224 : vector<2x8x8xf32> to vector<2x8x8xbf16>
    "tpu.trace_start"() <{level = 10 : i32, message = "bqd,bkd->bqk"}> : () -> ()
    %cst_82 = arith.constant dense<0.000000e+00> : vector<2x8x8xf32>
    %226 = tpu.matmul %221, %223, %cst_82 {dimension_numbers = #tpu.dot_dimension_numbers<[2], [2], [1], [1], [0, 0, 0, 1, 1, 1], [0], [0]>} : vector<2x8x8xbf16>, vector<2x8x8xbf16>, vector<2x8x8xf32> -> vector<2x8x8xf32>
    "tpu.trace_stop"() : () -> ()
    %227 = vector.shape_cast %2 : vector<8x8xf32> to vector<1x8x8xf32>
    %228 = vector.broadcast %227 : vector<1x8x8xf32> to vector<2x8x8xf32>
    %229 = arith.addf %226, %228 : vector<2x8x8xf32>
    %cst_83 = arith.constant dense<0xFF800000> : vector<2x8xf32>
    %230 = vector.multi_reduction <maximumf>, %229, %cst_83 [2] : vector<2x8x8xf32> to vector<2x8xf32>
    %231 = vector.shape_cast %230 : vector<2x8xf32> to vector<2x8x1xf32>
    %232 = vector.broadcast %231 : vector<2x8x1xf32> to vector<2x8x8xf32>
    %233 = arith.subf %229, %232 : vector<2x8x8xf32>
    %234 = math.exp %233 : vector<2x8x8xf32>
    %cst_84 = arith.constant dense<0.000000e+00> : vector<2x8xf32>
    %235 = vector.multi_reduction <add>, %234, %cst_84 [2] : vector<2x8x8xf32> to vector<2x8xf32>
    %236 = vector.shape_cast %235 : vector<2x8xf32> to vector<2x8x1xf32>
    %237 = tpu.reciprocal %236 {approx = true} : vector<2x8x1xf32> -> vector<2x8x1xf32>
    %238 = vector.broadcast %237 : vector<2x8x1xf32> to vector<2x8x8xf32>
    %239 = arith.mulf %234, %238 : vector<2x8x8xf32>
    %240 = arith.truncf %239 : vector<2x8x8xf32> to vector<2x8x8xbf16>
    "tpu.trace_start"() <{level = 10 : i32, message = "bqk,bkd->bqd"}> : () -> ()
    %cst_85 = arith.constant dense<0.000000e+00> : vector<2x8x8xf32>
    %241 = tpu.matmul %240, %225, %cst_85 {dimension_numbers = #tpu.dot_dimension_numbers<[2], [1], [1], [2], [0, 0, 0, 1, 1, 2], [0], [0]>} : vector<2x8x8xbf16>, vector<2x8x8xbf16>, vector<2x8x8xf32> -> vector<2x8x8xf32>
    "tpu.trace_stop"() : () -> ()
    %242 = vector.extract_strided_slice %215 {offsets = [0, 0, 8], sizes = [2, 8, 8], strides = [1, 1, 1]} : vector<2x8x32xf32> to vector<2x8x8xf32>
    %243 = arith.truncf %242 : vector<2x8x8xf32> to vector<2x8x8xbf16>
    %244 = vector.extract_strided_slice %217 {offsets = [0, 0, 8], sizes = [2, 8, 8], strides = [1, 1, 1]} : vector<2x8x32xf32> to vector<2x8x8xf32>
    %245 = arith.truncf %244 : vector<2x8x8xf32> to vector<2x8x8xbf16>
    %246 = vector.extract_strided_slice %219 {offsets = [0, 0, 8], sizes = [2, 8, 8], strides = [1, 1, 1]} : vector<2x8x32xf32> to vector<2x8x8xf32>
    %247 = arith.truncf %246 : vector<2x8x8xf32> to vector<2x8x8xbf16>
    "tpu.trace_start"() <{level = 10 : i32, message = "bqd,bkd->bqk"}> : () -> ()
    %cst_86 = arith.constant dense<0.000000e+00> : vector<2x8x8xf32>
    %248 = tpu.matmul %243, %245, %cst_86 {dimension_numbers = #tpu.dot_dimension_numbers<[2], [2], [1], [1], [0, 0, 0, 1, 1, 1], [0], [0]>} : vector<2x8x8xbf16>, vector<2x8x8xbf16>, vector<2x8x8xf32> -> vector<2x8x8xf32>
    "tpu.trace_stop"() : () -> ()
    %249 = vector.shape_cast %2 : vector<8x8xf32> to vector<1x8x8xf32>
    %250 = vector.broadcast %249 : vector<1x8x8xf32> to vector<2x8x8xf32>
    %251 = arith.addf %248, %250 : vector<2x8x8xf32>
    %cst_87 = arith.constant dense<0xFF800000> : vector<2x8xf32>
    %252 = vector.multi_reduction <maximumf>, %251, %cst_87 [2] : vector<2x8x8xf32> to vector<2x8xf32>
    %253 = vector.shape_cast %252 : vector<2x8xf32> to vector<2x8x1xf32>
    %254 = vector.broadcast %253 : vector<2x8x1xf32> to vector<2x8x8xf32>
    %255 = arith.subf %251, %254 : vector<2x8x8xf32>
    %256 = math.exp %255 : vector<2x8x8xf32>
    %cst_88 = arith.constant dense<0.000000e+00> : vector<2x8xf32>
    %257 = vector.multi_reduction <add>, %256, %cst_88 [2] : vector<2x8x8xf32> to vector<2x8xf32>
    %258 = vector.shape_cast %257 : vector<2x8xf32> to vector<2x8x1xf32>
    %259 = tpu.reciprocal %258 {approx = true} : vector<2x8x1xf32> -> vector<2x8x1xf32>
    %260 = vector.broadcast %259 : vector<2x8x1xf32> to vector<2x8x8xf32>
    %261 = arith.mulf %256, %260 : vector<2x8x8xf32>
    %262 = arith.truncf %261 : vector<2x8x8xf32> to vector<2x8x8xbf16>
    "tpu.trace_start"() <{level = 10 : i32, message = "bqk,bkd->bqd"}> : () -> ()
    %cst_89 = arith.constant dense<0.000000e+00> : vector<2x8x8xf32>
    %263 = tpu.matmul %262, %247, %cst_89 {dimension_numbers = #tpu.dot_dimension_numbers<[2], [1], [1], [2], [0, 0, 0, 1, 1, 2], [0], [0]>} : vector<2x8x8xbf16>, vector<2x8x8xbf16>, vector<2x8x8xf32> -> vector<2x8x8xf32>
    "tpu.trace_stop"() : () -> ()
    %264 = vector.extract_strided_slice %215 {offsets = [0, 0, 16], sizes = [2, 8, 8], strides = [1, 1, 1]} : vector<2x8x32xf32> to vector<2x8x8xf32>
    %265 = arith.truncf %264 : vector<2x8x8xf32> to vector<2x8x8xbf16>
    %266 = vector.extract_strided_slice %217 {offsets = [0, 0, 16], sizes = [2, 8, 8], strides = [1, 1, 1]} : vector<2x8x32xf32> to vector<2x8x8xf32>
    %267 = arith.truncf %266 : vector<2x8x8xf32> to vector<2x8x8xbf16>
    %268 = vector.extract_strided_slice %219 {offsets = [0, 0, 16], sizes = [2, 8, 8], strides = [1, 1, 1]} : vector<2x8x32xf32> to vector<2x8x8xf32>
    %269 = arith.truncf %268 : vector<2x8x8xf32> to vector<2x8x8xbf16>
    "tpu.trace_start"() <{level = 10 : i32, message = "bqd,bkd->bqk"}> : () -> ()
    %cst_90 = arith.constant dense<0.000000e+00> : vector<2x8x8xf32>
    %270 = tpu.matmul %265, %267, %cst_90 {dimension_numbers = #tpu.dot_dimension_numbers<[2], [2], [1], [1], [0, 0, 0, 1, 1, 1], [0], [0]>} : vector<2x8x8xbf16>, vector<2x8x8xbf16>, vector<2x8x8xf32> -> vector<2x8x8xf32>
    "tpu.trace_stop"() : () -> ()
    %271 = vector.shape_cast %2 : vector<8x8xf32> to vector<1x8x8xf32>
    %272 = vector.broadcast %271 : vector<1x8x8xf32> to vector<2x8x8xf32>
    %273 = arith.addf %270, %272 : vector<2x8x8xf32>
    %cst_91 = arith.constant dense<0xFF800000> : vector<2x8xf32>
    %274 = vector.multi_reduction <maximumf>, %273, %cst_91 [2] : vector<2x8x8xf32> to vector<2x8xf32>
    %275 = vector.shape_cast %274 : vector<2x8xf32> to vector<2x8x1xf32>
    %276 = vector.broadcast %275 : vector<2x8x1xf32> to vector<2x8x8xf32>
    %277 = arith.subf %273, %276 : vector<2x8x8xf32>
    %278 = math.exp %277 : vector<2x8x8xf32>
    %cst_92 = arith.constant dense<0.000000e+00> : vector<2x8xf32>
    %279 = vector.multi_reduction <add>, %278, %cst_92 [2] : vector<2x8x8xf32> to vector<2x8xf32>
    %280 = vector.shape_cast %279 : vector<2x8xf32> to vector<2x8x1xf32>
    %281 = tpu.reciprocal %280 {approx = true} : vector<2x8x1xf32> -> vector<2x8x1xf32>
    %282 = vector.broadcast %281 : vector<2x8x1xf32> to vector<2x8x8xf32>
    %283 = arith.mulf %278, %282 : vector<2x8x8xf32>
    %284 = arith.truncf %283 : vector<2x8x8xf32> to vector<2x8x8xbf16>
    "tpu.trace_start"() <{level = 10 : i32, message = "bqk,bkd->bqd"}> : () -> ()
    %cst_93 = arith.constant dense<0.000000e+00> : vector<2x8x8xf32>
    %285 = tpu.matmul %284, %269, %cst_93 {dimension_numbers = #tpu.dot_dimension_numbers<[2], [1], [1], [2], [0, 0, 0, 1, 1, 2], [0], [0]>} : vector<2x8x8xbf16>, vector<2x8x8xbf16>, vector<2x8x8xf32> -> vector<2x8x8xf32>
    "tpu.trace_stop"() : () -> ()
    %286 = vector.extract_strided_slice %215 {offsets = [0, 0, 24], sizes = [2, 8, 8], strides = [1, 1, 1]} : vector<2x8x32xf32> to vector<2x8x8xf32>
    %287 = arith.truncf %286 : vector<2x8x8xf32> to vector<2x8x8xbf16>
    %288 = vector.extract_strided_slice %217 {offsets = [0, 0, 24], sizes = [2, 8, 8], strides = [1, 1, 1]} : vector<2x8x32xf32> to vector<2x8x8xf32>
    %289 = arith.truncf %288 : vector<2x8x8xf32> to vector<2x8x8xbf16>
    %290 = vector.extract_strided_slice %219 {offsets = [0, 0, 24], sizes = [2, 8, 8], strides = [1, 1, 1]} : vector<2x8x32xf32> to vector<2x8x8xf32>
    %291 = arith.truncf %290 : vector<2x8x8xf32> to vector<2x8x8xbf16>
    "tpu.trace_start"() <{level = 10 : i32, message = "bqd,bkd->bqk"}> : () -> ()
    %cst_94 = arith.constant dense<0.000000e+00> : vector<2x8x8xf32>
    %292 = tpu.matmul %287, %289, %cst_94 {dimension_numbers = #tpu.dot_dimension_numbers<[2], [2], [1], [1], [0, 0, 0, 1, 1, 1], [0], [0]>} : vector<2x8x8xbf16>, vector<2x8x8xbf16>, vector<2x8x8xf32> -> vector<2x8x8xf32>
    "tpu.trace_stop"() : () -> ()
    %293 = vector.shape_cast %2 : vector<8x8xf32> to vector<1x8x8xf32>
    %294 = vector.broadcast %293 : vector<1x8x8xf32> to vector<2x8x8xf32>
    %295 = arith.addf %292, %294 : vector<2x8x8xf32>
    %cst_95 = arith.constant dense<0xFF800000> : vector<2x8xf32>
    %296 = vector.multi_reduction <maximumf>, %295, %cst_95 [2] : vector<2x8x8xf32> to vector<2x8xf32>
    %297 = vector.shape_cast %296 : vector<2x8xf32> to vector<2x8x1xf32>
    %298 = vector.broadcast %297 : vector<2x8x1xf32> to vector<2x8x8xf32>
    %299 = arith.subf %295, %298 : vector<2x8x8xf32>
    %300 = math.exp %299 : vector<2x8x8xf32>
    %cst_96 = arith.constant dense<0.000000e+00> : vector<2x8xf32>
    %301 = vector.multi_reduction <add>, %300, %cst_96 [2] : vector<2x8x8xf32> to vector<2x8xf32>
    %302 = vector.shape_cast %301 : vector<2x8xf32> to vector<2x8x1xf32>
    %303 = tpu.reciprocal %302 {approx = true} : vector<2x8x1xf32> -> vector<2x8x1xf32>
    %304 = vector.broadcast %303 : vector<2x8x1xf32> to vector<2x8x8xf32>
    %305 = arith.mulf %300, %304 : vector<2x8x8xf32>
    %306 = arith.truncf %305 : vector<2x8x8xf32> to vector<2x8x8xbf16>
    "tpu.trace_start"() <{level = 10 : i32, message = "bqk,bkd->bqd"}> : () -> ()
    %cst_97 = arith.constant dense<0.000000e+00> : vector<2x8x8xf32>
    %307 = tpu.matmul %306, %291, %cst_97 {dimension_numbers = #tpu.dot_dimension_numbers<[2], [1], [1], [2], [0, 0, 0, 1, 1, 2], [0], [0]>} : vector<2x8x8xbf16>, vector<2x8x8xbf16>, vector<2x8x8xf32> -> vector<2x8x8xf32>
    "tpu.trace_stop"() : () -> ()
    %308 = tpu.concatenate %241, %263, %285, %307 in 2 : vector<2x8x8xf32>, vector<2x8x8xf32>, vector<2x8x8xf32>, vector<2x8x8xf32> -> vector<2x8x32xf32>
    %309 = vector.shape_cast %308 : vector<2x8x32xf32> to vector<16x32xf32>
    %310 = arith.truncf %309 : vector<16x32xf32> to vector<16x32xbf16>
    %c1_98 = arith.constant 1 : index
    %c0_99 = arith.constant 0 : index
    %c0_100 = arith.constant 0 : index
    %311 = vector.load %arg8[%c1_98, %c0_99, %c0_100] : memref<2x32x32xbf16, #tpu.memory_space<vmem>>, vector<1x32x32xbf16>
    %312 = vector.shape_cast %311 : vector<1x32x32xbf16> to vector<32x32xbf16>
    %cst_101 = arith.constant dense<0.000000e+00> : vector<16x32xf32>
    %313 = tpu.matmul %310, %312, %cst_101 {dimension_numbers = #tpu.dot_dimension_numbers<[1], [0], [0], [1], [0, 0, 1, 1], [], []>} : vector<16x32xbf16>, vector<32x32xbf16>, vector<16x32xf32> -> vector<16x32xf32>
    %c1_102 = arith.constant 1 : index
    %c0_103 = arith.constant 0 : index
    %c0_104 = arith.constant 0 : index
    %314 = vector.load %arg9[%c1_102, %c0_103, %c0_104] : memref<2x1x32xf32, #tpu.memory_space<vmem>>, vector<1x1x32xf32>
    %315 = vector.shape_cast %314 : vector<1x1x32xf32> to vector<1x32xf32>
    %316 = vector.broadcast %315 : vector<1x32xf32> to vector<16x32xf32>
    %317 = arith.addf %313, %316 : vector<16x32xf32>
    %318 = arith.addf %205, %317 : vector<16x32xf32>
    %c1_105 = arith.constant 1 : index
    %c0_106 = arith.constant 0 : index
    %c0_107 = arith.constant 0 : index
    %319 = vector.load %arg14[%c1_105, %c0_106, %c0_107] : memref<2x1x32xf32, #tpu.memory_space<vmem>>, vector<1x1x32xf32>
    %320 = vector.shape_cast %319 : vector<1x1x32xf32> to vector<1x32xf32>
    %c1_108 = arith.constant 1 : index
    %c0_109 = arith.constant 0 : index
    %c0_110 = arith.constant 0 : index
    %321 = vector.load %arg15[%c1_108, %c0_109, %c0_110] : memref<2x1x32xf32, #tpu.memory_space<vmem>>, vector<1x1x32xf32>
    %322 = vector.shape_cast %321 : vector<1x1x32xf32> to vector<1x32xf32>
    %cst_111 = arith.constant dense<0.000000e+00> : vector<16xf32>
    %323 = vector.multi_reduction <add>, %318, %cst_111 [1] : vector<16x32xf32> to vector<16xf32>
    %324 = vector.shape_cast %323 : vector<16xf32> to vector<16x1xf32>
    %cst_112 = arith.constant 3.200000e+01 : f32
    %325 = vector.broadcast %cst_112 : f32 to vector<16x1xf32>
    %326 = arith.divf %324, %325 : vector<16x1xf32>
    %327 = vector.broadcast %326 : vector<16x1xf32> to vector<16x32xf32>
    %328 = arith.subf %318, %327 : vector<16x32xf32>
    %329 = arith.mulf %328, %328 : vector<16x32xf32>
    %cst_113 = arith.constant dense<0.000000e+00> : vector<16xf32>
    %330 = vector.multi_reduction <add>, %329, %cst_113 [1] : vector<16x32xf32> to vector<16xf32>
    %331 = vector.shape_cast %330 : vector<16xf32> to vector<16x1xf32>
    %cst_114 = arith.constant 3.200000e+01 : f32
    %332 = vector.broadcast %cst_114 : f32 to vector<16x1xf32>
    %333 = arith.divf %331, %332 : vector<16x1xf32>
    %cst_115 = arith.constant 9.99999974E-6 : f32
    %334 = vector.broadcast %cst_115 : f32 to vector<16x1xf32>
    %335 = arith.addf %333, %334 : vector<16x1xf32>
    %336 = math.rsqrt %335 : vector<16x1xf32>
    %337 = vector.broadcast %336 : vector<16x1xf32> to vector<16x32xf32>
    %338 = arith.mulf %328, %337 : vector<16x32xf32>
    %339 = vector.broadcast %320 : vector<1x32xf32> to vector<16x32xf32>
    %340 = arith.mulf %338, %339 : vector<16x32xf32>
    %341 = vector.broadcast %322 : vector<1x32xf32> to vector<16x32xf32>
    %342 = arith.addf %340, %341 : vector<16x32xf32>
    %343 = arith.truncf %342 : vector<16x32xf32> to vector<16x32xbf16>
    %c1_116 = arith.constant 1 : index
    %c0_117 = arith.constant 0 : index
    %c0_118 = arith.constant 0 : index
    %344 = vector.load %arg10[%c1_116, %c0_117, %c0_118] : memref<2x32x64xbf16, #tpu.memory_space<vmem>>, vector<1x32x64xbf16>
    %345 = vector.shape_cast %344 : vector<1x32x64xbf16> to vector<32x64xbf16>
    %cst_119 = arith.constant dense<0.000000e+00> : vector<16x64xf32>
    %346 = tpu.matmul %343, %345, %cst_119 {dimension_numbers = #tpu.dot_dimension_numbers<[1], [0], [0], [1], [0, 0, 1, 1], [], []>} : vector<16x32xbf16>, vector<32x64xbf16>, vector<16x64xf32> -> vector<16x64xf32>
    %c1_120 = arith.constant 1 : index
    %c0_121 = arith.constant 0 : index
    %c0_122 = arith.constant 0 : index
    %347 = vector.load %arg11[%c1_120, %c0_121, %c0_122] : memref<2x1x64xf32, #tpu.memory_space<vmem>>, vector<1x1x64xf32>
    %348 = vector.shape_cast %347 : vector<1x1x64xf32> to vector<1x64xf32>
    %349 = vector.broadcast %348 : vector<1x64xf32> to vector<16x64xf32>
    %350 = arith.addf %346, %349 : vector<16x64xf32>
    %cst_123 = arith.constant 0.000000e+00 : f32
    %351 = vector.broadcast %cst_123 : f32 to vector<16x64xf32>
    %352 = arith.maximumf %350, %351 : vector<16x64xf32>
    %353 = arith.truncf %352 : vector<16x64xf32> to vector<16x64xbf16>
    %c1_124 = arith.constant 1 : index
    %c0_125 = arith.constant 0 : index
    %c0_126 = arith.constant 0 : index
    %354 = vector.load %arg12[%c1_124, %c0_125, %c0_126] : memref<2x64x32xbf16, #tpu.memory_space<vmem>>, vector<1x64x32xbf16>
    %355 = vector.shape_cast %354 : vector<1x64x32xbf16> to vector<64x32xbf16>
    %cst_127 = arith.constant dense<0.000000e+00> : vector<16x32xf32>
    %356 = tpu.matmul %353, %355, %cst_127 {dimension_numbers = #tpu.dot_dimension_numbers<[1], [0], [0], [1], [0, 0, 1, 1], [], []>} : vector<16x64xbf16>, vector<64x32xbf16>, vector<16x32xf32> -> vector<16x32xf32>
    %c1_128 = arith.constant 1 : index
    %c0_129 = arith.constant 0 : index
    %c0_130 = arith.constant 0 : index
    %357 = vector.load %arg13[%c1_128, %c0_129, %c0_130] : memref<2x1x32xf32, #tpu.memory_space<vmem>>, vector<1x1x32xf32>
    %358 = vector.shape_cast %357 : vector<1x1x32xf32> to vector<1x32xf32>
    %359 = vector.broadcast %358 : vector<1x32xf32> to vector<16x32xf32>
    %360 = arith.addf %356, %359 : vector<16x32xf32>
    %361 = arith.addf %342, %360 : vector<16x32xf32>
    %c1_131 = arith.constant 1 : index
    %c0_132 = arith.constant 0 : index
    %c0_133 = arith.constant 0 : index
    %362 = vector.load %arg16[%c1_131, %c0_132, %c0_133] : memref<2x1x32xf32, #tpu.memory_space<vmem>>, vector<1x1x32xf32>
    %363 = vector.shape_cast %362 : vector<1x1x32xf32> to vector<1x32xf32>
    %c1_134 = arith.constant 1 : index
    %c0_135 = arith.constant 0 : index
    %c0_136 = arith.constant 0 : index
    %364 = vector.load %arg17[%c1_134, %c0_135, %c0_136] : memref<2x1x32xf32, #tpu.memory_space<vmem>>, vector<1x1x32xf32>
    %365 = vector.shape_cast %364 : vector<1x1x32xf32> to vector<1x32xf32>
    %cst_137 = arith.constant dense<0.000000e+00> : vector<16xf32>
    %366 = vector.multi_reduction <add>, %361, %cst_137 [1] : vector<16x32xf32> to vector<16xf32>
    %367 = vector.shape_cast %366 : vector<16xf32> to vector<16x1xf32>
    %cst_138 = arith.constant 3.200000e+01 : f32
    %368 = vector.broadcast %cst_138 : f32 to vector<16x1xf32>
    %369 = arith.divf %367, %368 : vector<16x1xf32>
    %370 = vector.broadcast %369 : vector<16x1xf32> to vector<16x32xf32>
    %371 = arith.subf %361, %370 : vector<16x32xf32>
    %372 = arith.mulf %371, %371 : vector<16x32xf32>
    %cst_139 = arith.constant dense<0.000000e+00> : vector<16xf32>
    %373 = vector.multi_reduction <add>, %372, %cst_139 [1] : vector<16x32xf32> to vector<16xf32>
    %374 = vector.shape_cast %373 : vector<16xf32> to vector<16x1xf32>
    %cst_140 = arith.constant 3.200000e+01 : f32
    %375 = vector.broadcast %cst_140 : f32 to vector<16x1xf32>
    %376 = arith.divf %374, %375 : vector<16x1xf32>
    %cst_141 = arith.constant 9.99999974E-6 : f32
    %377 = vector.broadcast %cst_141 : f32 to vector<16x1xf32>
    %378 = arith.addf %376, %377 : vector<16x1xf32>
    %379 = math.rsqrt %378 : vector<16x1xf32>
    %380 = vector.broadcast %379 : vector<16x1xf32> to vector<16x32xf32>
    %381 = arith.mulf %371, %380 : vector<16x32xf32>
    %382 = vector.broadcast %363 : vector<1x32xf32> to vector<16x32xf32>
    %383 = arith.mulf %381, %382 : vector<16x32xf32>
    %384 = vector.broadcast %365 : vector<1x32xf32> to vector<16x32xf32>
    %385 = arith.addf %383, %384 : vector<16x32xf32>
    %c0_142 = arith.constant 0 : index
    %c0_143 = arith.constant 0 : index
    %386 = vector.load %arg18[%c0_142, %c0_143] : memref<1x32xf32, #tpu.memory_space<vmem>>, vector<1x32xf32>
    %c0_144 = arith.constant 0 : index
    %c0_145 = arith.constant 0 : index
    %387 = vector.load %arg19[%c0_144, %c0_145] : memref<1x32xf32, #tpu.memory_space<vmem>>, vector<1x32xf32>
    %cst_146 = arith.constant dense<0.000000e+00> : vector<16xf32>
    %388 = vector.multi_reduction <add>, %385, %cst_146 [1] : vector<16x32xf32> to vector<16xf32>
    %389 = vector.shape_cast %388 : vector<16xf32> to vector<16x1xf32>
    %cst_147 = arith.constant 3.200000e+01 : f32
    %390 = vector.broadcast %cst_147 : f32 to vector<16x1xf32>
    %391 = arith.divf %389, %390 : vector<16x1xf32>
    %392 = vector.broadcast %391 : vector<16x1xf32> to vector<16x32xf32>
    %393 = arith.subf %385, %392 : vector<16x32xf32>
    %394 = arith.mulf %393, %393 : vector<16x32xf32>
    %cst_148 = arith.constant dense<0.000000e+00> : vector<16xf32>
    %395 = vector.multi_reduction <add>, %394, %cst_148 [1] : vector<16x32xf32> to vector<16xf32>
    %396 = vector.shape_cast %395 : vector<16xf32> to vector<16x1xf32>
    %cst_149 = arith.constant 3.200000e+01 : f32
    %397 = vector.broadcast %cst_149 : f32 to vector<16x1xf32>
    %398 = arith.divf %396, %397 : vector<16x1xf32>
    %cst_150 = arith.constant 9.99999974E-6 : f32
    %399 = vector.broadcast %cst_150 : f32 to vector<16x1xf32>
    %400 = arith.addf %398, %399 : vector<16x1xf32>
    %401 = math.rsqrt %400 : vector<16x1xf32>
    %402 = vector.broadcast %401 : vector<16x1xf32> to vector<16x32xf32>
    %403 = arith.mulf %393, %402 : vector<16x32xf32>
    %404 = vector.broadcast %386 : vector<1x32xf32> to vector<16x32xf32>
    %405 = arith.mulf %403, %404 : vector<16x32xf32>
    %406 = vector.broadcast %387 : vector<1x32xf32> to vector<16x32xf32>
    %407 = arith.addf %405, %406 : vector<16x32xf32>
    %408 = tpu.transpose %407, [1, 0] : vector<16x32xf32> -> vector<32x16xf32>
    %409 = arith.truncf %408 : vector<32x16xf32> to vector<32x16xbf16>
    %c0_151 = arith.constant 0 : index
    %c0_152 = arith.constant 0 : index
    %410 = vector.load %arg20[%c0_151, %c0_152] : memref<3x32xbf16, #tpu.memory_space<vmem>>, vector<3x32xbf16>
    %cst_153 = arith.constant dense<0.000000e+00> : vector<3x16xf32>
    %411 = tpu.matmul %410, %409, %cst_153 {dimension_numbers = #tpu.dot_dimension_numbers<[1], [0], [0], [1], [0, 0, 1, 1], [], []>} : vector<3x32xbf16>, vector<32x16xbf16>, vector<3x16xf32> -> vector<3x16xf32>
    %c0_154 = arith.constant 0 : index
    %c0_155 = arith.constant 0 : index
    %412 = vector.load %arg21[%c0_154, %c0_155] : memref<3x1xf32, #tpu.memory_space<vmem>>, vector<3x1xf32>
    %413 = vector.broadcast %412 : vector<3x1xf32> to vector<3x16xf32>
    %414 = arith.addf %411, %413 : vector<3x16xf32>
    %c0_156 = arith.constant 0 : index
    %c0_157 = arith.constant 0 : index
    %415 = vector.load %arg22[%c0_156, %c0_157] : memref<3x16xf32, #tpu.memory_space<vmem>>, vector<3x16xf32>
    tpu.vector_store %arg22[%c0_156, %c0_157], %414 {strides = array<i32>} : memref<3x16xf32, #tpu.memory_space<vmem>>, vector<3x16xf32>,
    return
  }
  func.func @transform_0(%arg0: i32) -> (i32, i32, i32) {
    %c0_i32 = arith.constant 0 : i32
    %c0_i32_0 = arith.constant 0 : i32
    %c0_i32_1 = arith.constant 0 : i32
    return %arg0, %c0_i32, %c0_i32_0 : i32, i32, i32
  }
  func.func @transform_1(%arg0: i32) -> (i32, i32) {
    %c0_i32 = arith.constant 0 : i32
    %c0_i32_0 = arith.constant 0 : i32
    %c0_i32_1 = arith.constant 0 : i32
    return %c0_i32, %c0_i32_0 : i32, i32
  }
  func.func @transform_2(%arg0: i32) -> (i32, i32) {
    %c0_i32 = arith.constant 0 : i32
    %c0_i32_0 = arith.constant 0 : i32
    %c0_i32_1 = arith.constant 0 : i32
    return %c0_i32, %c0_i32_0 : i32, i32
  }
  func.func @transform_3(%arg0: i32) -> (i32, i32) {
    %c0_i32 = arith.constant 0 : i32
    %c0_i32_0 = arith.constant 0 : i32
    %c0_i32_1 = arith.constant 0 : i32
    return %c0_i32, %c0_i32_0 : i32, i32
  }
  func.func @transform_4(%arg0: i32) -> (i32, i32) {
    %c0_i32 = arith.constant 0 : i32
    %c0_i32_0 = arith.constant 0 : i32
    %c0_i32_1 = arith.constant 0 : i32
    return %c0_i32, %c0_i32_0 : i32, i32
  }
  func.func @transform_5(%arg0: i32) -> (i32, i32, i32) {
    %c0_i32 = arith.constant 0 : i32
    %c0_i32_0 = arith.constant 0 : i32
    %c0_i32_1 = arith.constant 0 : i32
    %c0_i32_2 = arith.constant 0 : i32
    return %c0_i32, %c0_i32_0, %c0_i32_1 : i32, i32, i32
  }
  func.func @transform_6(%arg0: i32) -> (i32, i32, i32) {
    %c0_i32 = arith.constant 0 : i32
    %c0_i32_0 = arith.constant 0 : i32
    %c0_i32_1 = arith.constant 0 : i32
    %c0_i32_2 = arith.constant 0 : i32
    return %c0_i32, %c0_i32_0, %c0_i32_1 : i32, i32, i32
  }
  func.func @transform_7(%arg0: i32) -> (i32, i32, i32) {
    %c0_i32 = arith.constant 0 : i32
    %c0_i32_0 = arith.constant 0 : i32
    %c0_i32_1 = arith.constant 0 : i32
    %c0_i32_2 = arith.constant 0 : i32
    return %c0_i32, %c0_i32_0, %c0_i32_1 : i32, i32, i32
  }
  func.func @transform_8(%arg0: i32) -> (i32, i32, i32) {
    %c0_i32 = arith.constant 0 : i32
    %c0_i32_0 = arith.constant 0 : i32
    %c0_i32_1 = arith.constant 0 : i32
    %c0_i32_2 = arith.constant 0 : i32
    return %c0_i32, %c0_i32_0, %c0_i32_1 : i32, i32, i32
  }
  func.func @transform_9(%arg0: i32) -> (i32, i32, i32) {
    %c0_i32 = arith.constant 0 : i32
    %c0_i32_0 = arith.constant 0 : i32
    %c0_i32_1 = arith.constant 0 : i32
    %c0_i32_2 = arith.constant 0 : i32
    return %c0_i32, %c0_i32_0, %c0_i32_1 : i32, i32, i32
  }
  func.func @transform_10(%arg0: i32) -> (i32, i32, i32) {
    %c0_i32 = arith.constant 0 : i32
    %c0_i32_0 = arith.constant 0 : i32
    %c0_i32_1 = arith.constant 0 : i32
    %c0_i32_2 = arith.constant 0 : i32
    return %c0_i32, %c0_i32_0, %c0_i32_1 : i32, i32, i32
  }
  func.func @transform_11(%arg0: i32) -> (i32, i32, i32) {
    %c0_i32 = arith.constant 0 : i32
    %c0_i32_0 = arith.constant 0 : i32
    %c0_i32_1 = arith.constant 0 : i32
    %c0_i32_2 = arith.constant 0 : i32
    return %c0_i32, %c0_i32_0, %c0_i32_1 : i32, i32, i32
  }
  func.func @transform_12(%arg0: i32) -> (i32, i32, i32) {
    %c0_i32 = arith.constant 0 : i32
    %c0_i32_0 = arith.constant 0 : i32
    %c0_i32_1 = arith.constant 0 : i32
    %c0_i32_2 = arith.constant 0 : i32
    return %c0_i32, %c0_i32_0, %c0_i32_1 : i32, i32, i32
  }
  func.func @transform_13(%arg0: i32) -> (i32, i32, i32) {
    %c0_i32 = arith.constant 0 : i32
    %c0_i32_0 = arith.constant 0 : i32
    %c0_i32_1 = arith.constant 0 : i32
    %c0_i32_2 = arith.constant 0 : i32
    return %c0_i32, %c0_i32_0, %c0_i32_1 : i32, i32, i32
  }
  func.func @transform_14(%arg0: i32) -> (i32, i32, i32) {
    %c0_i32 = arith.constant 0 : i32
    %c0_i32_0 = arith.constant 0 : i32
    %c0_i32_1 = arith.constant 0 : i32
    %c0_i32_2 = arith.constant 0 : i32
    return %c0_i32, %c0_i32_0, %c0_i32_1 : i32, i32, i32
  }
  func.func @transform_15(%arg0: i32) -> (i32, i32, i32) {
    %c0_i32 = arith.constant 0 : i32
    %c0_i32_0 = arith.constant 0 : i32
    %c0_i32_1 = arith.constant 0 : i32
    %c0_i32_2 = arith.constant 0 : i32
    return %c0_i32, %c0_i32_0, %c0_i32_1 : i32, i32, i32
  }
  func.func @transform_16(%arg0: i32) -> (i32, i32, i32) {
    %c0_i32 = arith.constant 0 : i32
    %c0_i32_0 = arith.constant 0 : i32
    %c0_i32_1 = arith.constant 0 : i32
    %c0_i32_2 = arith.constant 0 : i32
    return %c0_i32, %c0_i32_0, %c0_i32_1 : i32, i32, i32
  }
  func.func @transform_17(%arg0: i32) -> (i32, i32) {
    %c0_i32 = arith.constant 0 : i32
    %c0_i32_0 = arith.constant 0 : i32
    %c0_i32_1 = arith.constant 0 : i32
    return %c0_i32, %c0_i32_0 : i32, i32
  }
  func.func @transform_18(%arg0: i32) -> (i32, i32) {
    %c0_i32 = arith.constant 0 : i32
    %c0_i32_0 = arith.constant 0 : i32
    %c0_i32_1 = arith.constant 0 : i32
    return %c0_i32, %c0_i32_0 : i32, i32
  }
  func.func @transform_19(%arg0: i32) -> (i32, i32) {
    %c0_i32 = arith.constant 0 : i32
    %c0_i32_0 = arith.constant 0 : i32
    %c0_i32_1 = arith.constant 0 : i32
    return %c0_i32, %c0_i32_0 : i32, i32
  }
  func.func @transform_20(%arg0: i32) -> (i32, i32) {
    %c0_i32 = arith.constant 0 : i32
    %c0_i32_0 = arith.constant 0 : i32
    %c0_i32_1 = arith.constant 0 : i32
    return %c0_i32, %c0_i32_0 : i32, i32
  }
  func.func @transform_21(%arg0: i32) -> (i32, i32) {
    %c0_i32 = arith.constant 0 : i32
    %c0_i32_0 = arith.constant 0 : i32
    return %c0_i32, %arg0 : i32, i32
  }
}

</mosaic_0001>

<llo_original>
// kernel: tpu_custom_call.1
$region0: #{tpu_custom_call.1}
  #allocation0 [shape = 'u32[]', space=smem, size = 0x4, offset = 0x4, fixed_abs, tag = 'smem constant byte address 0x4 - core index']
  #allocation1 [shape = 'u32[144,128]{1,0:T(1,128)}', space=vmem, size = 0x12000, scoped, tag = 'internal scratch']
  %s0 = inlined_call_operand.vmem [shape: f32[2,8,3], index: 0, kind: input, shape index: {}]
  %s1 = inlined_call_operand.vmem [shape: f32[16,32], index: 1, kind: input, shape index: {}]
  %s2 = inlined_call_operand.vmem [shape: f32[8,8], index: 2, kind: input, shape index: {}]
  %s3 = inlined_call_operand.vmem [shape: f32[3,32], index: 3, kind: input, shape index: {}]
  %s4 = inlined_call_operand.hbm [shape: f32[1,32], index: 4, kind: input, shape index: {}]
  %s5 = inlined_call_operand.vmem [shape: bf16[2,32,96], index: 5, kind: input, shape index: {}]
  %s6 = inlined_call_operand.vmem [shape: f32[2,1,96], index: 6, kind: input, shape index: {}]
  %s7 = inlined_call_operand.vmem [shape: bf16[2,32,32], index: 7, kind: input, shape index: {}]
  %s8 = inlined_call_operand.vmem [shape: f32[2,1,32], index: 8, kind: input, shape index: {}]
  %s9 = inlined_call_operand.vmem [shape: bf16[2,32,64], index: 9, kind: input, shape index: {}]
  %s10 = inlined_call_operand.hbm [shape: f32[2,1,64], index: 10, kind: input, shape index: {}]
  %s11 = inlined_call_operand.vmem [shape: bf16[2,64,32], index: 11, kind: input, shape index: {}]
  %s12 = inlined_call_operand.vmem [shape: f32[2,1,32], index: 12, kind: input, shape index: {}]
  %s13 = inlined_call_operand.vmem [shape: f32[2,1,32], index: 13, kind: input, shape index: {}]
  %s14 = inlined_call_operand.vmem [shape: f32[2,1,32], index: 14, kind: input, shape index: {}]
  %s15 = inlined_call_operand.vmem [shape: f32[2,1,32], index: 15, kind: input, shape index: {}]
  %s16 = inlined_call_operand.vmem [shape: f32[2,1,32], index: 16, kind: input, shape index: {}]
  %s17 = inlined_call_operand.vmem [shape: f32[1,32], index: 17, kind: input, shape index: {}]
  %s18 = inlined_call_operand.vmem [shape: f32[1,32], index: 18, kind: input, shape index: {}]
  %s19 = inlined_call_operand.vmem [shape: bf16[3,32], index: 19, kind: input, shape index: {}]
  %s20 = inlined_call_operand.vmem [shape: f32[3,1], index: 20, kind: input, shape index: {}]
  %s21 = inlined_call_operand.hbm [shape: f32[3,16], index: 21, kind: output, shape index: {}]
  %s22 = sld [smem:[#allocation0]]
  $region102: #{tpu_custom_call.1} parent=0
    _
  %s24 = ssub.s32 1, %s22
  %s25 = scalar_select 0, %s24, %s22
  $region1: #{tpu_custom_call.1} parent=0
    #allocation2 [shape = 'u8[512]{0}', space=vmem, size = 0x400, scoped, tag = 'input window, operand 4, single buffered']
    #allocation3 [shape = 's32[1]{0}', space=sflag, size = 0x4, scoped, tag = 'scoped memory for tpu_custom_call.1']
    #allocation4 [shape = 's32[1]{0}', space=sflag, size = 0x4, scoped, tag = 'scoped memory for tpu_custom_call.1']
    #allocation5 [shape = 'u8[1024]{0}', space=vmem, size = 0x400, scoped, tag = 'input window, operand 10, single buffered']
    #allocation6 [shape = 's32[1]{0}', space=sflag, size = 0x4, scoped, tag = 'scoped memory for tpu_custom_call.1']
    #allocation7 [shape = 'u8[2048]{0}', space=vmem, size = 0x800, scoped, tag = 'output window, operand 0, single buffered']
    %26 = vsyncpa [#allocation3], 0
    %27 = vsyncpa [#allocation6], 0
    %28 = vsyncpa [#allocation4], 0
    // Predicated region
    $region2: #{tpu_custom_call.1} parent=1 // pred_check
      _
    $region3: #{tpu_custom_call.1} parent=1 // pred_check_branch
      %30 = sbr.rel (0) target = $region5
    $region4: #{tpu_custom_call.1} parent=1 // pred_region
      _
    $region5: #{tpu_custom_call.1} parent=1 // pred_fallthru
      _
    // Predicated region
    $region6: #{tpu_custom_call.1} parent=1 // pred_check
      _
    $region7: #{tpu_custom_call.1} parent=1 // pred_check_branch
      %32 = sbr.rel (0) target = $region9
    $region8: #{tpu_custom_call.1} parent=1 // pred_region
      _
    $region9: #{tpu_custom_call.1} parent=1 // pred_fallthru
      _
    // Predicated region
    $region10: #{tpu_custom_call.1} parent=1 // pred_check
      _
    $region11: #{tpu_custom_call.1} parent=1 // pred_check_branch
      %34 = sbr.rel (0) target = $region13
    $region12: #{tpu_custom_call.1} parent=1 // pred_region
      _
    $region13: #{tpu_custom_call.1} parent=1 // pred_fallthru
      _
    // Predicated region
    $region14: #{tpu_custom_call.1} parent=1 // pred_check
      _
    $region15: #{tpu_custom_call.1} parent=1 // pred_check_branch
      %36 = sbr.rel (0) target = $region17
    $region16: #{tpu_custom_call.1} parent=1 // pred_region
      _
    $region17: #{tpu_custom_call.1} parent=1 // pred_fallthru
      _
    // Predicated region
    $region18: #{tpu_custom_call.1} parent=1 // pred_check
      _
    $region19: #{tpu_custom_call.1} parent=1 // pred_check_branch
      %38 = sbr.rel (0) target = $region21
    $region20: #{tpu_custom_call.1} parent=1 // pred_region
      %s40 = ssub.s32 16, 16
      %41 = vsyncadd [#allocation3], %s40
      %s43 = sshll.u32 [#allocation2], 4
      %s44 = int_to_ptr.vmem [resolvable:$true] %s43
      %46 = dma.hbm_to_vmem [thread:$0]  %s4, 16, %s44, [#allocation3]
    $region21: #{tpu_custom_call.1} parent=1 // pred_fallthru
      _
    // Predicated region
    $region22: #{tpu_custom_call.1} parent=1 // pred_check
      _
    $region23: #{tpu_custom_call.1} parent=1 // pred_check_branch
      %48 = sbr.rel (0) target = $region25
    $region24: #{tpu_custom_call.1} parent=1 // pred_region
      _
    $region25: #{tpu_custom_call.1} parent=1 // pred_fallthru
      _
    // Predicated region
    $region26: #{tpu_custom_call.1} parent=1 // pred_check
      _
    $region27: #{tpu_custom_call.1} parent=1 // pred_check_branch
      %50 = sbr.rel (0) target = $region29
    $region28: #{tpu_custom_call.1} parent=1 // pred_region
      _
    $region29: #{tpu_custom_call.1} parent=1 // pred_fallthru
      _
    // Predicated region
    $region30: #{tpu_custom_call.1} parent=1 // pred_check
      _
    $region31: #{tpu_custom_call.1} parent=1 // pred_check_branch
      %52 = sbr.rel (0) target = $region33
    $region32: #{tpu_custom_call.1} parent=1 // pred_region
      _
    $region33: #{tpu_custom_call.1} parent=1 // pred_fallthru
      _
    // Predicated region
    $region34: #{tpu_custom_call.1} parent=1 // pred_check
      _
    $region35: #{tpu_custom_call.1} parent=1 // pred_check_branch
      %54 = sbr.rel (0) target = $region37
    $region36: #{tpu_custom_call.1} parent=1 // pred_region
      _
    $region37: #{tpu_custom_call.1} parent=1 // pred_fallthru
      _
    // Predicated region
    $region38: #{tpu_custom_call.1} parent=1 // pred_check
      _
    $region39: #{tpu_custom_call.1} parent=1 // pred_check_branch
      %56 = sbr.rel (0) target = $region41
    $region40: #{tpu_custom_call.1} parent=1 // pred_region
      _
    $region41: #{tpu_custom_call.1} parent=1 // pred_fallthru
      _
    // Predicated region
    $region42: #{tpu_custom_call.1} parent=1 // pred_check
      _
    $region43: #{tpu_custom_call.1} parent=1 // pred_check_branch
      %58 = sbr.rel (0) target = $region45
    $region44: #{tpu_custom_call.1} parent=1 // pred_region
      %s60 = ssub.s32 32, 32
      %61 = vsyncadd [#allocation6], %s60
      %s62 = sshll.u32 [#allocation5], 4
      %s63 = int_to_ptr.vmem [resolvable:$true] %s62
      %68 = dma.hbm_to_vmem [thread:$0]  %s10, 32, %s63, [#allocation6], 16, 16, 1
    $region45: #{tpu_custom_call.1} parent=1 // pred_fallthru
      _
    // Predicated region
    $region46: #{tpu_custom_call.1} parent=1 // pred_check
      _
    $region47: #{tpu_custom_call.1} parent=1 // pred_check_branch
      %70 = sbr.rel (0) target = $region49
    $region48: #{tpu_custom_call.1} parent=1 // pred_region
      _
    $region49: #{tpu_custom_call.1} parent=1 // pred_fallthru
      _
    // Predicated region
    $region50: #{tpu_custom_call.1} parent=1 // pred_check
      _
    $region51: #{tpu_custom_call.1} parent=1 // pred_check_branch
      %72 = sbr.rel (0) target = $region53
    $region52: #{tpu_custom_call.1} parent=1 // pred_region
      _
    $region53: #{tpu_custom_call.1} parent=1 // pred_fallthru
      _
    // Predicated region
    $region54: #{tpu_custom_call.1} parent=1 // pred_check
      _
    $region55: #{tpu_custom_call.1} parent=1 // pred_check_branch
      %74 = sbr.rel (0) target = $region57
    $region56: #{tpu_custom_call.1} parent=1 // pred_region
      _
    $region57: #{tpu_custom_call.1} parent=1 // pred_fallthru
      _
    // Predicated region
    $region58: #{tpu_custom_call.1} parent=1 // pred_check
      _
    $region59: #{tpu_custom_call.1} parent=1 // pred_check_branch
      %76 = sbr.rel (0) target = $region61
    $region60: #{tpu_custom_call.1} parent=1 // pred_region
      _
    $region61: #{tpu_custom_call.1} parent=1 // pred_fallthru
      _
    // Predicated region
    $region62: #{tpu_custom_call.1} parent=1 // pred_check
      _
    $region63: #{tpu_custom_call.1} parent=1 // pred_check_branch
      %78 = sbr.rel (0) target = $region65
    $region64: #{tpu_custom_call.1} parent=1 // pred_region
      _
    $region65: #{tpu_custom_call.1} parent=1 // pred_fallthru
      _
    // Predicated region
    $region66: #{tpu_custom_call.1} parent=1 // pred_check
      _
    $region67: #{tpu_custom_call.1} parent=1 // pred_check_branch
      %80 = sbr.rel (0) target = $region69
    $region68: #{tpu_custom_call.1} parent=1 // pred_region
      _
    $region69: #{tpu_custom_call.1} parent=1 // pred_fallthru
      _
    // Predicated region
    $region70: #{tpu_custom_call.1} parent=1 // pred_check
      _
    $region71: #{tpu_custom_call.1} parent=1 // pred_check_branch
      %82 = sbr.rel (0) target = $region73
    $region72: #{tpu_custom_call.1} parent=1 // pred_region
      _
    $region73: #{tpu_custom_call.1} parent=1 // pred_fallthru
      _
    // Predicated region
    $region74: #{tpu_custom_call.1} parent=1 // pred_check
      _
    $region75: #{tpu_custom_call.1} parent=1 // pred_check_branch
      %84 = sbr.rel (0) target = $region77
    $region76: #{tpu_custom_call.1} parent=1 // pred_region
      _
    $region77: #{tpu_custom_call.1} parent=1 // pred_fallthru
      _
    // Predicated region
    $region78: #{tpu_custom_call.1} parent=1 // pred_check
      _
    $region79: #{tpu_custom_call.1} parent=1 // pred_check_branch
      %86 = sbr.rel (0) target = $region81
    $region80: #{tpu_custom_call.1} parent=1 // pred_region
      _
    $region81: #{tpu_custom_call.1} parent=1 // pred_fallthru
      _
    // Predicated region
    $region82: #{tpu_custom_call.1} parent=1 // pred_check
      _
    $region83: #{tpu_custom_call.1} parent=1 // pred_check_branch
      %88 = sbr.rel (0) target = $region85
    $region84: #{tpu_custom_call.1} parent=1 // pred_region
      _
    $region85: #{tpu_custom_call.1} parent=1 // pred_fallthru
      _
    // Predicated region
    $region86: #{tpu_custom_call.1} parent=1 // pred_check
      _
    $region87: #{tpu_custom_call.1} parent=1 // pred_check_branch
      %90 = sbr.rel (0) target = $region89
    $region88: #{tpu_custom_call.1} parent=1 // pred_region
      %91 = dma.done [#allocation3], 16
    $region89: #{tpu_custom_call.1} parent=1 // pred_fallthru
      _
    // Predicated region
    $region90: #{tpu_custom_call.1} parent=1 // pred_check
      _
    $region91: #{tpu_custom_call.1} parent=1 // pred_check_branch
      %93 = sbr.rel (0) target = $region93
    $region92: #{tpu_custom_call.1} parent=1 // pred_region
      %94 = dma.done [#allocation6], 32
    $region93: #{tpu_custom_call.1} parent=1 // pred_fallthru
      _
    %v96 = vld [vmem:[%s0] sm:$0xff]
    %v97 = vld [vmem:[%s0 + $0x8] sm:$0xff]
    %v98 = vld [vmem:[%s2] sm:$0xff]
    %v99 = vld [vmem:[%s3] sm:$0x7]
    %101 = vset.pattern.permute.xlu0 0
    %102 = vperm.xlu0 %101, %v96
    %v103 = vpop.permute.xlu0 %102
    %106 = vset.pattern.permute.xlu0 0
    %107 = vperm.xlu0 %106, %v97
    %v108 = vpop.permute.xlu0 %107
    %v110 = vlaneseq
    %v111 = vshrl.u32 %v110, 7
    %v112 = vsub.s32 0, %v111
    %v113 = vrot.slane %v99, %v112
    %v114 = vmul.f32 %v103, %v113
    %v115 = vmul.f32 %v108, %v113
    %116 = vset.pattern.permute.xlu0 1
    %117 = vperm.xlu0 %116, %v96
    %v118 = vpop.permute.xlu0 %117
    %120 = vset.pattern.permute.xlu0 1
    %121 = vperm.xlu0 %120, %v97
    %v122 = vpop.permute.xlu0 %121
    %v124 = vlaneseq
    %v125 = vshrl.u32 %v124, 7
    %v126 = vsub.s32 1, %v125
    %v127 = vrot.slane %v99, %v126
    %v128 = vmul.f32 %v118, %v127
    %v129 = vmul.f32 %v122, %v127
    %v130 = vadd.f32 %v114, %v128
    %v131 = vadd.f32 %v115, %v129
    %132 = vset.pattern.permute.xlu0 2
    %133 = vperm.xlu0 %132, %v96
    %v134 = vpop.permute.xlu0 %133
    %136 = vset.pattern.permute.xlu0 2
    %137 = vperm.xlu0 %136, %v97
    %v138 = vpop.permute.xlu0 %137
    %v140 = vlaneseq
    %v141 = vshrl.u32 %v140, 7
    %v142 = vsub.s32 2, %v141
    %v143 = vrot.slane %v99, %v142
    %v144 = vmul.f32 %v134, %v143
    %v145 = vmul.f32 %v138, %v143
    %v146 = vadd.f32 %v130, %v144
    %v147 = vadd.f32 %v131, %v145
    %v148 = vld [vmem:[#allocation2] sm:$0x1]
    %v150 = vlaneseq
    %v151 = vshrl.u32 %v150, 7
    %v152 = vsub.s32 0, %v151
    %v153 = vrot.slane %v148, %v152
    %v155 = vadd.f32 %v146, %v153
    %v156 = vadd.f32 %v147, %v153
    %v157 = vld [vmem:[%s1] sm:$0xff]
    %v158 = vld [vmem:[%s1 + $0x8] sm:$0xff]
    %v159 = vadd.f32 %v155, %v157
    %v160 = vadd.f32 %v156, %v158
    %v161 = vpack.c.bf16 %v160, %v159
    %v162 = vld [vmem:[%s5] sm:$0xf]
    %v163 = vld [vmem:[%s5 + $0x4] sm:$0xf]
    %v164 = vld [vmem:[%s5 + $0x8] sm:$0xf]
    %v165 = vld [vmem:[%s5 + $0xc] sm:$0xf]
    %v166 = vld [vmem:[%s6] sm:$0x1]
    %v168 = vlaneseq
    %v169 = vshrl.u32 %v168, 7
    %v170 = vsub.s32 0, %v169
    %v171 = vrot.slane %v166, %v170
    %v177 = vunpack.c.l.b16 %v162
    %v178 = vunpack.c.l.b16 %v163
    %v179 = vunpack.c.l.b16 %v164
    %v180 = vunpack.c.l.b16 %v165
    %v181 = vpack.c.b16 %v178, %v177
    %v182 = vpack.c.b16 %v180, %v179
    %vm185 = vcmask 261120
    %v187 = vsel %vm185, %v161, 0
    %189 = vmatprep.subr.bf16.mxu0 0
    %190 = vmatpush1.bf16.msra.mxu0 %v181
    %191 = vmatprep.subr.bf16.mxu0 0
    %192 = vmatpush1.bf16.msra.mxu0 %v182
    %193 = vmatprep.subr.bf16.mxu0 0
    %194 = vmatpush1.bf16.msra.mxu0 0
    %195 = vmatprep.subr.bf16.mxu0 0
    %196 = vmatpush1.bf16.msra.mxu0 0
    %197 = vmatprep.subr.bf16.mxu0 0
    %198 = vmatpush1.bf16.msra.mxu0 0
    %199 = vmatprep.subr.bf16.mxu0 0
    %200 = vmatpush1.bf16.msra.mxu0 0
    %201 = vmatprep.subr.bf16.mxu0 0
    %202 = vmatpush1.bf16.msra.mxu0 0
    %203 = vmatprep.subr.bf16.mxu0 0
    %204 = vmatpush1.bf16.msra.mxu0 0
    %205 = vmatprep.subr.bf16.mxu0 0
    %206 = vmatpush1.bf16.msra.mxu0 0
    %207 = vmatprep.subr.bf16.mxu0 0
    %208 = vmatpush1.bf16.msra.mxu0 0
    %209 = vmatprep.subr.bf16.mxu0 0
    %210 = vmatpush1.bf16.msra.mxu0 0
    %211 = vmatprep.subr.bf16.mxu0 0
    %212 = vmatpush1.bf16.msra.mxu0 0
    %213 = vmatprep.subr.bf16.mxu0 0
    %214 = vmatpush1.bf16.msra.mxu0 0
    %215 = vmatprep.subr.bf16.mxu0 0
    %216 = vmatpush1.bf16.msra.mxu0 0
    %217 = vmatprep.subr.bf16.mxu0 0
    %218 = vmatpush1.bf16.msra.mxu0 0
    %219 = vmatprep.subr.bf16.mxu0 0
    %220 = vmatpush1.bf16.msra.mxu0 0
    %221 = vmatprep.mubr.bf16.mxu0 0
    %222 = vmatmul.mubr.bf16.gmra.mrb[0].mxu0 %v187
    %v223 = vpop.f32.mrb[0].mxu0
    %v224 = vadd.f32 %v171, %v223
    %v225 = vpop.f32.mrb[0].mxu0
    %v226 = vpop.f32.mrb[0].mxu0
    %v227 = vadd.f32 %v171, %v226
    %v228 = vpop.f32.mrb[0].mxu0
    %229 = vdwg.mxu0
    %v230 = vpack.c.bf16 %v224, %v224
    %v231 = vpack.c.bf16 %v227, %v227
    %233 = vrot.lane.b32.xlu0 %v230, 96
    %v234 = vpop.permute.xlu0 %233
    %vm235 = vcmask 64512
    %v237 = vsel %vm235, %v230, 0
    %v240 = vsel %vm235, %v234, 0
    %242 = vmatprep.subr.bf16.mxu0 0
    %243 = vmatpush1.bf16.xpose.msra.mxu0 %v240
    %244 = vmatprep.subr.bf16.mxu0 0
    %245 = vmatpush1.bf16.xpose.msra.mxu0 0
    %246 = vmatprep.subr.bf16.mxu0 0
    %247 = vmatpush1.bf16.xpose.msra.mxu0 0
    %248 = vmatprep.subr.bf16.mxu0 0
    %249 = vmatpush1.bf16.xpose.msra.mxu0 0
    %250 = vmatprep.subr.bf16.mxu0 0
    %251 = vmatpush1.bf16.xpose.msra.mxu0 0
    %252 = vmatprep.subr.bf16.mxu0 0
    %253 = vmatpush1.bf16.xpose.msra.mxu0 0
    %254 = vmatprep.subr.bf16.mxu0 0
    %255 = vmatpush1.bf16.xpose.msra.mxu0 0
    %256 = vmatprep.subr.bf16.mxu0 0
    %257 = vmatpush1.bf16.xpose.msra.mxu0 0
    %258 = vmatprep.subr.bf16.mxu0 0
    %259 = vmatpush1.bf16.xpose.msra.mxu0 0
    %260 = vmatprep.subr.bf16.mxu0 0
    %261 = vmatpush1.bf16.xpose.msra.mxu0 0
    %262 = vmatprep.subr.bf16.mxu0 0
    %263 = vmatpush1.bf16.xpose.msra.mxu0 0
    %264 = vmatprep.subr.bf16.mxu0 0
    %265 = vmatpush1.bf16.xpose.msra.mxu0 0
    %266 = vmatprep.subr.bf16.mxu0 0
    %267 = vmatpush1.bf16.xpose.msra.mxu0 0
    %268 = vmatprep.subr.bf16.mxu0 0
    %269 = vmatpush1.bf16.xpose.msra.mxu0 0
    %270 = vmatprep.subr.bf16.mxu0 0
    %271 = vmatpush1.bf16.xpose.msra.mxu0 0
    %272 = vmatprep.subr.bf16.mxu0 0
    %273 = vmatpush1.bf16.xpose.msra.mxu0 0
    %274 = vmatprep.mubr.bf16.mxu0 0
    %275 = vmatmul.mubr.bf16.gmra.mrb[0].mxu0 %v237
    %v276 = vpop.f32.mrb[0].mxu0
    %v277 = vadd.f32 %v98, %v276
    %v278 = vpop.f32.mrb[0].mxu0
    %v279 = vpop.f32.mrb[0].mxu0
    %v280 = vpop.f32.mrb[0].mxu0
    %281 = vdwg.mxu0
    %283 = vrot.lane.b32.xlu0 %v231, 96
    %v284 = vpop.permute.xlu0 %283
    %v286 = vsel %vm235, %v231, 0
    %v289 = vsel %vm235, %v284, 0
    %291 = vmatprep.subr.bf16.mxu0 0
    %292 = vmatpush1.bf16.xpose.msra.mxu0 %v289
    %293 = vmatprep.subr.bf16.mxu0 0
    %294 = vmatpush1.bf16.xpose.msra.mxu0 0
    %295 = vmatprep.subr.bf16.mxu0 0
    %296 = vmatpush1.bf16.xpose.msra.mxu0 0
    %297 = vmatprep.subr.bf16.mxu0 0
    %298 = vmatpush1.bf16.xpose.msra.mxu0 0
    %299 = vmatprep.subr.bf16.mxu0 0
    %300 = vmatpush1.bf16.xpose.msra.mxu0 0
    %301 = vmatprep.subr.bf16.mxu0 0
    %302 = vmatpush1.bf16.xpose.msra.mxu0 0
    %303 = vmatprep.subr.bf16.mxu0 0
    %304 = vmatpush1.bf16.xpose.msra.mxu0 0
    %305 = vmatprep.subr.bf16.mxu0 0
    %306 = vmatpush1.bf16.xpose.msra.mxu0 0
    %307 = vmatprep.subr.bf16.mxu0 0
    %308 = vmatpush1.bf16.xpose.msra.mxu0 0
    %309 = vmatprep.subr.bf16.mxu0 0
    %310 = vmatpush1.bf16.xpose.msra.mxu0 0
    %311 = vmatprep.subr.bf16.mxu0 0
    %312 = vmatpush1.bf16.xpose.msra.mxu0 0
    %313 = vmatprep.subr.bf16.mxu0 0
    %314 = vmatpush1.bf16.xpose.msra.mxu0 0
    %315 = vmatprep.subr.bf16.mxu0 0
    %316 = vmatpush1.bf16.xpose.msra.mxu0 0
    %317 = vmatprep.subr.bf16.mxu0 0
    %318 = vmatpush1.bf16.xpose.msra.mxu0 0
    %319 = vmatprep.subr.bf16.mxu0 0
    %320 = vmatpush1.bf16.xpose.msra.mxu0 0
    %321 = vmatprep.subr.bf16.mxu0 0
    %322 = vmatpush1.bf16.xpose.msra.mxu0 0
    %323 = vmatprep.mubr.bf16.mxu0 0
    %324 = vmatmul.mubr.bf16.gmra.mrb[0].mxu0 %v286
    %v325 = vpop.f32.mrb[0].mxu0
    %v326 = vadd.f32 %v98, %v325
    %v327 = vpop.f32.mrb[0].mxu0
    %v328 = vpop.f32.mrb[0].mxu0
    %v329 = vpop.f32.mrb[0].mxu0
    %330 = vdwg.mxu0
    %v331 = vsel %vm235, %v277, -inf
    %332 = vmax.xlane.f32.xlu0 %v331
    %v333 = vpop.xlane.xlu0 %332
    %v334 = vsel %vm235, %v326, -inf
    %335 = vmax.xlane.f32.xlu0 %v334
    %v336 = vpop.xlane.xlu0 %335
    %v337 = vsub.f32 %v277, %v333
    %v338 = vsub.f32 %v326, %v336
    %v339 = vmul.f32 %v337, 1.442695
    %v340 = vpow.pop %v339
    %v341 = vmul.f32 %v338, 1.442695
    %v342 = vpow.pop %v341
    %v343 = vsel %vm235, %v340, 0.0
    %344 = vadd.xlane.f32.xlu0 %v343
    %v345 = vpop.xlane.xlu0 %344
    %v346 = vsel %vm235, %v342, 0.0
    %347 = vadd.xlane.f32.xlu0 %v346
    %v348 = vpop.xlane.xlu0 %347
    %v349 = vrcp.pop %v345
    %v350 = vrcp.pop %v348
    %v351 = vmul.f32 %v340, %v349
    %v352 = vmul.f32 %v342, %v350
    %v353 = vpack.c.bf16 %v351, %v351
    %v354 = vpack.c.bf16 %v352, %v352
    %355 = vrot.lane.b32.xlu0 %v230, 64
    %v356 = vpop.permute.xlu0 %355
    %v358 = vsel %vm235, %v353, 0
    %vm360 = vcmask 1043456
    %v362 = vsel %vm360, %v356, 0
    %364 = vmatprep.subr.bf16.mxu0 0
    %365 = vmatpush1.bf16.msra.mxu0 %v362
    %366 = vmatprep.subr.bf16.mxu0 0
    %367 = vmatpush1.bf16.msra.mxu0 0
    %368 = vmatprep.subr.bf16.mxu0 0
    %369 = vmatpush1.bf16.msra.mxu0 0
    %370 = vmatprep.subr.bf16.mxu0 0
    %371 = vmatpush1.bf16.msra.mxu0 0
    %372 = vmatprep.subr.bf16.mxu0 0
    %373 = vmatpush1.bf16.msra.mxu0 0
    %374 = vmatprep.subr.bf16.mxu0 0
    %375 = vmatpush1.bf16.msra.mxu0 0
    %376 = vmatprep.subr.bf16.mxu0 0
    %377 = vmatpush1.bf16.msra.mxu0 0
    %378 = vmatprep.subr.bf16.mxu0 0
    %379 = vmatpush1.bf16.msra.mxu0 0
    %380 = vmatprep.subr.bf16.mxu0 0
    %381 = vmatpush1.bf16.msra.mxu0 0
    %382 = vmatprep.subr.bf16.mxu0 0
    %383 = vmatpush1.bf16.msra.mxu0 0
    %384 = vmatprep.subr.bf16.mxu0 0
    %385 = vmatpush1.bf16.msra.mxu0 0
    %386 = vmatprep.subr.bf16.mxu0 0
    %387 = vmatpush1.bf16.msra.mxu0 0
    %388 = vmatprep.subr.bf16.mxu0 0
    %389 = vmatpush1.bf16.msra.mxu0 0
    %390 = vmatprep.subr.bf16.mxu0 0
    %391 = vmatpush1.bf16.msra.mxu0 0
    %392 = vmatprep.subr.bf16.mxu0 0
    %393 = vmatpush1.bf16.msra.mxu0 0
    %394 = vmatprep.subr.bf16.mxu0 0
    %395 = vmatpush1.bf16.msra.mxu0 0
    %396 = vmatprep.mubr.bf16.mxu0 0
    %397 = vmatmul.mubr.bf16.gmra.mrb[0].mxu0 %v358
    %v398 = vpop.f32.mrb[0].mxu0
    %v399 = vadd.f32 0.0, %v398
    %v400 = vpop.f32.mrb[0].mxu0
    %v401 = vpop.f32.mrb[0].mxu0
    %v402 = vpop.f32.mrb[0].mxu0
    %403 = vdwg.mxu0
    %404 = vrot.lane.b32.xlu0 %v231, 64
    %v405 = vpop.permute.xlu0 %404
    %v407 = vsel %vm235, %v354, 0
    %v410 = vsel %vm360, %v405, 0
    %412 = vmatprep.subr.bf16.mxu0 0
    %413 = vmatpush1.bf16.msra.mxu0 %v410
    %414 = vmatprep.subr.bf16.mxu0 0
    %415 = vmatpush1.bf16.msra.mxu0 0
    %416 = vmatprep.subr.bf16.mxu0 0
    %417 = vmatpush1.bf16.msra.mxu0 0
    %418 = vmatprep.subr.bf16.mxu0 0
    %419 = vmatpush1.bf16.msra.mxu0 0
    %420 = vmatprep.subr.bf16.mxu0 0
    %421 = vmatpush1.bf16.msra.mxu0 0
    %422 = vmatprep.subr.bf16.mxu0 0
    %423 = vmatpush1.bf16.msra.mxu0 0
    %424 = vmatprep.subr.bf16.mxu0 0
    %425 = vmatpush1.bf16.msra.mxu0 0
    %426 = vmatprep.subr.bf16.mxu0 0
    %427 = vmatpush1.bf16.msra.mxu0 0
    %428 = vmatprep.subr.bf16.mxu0 0
    %429 = vmatpush1.bf16.msra.mxu0 0
    %430 = vmatprep.subr.bf16.mxu0 0
    %431 = vmatpush1.bf16.msra.mxu0 0
    %432 = vmatprep.subr.bf16.mxu0 0
    %433 = vmatpush1.bf16.msra.mxu0 0
    %434 = vmatprep.subr.bf16.mxu0 0
    %435 = vmatpush1.bf16.msra.mxu0 0
    %436 = vmatprep.subr.bf16.mxu0 0
    %437 = vmatpush1.bf16.msra.mxu0 0
    %438 = vmatprep.subr.bf16.mxu0 0
    %439 = vmatpush1.bf16.msra.mxu0 0
    %440 = vmatprep.subr.bf16.mxu0 0
    %441 = vmatpush1.bf16.msra.mxu0 0
    %442 = vmatprep.subr.bf16.mxu0 0
    %443 = vmatpush1.bf16.msra.mxu0 0
    %444 = vmatprep.mubr.bf16.mxu0 0
    %445 = vmatmul.mubr.bf16.gmra.mrb[0].mxu0 %v407
    %v446 = vpop.f32.mrb[0].mxu0
    %v447 = vadd.f32 0.0, %v446
    %v448 = vpop.f32.mrb[0].mxu0
    %v449 = vpop.f32.mrb[0].mxu0
    %v450 = vpop.f32.mrb[0].mxu0
    %451 = vdwg.mxu0
    %452 = vrot.lane.b32.xlu0 %v230, 120
    %v453 = vpop.permute.xlu0 %452
    %454 = vrot.lane.b32.xlu0 %v230, 88
    %v455 = vpop.permute.xlu0 %454
    %v457 = vsel %vm235, %v453, 0
    %v460 = vsel %vm235, %v455, 0
    %462 = vmatprep.subr.bf16.mxu0 0
    %463 = vmatpush1.bf16.xpose.msra.mxu0 %v460
    %464 = vmatprep.subr.bf16.mxu0 0
    %465 = vmatpush1.bf16.xpose.msra.mxu0 0
    %466 = vmatprep.subr.bf16.mxu0 0
    %467 = vmatpush1.bf16.xpose.msra.mxu0 0
    %468 = vmatprep.subr.bf16.mxu0 0
    %469 = vmatpush1.bf16.xpose.msra.mxu0 0
    %470 = vmatprep.subr.bf16.mxu0 0
    %471 = vmatpush1.bf16.xpose.msra.mxu0 0
    %472 = vmatprep.subr.bf16.mxu0 0
    %473 = vmatpush1.bf16.xpose.msra.mxu0 0
    %474 = vmatprep.subr.bf16.mxu0 0
    %475 = vmatpush1.bf16.xpose.msra.mxu0 0
    %476 = vmatprep.subr.bf16.mxu0 0
    %477 = vmatpush1.bf16.xpose.msra.mxu0 0
    %478 = vmatprep.subr.bf16.mxu0 0
    %479 = vmatpush1.bf16.xpose.msra.mxu0 0
    %480 = vmatprep.subr.bf16.mxu0 0
    %481 = vmatpush1.bf16.xpose.msra.mxu0 0
    %482 = vmatprep.subr.bf16.mxu0 0
    %483 = vmatpush1.bf16.xpose.msra.mxu0 0
    %484 = vmatprep.subr.bf16.mxu0 0
    %485 = vmatpush1.bf16.xpose.msra.mxu0 0
    %486 = vmatprep.subr.bf16.mxu0 0
    %487 = vmatpush1.bf16.xpose.msra.mxu0 0
    %488 = vmatprep.subr.bf16.mxu0 0
    %489 = vmatpush1.bf16.xpose.msra.mxu0 0
    %490 = vmatprep.subr.bf16.mxu0 0
    %491 = vmatpush1.bf16.xpose.msra.mxu0 0
    %492 = vmatprep.subr.bf16.mxu0 0
    %493 = vmatpush1.bf16.xpose.msra.mxu0 0
    %494 = vmatprep.mubr.bf16.mxu0 0
    %495 = vmatmul.mubr.bf16.gmra.mrb[0].mxu0 %v457
    %v496 = vpop.f32.mrb[0].mxu0
    %v497 = vadd.f32 %v98, %v496
    %v498 = vpop.f32.mrb[0].mxu0
    %v499 = vpop.f32.mrb[0].mxu0
    %v500 = vpop.f32.mrb[0].mxu0
    %501 = vdwg.mxu0
    %502 = vrot.lane.b32.xlu0 %v231, 120
    %v503 = vpop.permute.xlu0 %502
    %504 = vrot.lane.b32.xlu0 %v231, 88
    %v505 = vpop.permute.xlu0 %504
    %v507 = vsel %vm235, %v503, 0
    %v510 = vsel %vm235, %v505, 0
    %512 = vmatprep.subr.bf16.mxu0 0
    %513 = vmatpush1.bf16.xpose.msra.mxu0 %v510
    %514 = vmatprep.subr.bf16.mxu0 0
    %515 = vmatpush1.bf16.xpose.msra.mxu0 0
    %516 = vmatprep.subr.bf16.mxu0 0
    %517 = vmatpush1.bf16.xpose.msra.mxu0 0
    %518 = vmatprep.subr.bf16.mxu0 0
    %519 = vmatpush1.bf16.xpose.msra.mxu0 0
    %520 = vmatprep.subr.bf16.mxu0 0
    %521 = vmatpush1.bf16.xpose.msra.mxu0 0
    %522 = vmatprep.subr.bf16.mxu0 0
    %523 = vmatpush1.bf16.xpose.msra.mxu0 0
    %524 = vmatprep.subr.bf16.mxu0 0
    %525 = vmatpush1.bf16.xpose.msra.mxu0 0
    %526 = vmatprep.subr.bf16.mxu0 0
    %527 = vmatpush1.bf16.xpose.msra.mxu0 0
    %528 = vmatprep.subr.bf16.mxu0 0
    %529 = vmatpush1.bf16.xpose.msra.mxu0 0
    %530 = vmatprep.subr.bf16.mxu0 0
    %531 = vmatpush1.bf16.xpose.msra.mxu0 0
    %532 = vmatprep.subr.bf16.mxu0 0
    %533 = vmatpush1.bf16.xpose.msra.mxu0 0
    %534 = vmatprep.subr.bf16.mxu0 0
    %535 = vmatpush1.bf16.xpose.msra.mxu0 0
    %536 = vmatprep.subr.bf16.mxu0 0
    %537 = vmatpush1.bf16.xpose.msra.mxu0 0
    %538 = vmatprep.subr.bf16.mxu0 0
    %539 = vmatpush1.bf16.xpose.msra.mxu0 0
    %540 = vmatprep.subr.bf16.mxu0 0
    %541 = vmatpush1.bf16.xpose.msra.mxu0 0
    %542 = vmatprep.subr.bf16.mxu0 0
    %543 = vmatpush1.bf16.xpose.msra.mxu0 0
    %544 = vmatprep.mubr.bf16.mxu0 0
    %545 = vmatmul.mubr.bf16.gmra.mrb[0].mxu0 %v507
    %v546 = vpop.f32.mrb[0].mxu0
    %v547 = vadd.f32 %v98, %v546
    %v548 = vpop.f32.mrb[0].mxu0
    %v549 = vpop.f32.mrb[0].mxu0
    %v550 = vpop.f32.mrb[0].mxu0
    %551 = vdwg.mxu0
    %v552 = vsel %vm235, %v497, -inf
    %553 = vmax.xlane.f32.xlu0 %v552
    %v554 = vpop.xlane.xlu0 %553
    %v555 = vsel %vm235, %v547, -inf
    %556 = vmax.xlane.f32.xlu0 %v555
    %v557 = vpop.xlane.xlu0 %556
    %v558 = vsub.f32 %v497, %v554
    %v559 = vsub.f32 %v547, %v557
    %v560 = vmul.f32 %v558, 1.442695
    %v561 = vpow.pop %v560
    %v562 = vmul.f32 %v559, 1.442695
    %v563 = vpow.pop %v562
    %v564 = vsel %vm235, %v561, 0.0
    %565 = vadd.xlane.f32.xlu0 %v564
    %v566 = vpop.xlane.xlu0 %565
    %v567 = vsel %vm235, %v563, 0.0
    %568 = vadd.xlane.f32.xlu0 %v567
    %v569 = vpop.xlane.xlu0 %568
    %v570 = vrcp.pop %v566
    %v571 = vrcp.pop %v569
    %v572 = vmul.f32 %v561, %v570
    %v573 = vmul.f32 %v563, %v571
    %v574 = vpack.c.bf16 %v572, %v572
    %v575 = vpack.c.bf16 %v573, %v573
    %576 = vrot.lane.b32.xlu0 %v230, 56
    %v577 = vpop.permute.xlu0 %576
    %v579 = vsel %vm235, %v574, 0
    %v582 = vsel %vm360, %v577, 0
    %584 = vmatprep.subr.bf16.mxu0 0
    %585 = vmatpush1.bf16.msra.mxu0 %v582
    %586 = vmatprep.subr.bf16.mxu0 0
    %587 = vmatpush1.bf16.msra.mxu0 0
    %588 = vmatprep.subr.bf16.mxu0 0
    %589 = vmatpush1.bf16.msra.mxu0 0
    %590 = vmatprep.subr.bf16.mxu0 0
    %591 = vmatpush1.bf16.msra.mxu0 0
    %592 = vmatprep.subr.bf16.mxu0 0
    %593 = vmatpush1.bf16.msra.mxu0 0
    %594 = vmatprep.subr.bf16.mxu0 0
    %595 = vmatpush1.bf16.msra.mxu0 0
    %596 = vmatprep.subr.bf16.mxu0 0
    %597 = vmatpush1.bf16.msra.mxu0 0
    %598 = vmatprep.subr.bf16.mxu0 0
    %599 = vmatpush1.bf16.msra.mxu0 0
    %600 = vmatprep.subr.bf16.mxu0 0
    %601 = vmatpush1.bf16.msra.mxu0 0
    %602 = vmatprep.subr.bf16.mxu0 0
    %603 = vmatpush1.bf16.msra.mxu0 0
    %604 = vmatprep.subr.bf16.mxu0 0
    %605 = vmatpush1.bf16.msra.mxu0 0
    %606 = vmatprep.subr.bf16.mxu0 0
    %607 = vmatpush1.bf16.msra.mxu0 0
    %608 = vmatprep.subr.bf16.mxu0 0
    %609 = vmatpush1.bf16.msra.mxu0 0
    %610 = vmatprep.subr.bf16.mxu0 0
    %611 = vmatpush1.bf16.msra.mxu0 0
    %612 = vmatprep.subr.bf16.mxu0 0
    %613 = vmatpush1.bf16.msra.mxu0 0
    %614 = vmatprep.subr.bf16.mxu0 0
    %615 = vmatpush1.bf16.msra.mxu0 0
    %616 = vmatprep.mubr.bf16.mxu0 0
    %617 = vmatmul.mubr.bf16.gmra.mrb[0].mxu0 %v579
    %v618 = vpop.f32.mrb[0].mxu0
    %v619 = vadd.f32 0.0, %v618
    %v620 = vpop.f32.mrb[0].mxu0
    %v621 = vpop.f32.mrb[0].mxu0
    %v622 = vpop.f32.mrb[0].mxu0
    %623 = vdwg.mxu0
    %624 = vrot.lane.b32.xlu0 %v231, 56
    %v625 = vpop.permute.xlu0 %624
    %v627 = vsel %vm235, %v575, 0
    %v630 = vsel %vm360, %v625, 0
    %632 = vmatprep.subr.bf16.mxu0 0
    %633 = vmatpush1.bf16.msra.mxu0 %v630
    %634 = vmatprep.subr.bf16.mxu0 0
    %635 = vmatpush1.bf16.msra.mxu0 0
    %636 = vmatprep.subr.bf16.mxu0 0
    %637 = vmatpush1.bf16.msra.mxu0 0
    %638 = vmatprep.subr.bf16.mxu0 0
    %639 = vmatpush1.bf16.msra.mxu0 0
    %640 = vmatprep.subr.bf16.mxu0 0
    %641 = vmatpush1.bf16.msra.mxu0 0
    %642 = vmatprep.subr.bf16.mxu0 0
    %643 = vmatpush1.bf16.msra.mxu0 0
    %644 = vmatprep.subr.bf16.mxu0 0
    %645 = vmatpush1.bf16.msra.mxu0 0
    %646 = vmatprep.subr.bf16.mxu0 0
    %647 = vmatpush1.bf16.msra.mxu0 0
    %648 = vmatprep.subr.bf16.mxu0 0
    %649 = vmatpush1.bf16.msra.mxu0 0
    %650 = vmatprep.subr.bf16.mxu0 0
    %651 = vmatpush1.bf16.msra.mxu0 0
    %652 = vmatprep.subr.bf16.mxu0 0
    %653 = vmatpush1.bf16.msra.mxu0 0
    %654 = vmatprep.subr.bf16.mxu0 0
    %655 = vmatpush1.bf16.msra.mxu0 0
    %656 = vmatprep.subr.bf16.mxu0 0
    %657 = vmatpush1.bf16.msra.mxu0 0
    %658 = vmatprep.subr.bf16.mxu0 0
    %659 = vmatpush1.bf16.msra.mxu0 0
    %660 = vmatprep.subr.bf16.mxu0 0
    %661 = vmatpush1.bf16.msra.mxu0 0
    %662 = vmatprep.subr.bf16.mxu0 0
    %663 = vmatpush1.bf16.msra.mxu0 0
    %664 = vmatprep.mubr.bf16.mxu0 0
    %665 = vmatmul.mubr.bf16.gmra.mrb[0].mxu0 %v627
    %v666 = vpop.f32.mrb[0].mxu0
    %v667 = vadd.f32 0.0, %v666
    %v668 = vpop.f32.mrb[0].mxu0
    %v669 = vpop.f32.mrb[0].mxu0
    %v670 = vpop.f32.mrb[0].mxu0
    %671 = vdwg.mxu0
    %672 = vrot.lane.b32.xlu0 %v230, 112
    %v673 = vpop.permute.xlu0 %672
    %674 = vrot.lane.b32.xlu0 %v230, 80
    %v675 = vpop.permute.xlu0 %674
    %v677 = vsel %vm235, %v673, 0
    %v680 = vsel %vm235, %v675, 0
    %682 = vmatprep.subr.bf16.mxu0 0
    %683 = vmatpush1.bf16.xpose.msra.mxu0 %v680
    %684 = vmatprep.subr.bf16.mxu0 0
    %685 = vmatpush1.bf16.xpose.msra.mxu0 0
    %686 = vmatprep.subr.bf16.mxu0 0
    %687 = vmatpush1.bf16.xpose.msra.mxu0 0
    %688 = vmatprep.subr.bf16.mxu0 0
    %689 = vmatpush1.bf16.xpose.msra.mxu0 0
    %690 = vmatprep.subr.bf16.mxu0 0
    %691 = vmatpush1.bf16.xpose.msra.mxu0 0
    %692 = vmatprep.subr.bf16.mxu0 0
    %693 = vmatpush1.bf16.xpose.msra.mxu0 0
    %694 = vmatprep.subr.bf16.mxu0 0
    %695 = vmatpush1.bf16.xpose.msra.mxu0 0
    %696 = vmatprep.subr.bf16.mxu0 0
    %697 = vmatpush1.bf16.xpose.msra.mxu0 0
    %698 = vmatprep.subr.bf16.mxu0 0
    %699 = vmatpush1.bf16.xpose.msra.mxu0 0
    %700 = vmatprep.subr.bf16.mxu0 0
    %701 = vmatpush1.bf16.xpose.msra.mxu0 0
    %702 = vmatprep.subr.bf16.mxu0 0
    %703 = vmatpush1.bf16.xpose.msra.mxu0 0
    %704 = vmatprep.subr.bf16.mxu0 0
    %705 = vmatpush1.bf16.xpose.msra.mxu0 0
    %706 = vmatprep.subr.bf16.mxu0 0
    %707 = vmatpush1.bf16.xpose.msra.mxu0 0
    %708 = vmatprep.subr.bf16.mxu0 0
    %709 = vmatpush1.bf16.xpose.msra.mxu0 0
    %710 = vmatprep.subr.bf16.mxu0 0
    %711 = vmatpush1.bf16.xpose.msra.mxu0 0
    %712 = vmatprep.subr.bf16.mxu0 0
    %713 = vmatpush1.bf16.xpose.msra.mxu0 0
    %714 = vmatprep.mubr.bf16.mxu0 0
    %715 = vmatmul.mubr.bf16.gmra.mrb[0].mxu0 %v677
    %v716 = vpop.f32.mrb[0].mxu0
    %v717 = vadd.f32 %v98, %v716
    %v718 = vpop.f32.mrb[0].mxu0
    %v719 = vpop.f32.mrb[0].mxu0
    %v720 = vpop.f32.mrb[0].mxu0
    %721 = vdwg.mxu0
    %722 = vrot.lane.b32.xlu0 %v231, 112
    %v723 = vpop.permute.xlu0 %722
    %724 = vrot.lane.b32.xlu0 %v231, 80
    %v725 = vpop.permute.xlu0 %724
    %v727 = vsel %vm235, %v723, 0
    %v730 = vsel %vm235, %v725, 0
    %732 = vmatprep.subr.bf16.mxu0 0
    %733 = vmatpush1.bf16.xpose.msra.mxu0 %v730
    %734 = vmatprep.subr.bf16.mxu0 0
    %735 = vmatpush1.bf16.xpose.msra.mxu0 0
    %736 = vmatprep.subr.bf16.mxu0 0
    %737 = vmatpush1.bf16.xpose.msra.mxu0 0
    %738 = vmatprep.subr.bf16.mxu0 0
    %739 = vmatpush1.bf16.xpose.msra.mxu0 0
    %740 = vmatprep.subr.bf16.mxu0 0
    %741 = vmatpush1.bf16.xpose.msra.mxu0 0
    %742 = vmatprep.subr.bf16.mxu0 0
    %743 = vmatpush1.bf16.xpose.msra.mxu0 0
    %744 = vmatprep.subr.bf16.mxu0 0
    %745 = vmatpush1.bf16.xpose.msra.mxu0 0
    %746 = vmatprep.subr.bf16.mxu0 0
    %747 = vmatpush1.bf16.xpose.msra.mxu0 0
    %748 = vmatprep.subr.bf16.mxu0 0
    %749 = vmatpush1.bf16.xpose.msra.mxu0 0
    %750 = vmatprep.subr.bf16.mxu0 0
    %751 = vmatpush1.bf16.xpose.msra.mxu0 0
    %752 = vmatprep.subr.bf16.mxu0 0
    %753 = vmatpush1.bf16.xpose.msra.mxu0 0
    %754 = vmatprep.subr.bf16.mxu0 0
    %755 = vmatpush1.bf16.xpose.msra.mxu0 0
    %756 = vmatprep.subr.bf16.mxu0 0
    %757 = vmatpush1.bf16.xpose.msra.mxu0 0
    %758 = vmatprep.subr.bf16.mxu0 0
    %759 = vmatpush1.bf16.xpose.msra.mxu0 0
    %760 = vmatprep.subr.bf16.mxu0 0
    %761 = vmatpush1.bf16.xpose.msra.mxu0 0
    %762 = vmatprep.subr.bf16.mxu0 0
    %763 = vmatpush1.bf16.xpose.msra.mxu0 0
    %764 = vmatprep.mubr.bf16.mxu0 0
    %765 = vmatmul.mubr.bf16.gmra.mrb[0].mxu0 %v727
    %v766 = vpop.f32.mrb[0].mxu0
    %v767 = vadd.f32 %v98, %v766
    %v768 = vpop.f32.mrb[0].mxu0
    %v769 = vpop.f32.mrb[0].mxu0
    %v770 = vpop.f32.mrb[0].mxu0
    %771 = vdwg.mxu0
    %v772 = vsel %vm235, %v717, -inf
    %773 = vmax.xlane.f32.xlu0 %v772
    %v774 = vpop.xlane.xlu0 %773
    %v775 = vsel %vm235, %v767, -inf
    %776 = vmax.xlane.f32.xlu0 %v775
    %v777 = vpop.xlane.xlu0 %776
    %v778 = vsub.f32 %v717, %v774
    %v779 = vsub.f32 %v767, %v777
    %v780 = vmul.f32 %v778, 1.442695
    %v781 = vpow.pop %v780
    %v782 = vmul.f32 %v779, 1.442695
    %v783 = vpow.pop %v782
    %v784 = vsel %vm235, %v781, 0.0
    %785 = vadd.xlane.f32.xlu0 %v784
    %v786 = vpop.xlane.xlu0 %785
    %v787 = vsel %vm235, %v783, 0.0
    %788 = vadd.xlane.f32.xlu0 %v787
    %v789 = vpop.xlane.xlu0 %788
    %v790 = vrcp.pop %v786
    %v791 = vrcp.pop %v789
    %v792 = vmul.f32 %v781, %v790
    %v793 = vmul.f32 %v783, %v791
    %v794 = vpack.c.bf16 %v792, %v792
    %v795 = vpack.c.bf16 %v793, %v793
    %796 = vrot.lane.b32.xlu0 %v230, 48
    %v797 = vpop.permute.xlu0 %796
    %v799 = vsel %vm235, %v794, 0
    %v802 = vsel %vm360, %v797, 0
    %804 = vmatprep.subr.bf16.mxu0 0
    %805 = vmatpush1.bf16.msra.mxu0 %v802
    %806 = vmatprep.subr.bf16.mxu0 0
    %807 = vmatpush1.bf16.msra.mxu0 0
    %808 = vmatprep.subr.bf16.mxu0 0
    %809 = vmatpush1.bf16.msra.mxu0 0
    %810 = vmatprep.subr.bf16.mxu0 0
    %811 = vmatpush1.bf16.msra.mxu0 0
    %812 = vmatprep.subr.bf16.mxu0 0
    %813 = vmatpush1.bf16.msra.mxu0 0
    %814 = vmatprep.subr.bf16.mxu0 0
    %815 = vmatpush1.bf16.msra.mxu0 0
    %816 = vmatprep.subr.bf16.mxu0 0
    %817 = vmatpush1.bf16.msra.mxu0 0
    %818 = vmatprep.subr.bf16.mxu0 0
    %819 = vmatpush1.bf16.msra.mxu0 0
    %820 = vmatprep.subr.bf16.mxu0 0
    %821 = vmatpush1.bf16.msra.mxu0 0
    %822 = vmatprep.subr.bf16.mxu0 0
    %823 = vmatpush1.bf16.msra.mxu0 0
    %824 = vmatprep.subr.bf16.mxu0 0
    %825 = vmatpush1.bf16.msra.mxu0 0
    %826 = vmatprep.subr.bf16.mxu0 0
    %827 = vmatpush1.bf16.msra.mxu0 0
    %828 = vmatprep.subr.bf16.mxu0 0
    %829 = vmatpush1.bf16.msra.mxu0 0
    %830 = vmatprep.subr.bf16.mxu0 0
    %831 = vmatpush1.bf16.msra.mxu0 0
    %832 = vmatprep.subr.bf16.mxu0 0
    %833 = vmatpush1.bf16.msra.mxu0 0
    %834 = vmatprep.subr.bf16.mxu0 0
    %835 = vmatpush1.bf16.msra.mxu0 0
    %836 = vmatprep.mubr.bf16.mxu0 0
    %837 = vmatmul.mubr.bf16.gmra.mrb[0].mxu0 %v799
    %v838 = vpop.f32.mrb[0].mxu0
    %v839 = vadd.f32 0.0, %v838
    %v840 = vpop.f32.mrb[0].mxu0
    %v841 = vpop.f32.mrb[0].mxu0
    %v842 = vpop.f32.mrb[0].mxu0
    %843 = vdwg.mxu0
    %844 = vrot.lane.b32.xlu0 %v231, 48
    %v845 = vpop.permute.xlu0 %844
    %v847 = vsel %vm235, %v795, 0
    %v850 = vsel %vm360, %v845, 0
    %852 = vmatprep.subr.bf16.mxu0 0
    %853 = vmatpush1.bf16.msra.mxu0 %v850
    %854 = vmatprep.subr.bf16.mxu0 0
    %855 = vmatpush1.bf16.msra.mxu0 0
    %856 = vmatprep.subr.bf16.mxu0 0
    %857 = vmatpush1.bf16.msra.mxu0 0
    %858 = vmatprep.subr.bf16.mxu0 0
    %859 = vmatpush1.bf16.msra.mxu0 0
    %860 = vmatprep.subr.bf16.mxu0 0
    %861 = vmatpush1.bf16.msra.mxu0 0
    %862 = vmatprep.subr.bf16.mxu0 0
    %863 = vmatpush1.bf16.msra.mxu0 0
    %864 = vmatprep.subr.bf16.mxu0 0
    %865 = vmatpush1.bf16.msra.mxu0 0
    %866 = vmatprep.subr.bf16.mxu0 0
    %867 = vmatpush1.bf16.msra.mxu0 0
    %868 = vmatprep.subr.bf16.mxu0 0
    %869 = vmatpush1.bf16.msra.mxu0 0
    %870 = vmatprep.subr.bf16.mxu0 0
    %871 = vmatpush1.bf16.msra.mxu0 0
    %872 = vmatprep.subr.bf16.mxu0 0
    %873 = vmatpush1.bf16.msra.mxu0 0
    %874 = vmatprep.subr.bf16.mxu0 0
    %875 = vmatpush1.bf16.msra.mxu0 0
    %876 = vmatprep.subr.bf16.mxu0 0
    %877 = vmatpush1.bf16.msra.mxu0 0
    %878 = vmatprep.subr.bf16.mxu0 0
    %879 = vmatpush1.bf16.msra.mxu0 0
    %880 = vmatprep.subr.bf16.mxu0 0
    %881 = vmatpush1.bf16.msra.mxu0 0
    %882 = vmatprep.subr.bf16.mxu0 0
    %883 = vmatpush1.bf16.msra.mxu0 0
    %884 = vmatprep.mubr.bf16.mxu0 0
    %885 = vmatmul.mubr.bf16.gmra.mrb[0].mxu0 %v847
    %v886 = vpop.f32.mrb[0].mxu0
    %v887 = vadd.f32 0.0, %v886
    %v888 = vpop.f32.mrb[0].mxu0
    %v889 = vpop.f32.mrb[0].mxu0
    %v890 = vpop.f32.mrb[0].mxu0
    %891 = vdwg.mxu0
    %892 = vrot.lane.b32.xlu0 %v230, 104
    %v893 = vpop.permute.xlu0 %892
    %894 = vrot.lane.b32.xlu0 %v230, 72
    %v895 = vpop.permute.xlu0 %894
    %v897 = vsel %vm235, %v893, 0
    %v900 = vsel %vm235, %v895, 0
    %902 = vmatprep.subr.bf16.mxu0 0
    %903 = vmatpush1.bf16.xpose.msra.mxu0 %v900
    %904 = vmatprep.subr.bf16.mxu0 0
    %905 = vmatpush1.bf16.xpose.msra.mxu0 0
    %906 = vmatprep.subr.bf16.mxu0 0
    %907 = vmatpush1.bf16.xpose.msra.mxu0 0
    %908 = vmatprep.subr.bf16.mxu0 0
    %909 = vmatpush1.bf16.xpose.msra.mxu0 0
    %910 = vmatprep.subr.bf16.mxu0 0
    %911 = vmatpush1.bf16.xpose.msra.mxu0 0
    %912 = vmatprep.subr.bf16.mxu0 0
    %913 = vmatpush1.bf16.xpose.msra.mxu0 0
    %914 = vmatprep.subr.bf16.mxu0 0
    %915 = vmatpush1.bf16.xpose.msra.mxu0 0
    %916 = vmatprep.subr.bf16.mxu0 0
    %917 = vmatpush1.bf16.xpose.msra.mxu0 0
    %918 = vmatprep.subr.bf16.mxu0 0
    %919 = vmatpush1.bf16.xpose.msra.mxu0 0
    %920 = vmatprep.subr.bf16.mxu0 0
    %921 = vmatpush1.bf16.xpose.msra.mxu0 0
    %922 = vmatprep.subr.bf16.mxu0 0
    %923 = vmatpush1.bf16.xpose.msra.mxu0 0
    %924 = vmatprep.subr.bf16.mxu0 0
    %925 = vmatpush1.bf16.xpose.msra.mxu0 0
    %926 = vmatprep.subr.bf16.mxu0 0
    %927 = vmatpush1.bf16.xpose.msra.mxu0 0
    %928 = vmatprep.subr.bf16.mxu0 0
    %929 = vmatpush1.bf16.xpose.msra.mxu0 0
    %930 = vmatprep.subr.bf16.mxu0 0
    %931 = vmatpush1.bf16.xpose.msra.mxu0 0
    %932 = vmatprep.subr.bf16.mxu0 0
    %933 = vmatpush1.bf16.xpose.msra.mxu0 0
    %934 = vmatprep.mubr.bf16.mxu0 0
    %935 = vmatmul.mubr.bf16.gmra.mrb[0].mxu0 %v897
    %v936 = vpop.f32.mrb[0].mxu0
    %v937 = vadd.f32 %v98, %v936
    %v938 = vpop.f32.mrb[0].mxu0
    %v939 = vpop.f32.mrb[0].mxu0
    %v940 = vpop.f32.mrb[0].mxu0
    %941 = vdwg.mxu0
    %942 = vrot.lane.b32.xlu0 %v231, 104
    %v943 = vpop.permute.xlu0 %942
    %944 = vrot.lane.b32.xlu0 %v231, 72
    %v945 = vpop.permute.xlu0 %944
    %v947 = vsel %vm235, %v943, 0
    %v950 = vsel %vm235, %v945, 0
    %952 = vmatprep.subr.bf16.mxu0 0
    %953 = vmatpush1.bf16.xpose.msra.mxu0 %v950
    %954 = vmatprep.subr.bf16.mxu0 0
    %955 = vmatpush1.bf16.xpose.msra.mxu0 0
    %956 = vmatprep.subr.bf16.mxu0 0
    %957 = vmatpush1.bf16.xpose.msra.mxu0 0
    %958 = vmatprep.subr.bf16.mxu0 0
    %959 = vmatpush1.bf16.xpose.msra.mxu0 0
    %960 = vmatprep.subr.bf16.mxu0 0
    %961 = vmatpush1.bf16.xpose.msra.mxu0 0
    %962 = vmatprep.subr.bf16.mxu0 0
    %963 = vmatpush1.bf16.xpose.msra.mxu0 0
    %964 = vmatprep.subr.bf16.mxu0 0
    %965 = vmatpush1.bf16.xpose.msra.mxu0 0
    %966 = vmatprep.subr.bf16.mxu0 0
    %967 = vmatpush1.bf16.xpose.msra.mxu0 0
    %968 = vmatprep.subr.bf16.mxu0 0
    %969 = vmatpush1.bf16.xpose.msra.mxu0 0
    %970 = vmatprep.subr.bf16.mxu0 0
    %971 = vmatpush1.bf16.xpose.msra.mxu0 0
    %972 = vmatprep.subr.bf16.mxu0 0
    %973 = vmatpush1.bf16.xpose.msra.mxu0 0
    %974 = vmatprep.subr.bf16.mxu0 0
    %975 = vmatpush1.bf16.xpose.msra.mxu0 0
    %976 = vmatprep.subr.bf16.mxu0 0
    %977 = vmatpush1.bf16.xpose.msra.mxu0 0
    %978 = vmatprep.subr.bf16.mxu0 0
    %979 = vmatpush1.bf16.xpose.msra.mxu0 0
    %980 = vmatprep.subr.bf16.mxu0 0
    %981 = vmatpush1.bf16.xpose.msra.mxu0 0
    %982 = vmatprep.subr.bf16.mxu0 0
    %983 = vmatpush1.bf16.xpose.msra.mxu0 0
    %984 = vmatprep.mubr.bf16.mxu0 0
    %985 = vmatmul.mubr.bf16.gmra.mrb[0].mxu0 %v947
    %v986 = vpop.f32.mrb[0].mxu0
    %v987 = vadd.f32 %v98, %v986
    %v988 = vpop.f32.mrb[0].mxu0
    %v989 = vpop.f32.mrb[0].mxu0
    %v990 = vpop.f32.mrb[0].mxu0
    %991 = vdwg.mxu0
    %v992 = vsel %vm235, %v937, -inf
    %993 = vmax.xlane.f32.xlu0 %v992
    %v994 = vpop.xlane.xlu0 %993
    %v995 = vsel %vm235, %v987, -inf
    %996 = vmax.xlane.f32.xlu0 %v995
    %v997 = vpop.xlane.xlu0 %996
    %v998 = vsub.f32 %v937, %v994
    %v999 = vsub.f32 %v987, %v997
    %v1000 = vmul.f32 %v998, 1.442695
    %v1001 = vpow.pop %v1000
    %v1002 = vmul.f32 %v999, 1.442695
    %v1003 = vpow.pop %v1002
    %v1004 = vsel %vm235, %v1001, 0.0
    %1005 = vadd.xlane.f32.xlu0 %v1004
    %v1006 = vpop.xlane.xlu0 %1005
    %v1007 = vsel %vm235, %v1003, 0.0
    %1008 = vadd.xlane.f32.xlu0 %v1007
    %v1009 = vpop.xlane.xlu0 %1008
    %v1010 = vrcp.pop %v1006
    %v1011 = vrcp.pop %v1009
    %v1012 = vmul.f32 %v1001, %v1010
    %v1013 = vmul.f32 %v1003, %v1011
    %v1014 = vpack.c.bf16 %v1012, %v1012
    %v1015 = vpack.c.bf16 %v1013, %v1013
    %1016 = vrot.lane.b32.xlu0 %v230, 40
    %v1017 = vpop.permute.xlu0 %1016
    %v1019 = vsel %vm235, %v1014, 0
    %v1022 = vsel %vm360, %v1017, 0
    %1024 = vmatprep.subr.bf16.mxu0 0
    %1025 = vmatpush1.bf16.msra.mxu0 %v1022
    %1026 = vmatprep.subr.bf16.mxu0 0
    %1027 = vmatpush1.bf16.msra.mxu0 0
    %1028 = vmatprep.subr.bf16.mxu0 0
    %1029 = vmatpush1.bf16.msra.mxu0 0
    %1030 = vmatprep.subr.bf16.mxu0 0
    %1031 = vmatpush1.bf16.msra.mxu0 0
    %1032 = vmatprep.subr.bf16.mxu0 0
    %1033 = vmatpush1.bf16.msra.mxu0 0
    %1034 = vmatprep.subr.bf16.mxu0 0
    %1035 = vmatpush1.bf16.msra.mxu0 0
    %1036 = vmatprep.subr.bf16.mxu0 0
    %1037 = vmatpush1.bf16.msra.mxu0 0
    %1038 = vmatprep.subr.bf16.mxu0 0
    %1039 = vmatpush1.bf16.msra.mxu0 0
    %1040 = vmatprep.subr.bf16.mxu0 0
    %1041 = vmatpush1.bf16.msra.mxu0 0
    %1042 = vmatprep.subr.bf16.mxu0 0
    %1043 = vmatpush1.bf16.msra.mxu0 0
    %1044 = vmatprep.subr.bf16.mxu0 0
    %1045 = vmatpush1.bf16.msra.mxu0 0
    %1046 = vmatprep.subr.bf16.mxu0 0
    %1047 = vmatpush1.bf16.msra.mxu0 0
    %1048 = vmatprep.subr.bf16.mxu0 0
    %1049 = vmatpush1.bf16.msra.mxu0 0
    %1050 = vmatprep.subr.bf16.mxu0 0
    %1051 = vmatpush1.bf16.msra.mxu0 0
    %1052 = vmatprep.subr.bf16.mxu0 0
    %1053 = vmatpush1.bf16.msra.mxu0 0
    %1054 = vmatprep.subr.bf16.mxu0 0
    %1055 = vmatpush1.bf16.msra.mxu0 0
    %1056 = vmatprep.mubr.bf16.mxu0 0
    %1057 = vmatmul.mubr.bf16.gmra.mrb[0].mxu0 %v1019
    %v1058 = vpop.f32.mrb[0].mxu0
    %v1059 = vadd.f32 0.0, %v1058
    %v1060 = vpop.f32.mrb[0].mxu0
    %v1061 = vpop.f32.mrb[0].mxu0
    %v1062 = vpop.f32.mrb[0].mxu0
    %1063 = vdwg.mxu0
    %1064 = vrot.lane.b32.xlu0 %v231, 40
    %v1065 = vpop.permute.xlu0 %1064
    %v1067 = vsel %vm235, %v1015, 0
    %v1070 = vsel %vm360, %v1065, 0
    %1072 = vmatprep.subr.bf16.mxu0 0
    %1073 = vmatpush1.bf16.msra.mxu0 %v1070
    %1074 = vmatprep.subr.bf16.mxu0 0
    %1075 = vmatpush1.bf16.msra.mxu0 0
    %1076 = vmatprep.subr.bf16.mxu0 0
    %1077 = vmatpush1.bf16.msra.mxu0 0
    %1078 = vmatprep.subr.bf16.mxu0 0
    %1079 = vmatpush1.bf16.msra.mxu0 0
    %1080 = vmatprep.subr.bf16.mxu0 0
    %1081 = vmatpush1.bf16.msra.mxu0 0
    %1082 = vmatprep.subr.bf16.mxu0 0
    %1083 = vmatpush1.bf16.msra.mxu0 0
    %1084 = vmatprep.subr.bf16.mxu0 0
    %1085 = vmatpush1.bf16.msra.mxu0 0
    %1086 = vmatprep.subr.bf16.mxu0 0
    %1087 = vmatpush1.bf16.msra.mxu0 0
    %1088 = vmatprep.subr.bf16.mxu0 0
    %1089 = vmatpush1.bf16.msra.mxu0 0
    %1090 = vmatprep.subr.bf16.mxu0 0
    %1091 = vmatpush1.bf16.msra.mxu0 0
    %1092 = vmatprep.subr.bf16.mxu0 0
    %1093 = vmatpush1.bf16.msra.mxu0 0
    %1094 = vmatprep.subr.bf16.mxu0 0
    %1095 = vmatpush1.bf16.msra.mxu0 0
    %1096 = vmatprep.subr.bf16.mxu0 0
    %1097 = vmatpush1.bf16.msra.mxu0 0
    %1098 = vmatprep.subr.bf16.mxu0 0
    %1099 = vmatpush1.bf16.msra.mxu0 0
    %1100 = vmatprep.subr.bf16.mxu0 0
    %1101 = vmatpush1.bf16.msra.mxu0 0
    %1102 = vmatprep.subr.bf16.mxu0 0
    %1103 = vmatpush1.bf16.msra.mxu0 0
    %1104 = vmatprep.mubr.bf16.mxu0 0
    %1105 = vmatmul.mubr.bf16.gmra.mrb[0].mxu0 %v1067
    %v1106 = vpop.f32.mrb[0].mxu0
    %v1107 = vadd.f32 0.0, %v1106
    %v1108 = vpop.f32.mrb[0].mxu0
    %v1109 = vpop.f32.mrb[0].mxu0
    %v1110 = vpop.f32.mrb[0].mxu0
    %1111 = vdwg.mxu0
    %1114 = vrot.lane.b32.xlu0 %v619, 8
    %v1115 = vpop.permute.xlu0 %1114
    %1116 = vrot.lane.b32.xlu0 %v667, 8
    %v1117 = vpop.permute.xlu0 %1116
    %1122 = vrot.lane.b32.xlu0 %v839, 16
    %v1123 = vpop.permute.xlu0 %1122
    %1124 = vrot.lane.b32.xlu0 %v887, 16
    %v1125 = vpop.permute.xlu0 %1124
    %1130 = vrot.lane.b32.xlu0 %v1059, 24
    %v1131 = vpop.permute.xlu0 %1130
    %1132 = vrot.lane.b32.xlu0 %v1107, 24
    %v1133 = vpop.permute.xlu0 %1132
    %v1136 = vsel %vm235, %v399, %v1115
    %v1137 = vsel %vm235, %v447, %v1117
    %vm1138 = vcmask 130048
    %v1139 = vsel %vm1138, %v1136, %v1123
    %v1140 = vsel %vm1138, %v1137, %v1125
    %vm1141 = vcmask 195584
    %v1142 = vsel %vm1141, %v1139, %v1131
    %v1143 = vsel %vm1141, %v1140, %v1133
    %v1144 = vpack.c.bf16 %v1143, %v1142
    %v1145 = vld [vmem:[%s7] sm:$0xf]
    %v1146 = vld [vmem:[%s7 + $0x4] sm:$0xf]
    %v1147 = vld [vmem:[%s7 + $0x8] sm:$0xf]
    %v1148 = vld [vmem:[%s7 + $0xc] sm:$0xf]
    %v1149 = vld [vmem:[%s8] sm:$0x1]
    %v1151 = vlaneseq
    %v1152 = vshrl.u32 %v1151, 7
    %v1153 = vsub.s32 0, %v1152
    %v1154 = vrot.slane %v1149, %v1153
    %v1160 = vunpack.c.l.b16 %v1145
    %v1161 = vunpack.c.l.b16 %v1146
    %v1162 = vunpack.c.l.b16 %v1147
    %v1163 = vunpack.c.l.b16 %v1148
    %v1164 = vpack.c.b16 %v1161, %v1160
    %v1165 = vpack.c.b16 %v1163, %v1162
    %v1169 = vsel %vm185, %v1144, 0
    %1171 = vmatprep.subr.bf16.mxu0 0
    %1172 = vmatpush1.bf16.msra.mxu0 %v1164
    %1173 = vmatprep.subr.bf16.mxu0 0
    %1174 = vmatpush1.bf16.msra.mxu0 %v1165
    %1175 = vmatprep.subr.bf16.mxu0 0
    %1176 = vmatpush1.bf16.msra.mxu0 0
    %1177 = vmatprep.subr.bf16.mxu0 0
    %1178 = vmatpush1.bf16.msra.mxu0 0
    %1179 = vmatprep.subr.bf16.mxu0 0
    %1180 = vmatpush1.bf16.msra.mxu0 0
    %1181 = vmatprep.subr.bf16.mxu0 0
    %1182 = vmatpush1.bf16.msra.mxu0 0
    %1183 = vmatprep.subr.bf16.mxu0 0
    %1184 = vmatpush1.bf16.msra.mxu0 0
    %1185 = vmatprep.subr.bf16.mxu0 0
    %1186 = vmatpush1.bf16.msra.mxu0 0
    %1187 = vmatprep.subr.bf16.mxu0 0
    %1188 = vmatpush1.bf16.msra.mxu0 0
    %1189 = vmatprep.subr.bf16.mxu0 0
    %1190 = vmatpush1.bf16.msra.mxu0 0
    %1191 = vmatprep.subr.bf16.mxu0 0
    %1192 = vmatpush1.bf16.msra.mxu0 0
    %1193 = vmatprep.subr.bf16.mxu0 0
    %1194 = vmatpush1.bf16.msra.mxu0 0
    %1195 = vmatprep.subr.bf16.mxu0 0
    %1196 = vmatpush1.bf16.msra.mxu0 0
    %1197 = vmatprep.subr.bf16.mxu0 0
    %1198 = vmatpush1.bf16.msra.mxu0 0
    %1199 = vmatprep.subr.bf16.mxu0 0
    %1200 = vmatpush1.bf16.msra.mxu0 0
    %1201 = vmatprep.subr.bf16.mxu0 0
    %1202 = vmatpush1.bf16.msra.mxu0 0
    %1203 = vmatprep.mubr.bf16.mxu0 0
    %1204 = vmatmul.mubr.bf16.gmra.mrb[0].mxu0 %v1169
    %v1205 = vpop.f32.mrb[0].mxu0
    %v1206 = vadd.f32 %v1154, %v1205
    %v1207 = vpop.f32.mrb[0].mxu0
    %v1208 = vpop.f32.mrb[0].mxu0
    %v1209 = vadd.f32 %v1154, %v1208
    %v1210 = vpop.f32.mrb[0].mxu0
    %1211 = vdwg.mxu0
    %v1212 = vadd.f32 %v159, %v1206
    %v1213 = vadd.f32 %v160, %v1209
    %v1214 = vld [vmem:[%s13] sm:$0x1]
    %v1215 = vld [vmem:[%s14] sm:$0x1]
    %v1216 = vsel %vm185, %v1212, 0.0
    %1217 = vadd.xlane.f32.xlu0 %v1216
    %v1218 = vpop.xlane.xlu0 %1217
    %v1219 = vsel %vm185, %v1213, 0.0
    %1220 = vadd.xlane.f32.xlu0 %v1219
    %v1221 = vpop.xlane.xlu0 %1220
    %v1222 = vrcp.pop 32.0
    %v1223 = vmul.f32 %v1218, %v1222
    %v1224 = vmul.f32 %v1221, %v1222
    %v1225 = vsub.f32 %v1212, %v1223
    %v1226 = vsub.f32 %v1213, %v1224
    %v1227 = vmul.f32 %v1225, %v1225
    %v1228 = vmul.f32 %v1226, %v1226
    %v1229 = vsel %vm185, %v1227, 0.0
    %1230 = vadd.xlane.f32.xlu0 %v1229
    %v1231 = vpop.xlane.xlu0 %1230
    %v1232 = vsel %vm185, %v1228, 0.0
    %1233 = vadd.xlane.f32.xlu0 %v1232
    %v1234 = vpop.xlane.xlu0 %1233
    %v1235 = vmul.f32 %v1231, %v1222
    %v1236 = vmul.f32 %v1234, %v1222
    %v1237 = vadd.f32 %v1235, 1e-05
    %v1238 = vadd.f32 %v1236, 1e-05
    %v1239 = vrsqrt.pop %v1237
    %v1240 = vrsqrt.pop %v1238
    %v1241 = vmul.f32 %v1225, %v1239
    %v1242 = vmul.f32 %v1226, %v1240
    %v1244 = vlaneseq
    %v1245 = vshrl.u32 %v1244, 7
    %v1246 = vsub.s32 0, %v1245
    %v1247 = vrot.slane %v1214, %v1246
    %v1249 = vmul.f32 %v1241, %v1247
    %v1250 = vmul.f32 %v1242, %v1247
    %v1252 = vlaneseq
    %v1253 = vshrl.u32 %v1252, 7
    %v1254 = vsub.s32 0, %v1253
    %v1255 = vrot.slane %v1215, %v1254
    %v1257 = vadd.f32 %v1249, %v1255
    %v1258 = vadd.f32 %v1250, %v1255
    %v1259 = vpack.c.bf16 %v1258, %v1257
    %v1260 = vld [vmem:[%s9] sm:$0xf]
    %v1261 = vld [vmem:[%s9 + $0x4] sm:$0xf]
    %v1262 = vld [vmem:[%s9 + $0x8] sm:$0xf]
    %v1263 = vld [vmem:[%s9 + $0xc] sm:$0xf]
    %v1264 = vld [vmem:[#allocation5] sm:$0x1]
    %v1266 = vlaneseq
    %v1267 = vshrl.u32 %v1266, 7
    %v1268 = vsub.s32 0, %v1267
    %v1269 = vrot.slane %v1264, %v1268
    %v1275 = vunpack.c.l.b16 %v1260
    %v1276 = vunpack.c.l.b16 %v1261
    %v1277 = vunpack.c.l.b16 %v1262
    %v1278 = vunpack.c.l.b16 %v1263
    %v1279 = vpack.c.b16 %v1276, %v1275
    %v1280 = vpack.c.b16 %v1278, %v1277
    %v1284 = vsel %vm185, %v1259, 0
    %1286 = vmatprep.subr.bf16.mxu0 0
    %1287 = vmatpush1.bf16.msra.mxu0 %v1279
    %1288 = vmatprep.subr.bf16.mxu0 0
    %1289 = vmatpush1.bf16.msra.mxu0 %v1280
    %1290 = vmatprep.subr.bf16.mxu0 0
    %1291 = vmatpush1.bf16.msra.mxu0 0
    %1292 = vmatprep.subr.bf16.mxu0 0
    %1293 = vmatpush1.bf16.msra.mxu0 0
    %1294 = vmatprep.subr.bf16.mxu0 0
    %1295 = vmatpush1.bf16.msra.mxu0 0
    %1296 = vmatprep.subr.bf16.mxu0 0
    %1297 = vmatpush1.bf16.msra.mxu0 0
    %1298 = vmatprep.subr.bf16.mxu0 0
    %1299 = vmatpush1.bf16.msra.mxu0 0
    %1300 = vmatprep.subr.bf16.mxu0 0
    %1301 = vmatpush1.bf16.msra.mxu0 0
    %1302 = vmatprep.subr.bf16.mxu0 0
    %1303 = vmatpush1.bf16.msra.mxu0 0
    %1304 = vmatprep.subr.bf16.mxu0 0
    %1305 = vmatpush1.bf16.msra.mxu0 0
    %1306 = vmatprep.subr.bf16.mxu0 0
    %1307 = vmatpush1.bf16.msra.mxu0 0
    %1308 = vmatprep.subr.bf16.mxu0 0
    %1309 = vmatpush1.bf16.msra.mxu0 0
    %1310 = vmatprep.subr.bf16.mxu0 0
    %1311 = vmatpush1.bf16.msra.mxu0 0
    %1312 = vmatprep.subr.bf16.mxu0 0
    %1313 = vmatpush1.bf16.msra.mxu0 0
    %1314 = vmatprep.subr.bf16.mxu0 0
    %1315 = vmatpush1.bf16.msra.mxu0 0
    %1316 = vmatprep.subr.bf16.mxu0 0
    %1317 = vmatpush1.bf16.msra.mxu0 0
    %1318 = vmatprep.mubr.bf16.mxu0 0
    %1319 = vmatmul.mubr.bf16.gmra.mrb[0].mxu0 %v1284
    %v1320 = vpop.f32.mrb[0].mxu0
    %v1321 = vadd.f32 %v1269, %v1320
    %v1322 = vpop.f32.mrb[0].mxu0
    %v1323 = vpop.f32.mrb[0].mxu0
    %v1324 = vadd.f32 %v1269, %v1323
    %v1325 = vpop.f32.mrb[0].mxu0
    %1326 = vdwg.mxu0
    %v1327 = vmax.f32 %v1321, 0.0
    %v1328 = vmax.f32 %v1324, 0.0
    %v1329 = vpack.c.bf16 %v1328, %v1327
    %v1330 = vld [vmem:[%s11] sm:$0xf]
    %v1331 = vld [vmem:[%s11 + $0x4] sm:$0xf]
    %v1332 = vld [vmem:[%s11 + $0x8] sm:$0xf]
    %v1333 = vld [vmem:[%s11 + $0xc] sm:$0xf]
    %v1334 = vld [vmem:[%s11 + $0x10] sm:$0xf]
    %v1335 = vld [vmem:[%s11 + $0x14] sm:$0xf]
    %v1336 = vld [vmem:[%s11 + $0x18] sm:$0xf]
    %v1337 = vld [vmem:[%s11 + $0x1c] sm:$0xf]
    %v1338 = vld [vmem:[%s12] sm:$0x1]
    %v1340 = vlaneseq
    %v1341 = vshrl.u32 %v1340, 7
    %v1342 = vsub.s32 0, %v1341
    %v1343 = vrot.slane %v1338, %v1342
    %v1353 = vunpack.c.l.b16 %v1330
    %v1354 = vunpack.c.l.b16 %v1331
    %v1355 = vunpack.c.l.b16 %v1332
    %v1356 = vunpack.c.l.b16 %v1333
    %v1357 = vunpack.c.l.b16 %v1334
    %v1358 = vunpack.c.l.b16 %v1335
    %v1359 = vunpack.c.l.b16 %v1336
    %v1360 = vunpack.c.l.b16 %v1337
    %v1361 = vpack.c.b16 %v1354, %v1353
    %v1362 = vpack.c.b16 %v1356, %v1355
    %v1363 = vpack.c.b16 %v1358, %v1357
    %v1364 = vpack.c.b16 %v1360, %v1359
    %vm1369 = vcmask 523264
    %v1371 = vsel %vm1369, %v1329, 0
    %1373 = vmatprep.subr.bf16.mxu0 0
    %1374 = vmatpush1.bf16.msra.mxu0 %v1361
    %1375 = vmatprep.subr.bf16.mxu0 0
    %1376 = vmatpush1.bf16.msra.mxu0 %v1362
    %1377 = vmatprep.subr.bf16.mxu0 0
    %1378 = vmatpush1.bf16.msra.mxu0 %v1363
    %1379 = vmatprep.subr.bf16.mxu0 0
    %1380 = vmatpush1.bf16.msra.mxu0 %v1364
    %1381 = vmatprep.subr.bf16.mxu0 0
    %1382 = vmatpush1.bf16.msra.mxu0 0
    %1383 = vmatprep.subr.bf16.mxu0 0
    %1384 = vmatpush1.bf16.msra.mxu0 0
    %1385 = vmatprep.subr.bf16.mxu0 0
    %1386 = vmatpush1.bf16.msra.mxu0 0
    %1387 = vmatprep.subr.bf16.mxu0 0
    %1388 = vmatpush1.bf16.msra.mxu0 0
    %1389 = vmatprep.subr.bf16.mxu0 0
    %1390 = vmatpush1.bf16.msra.mxu0 0
    %1391 = vmatprep.subr.bf16.mxu0 0
    %1392 = vmatpush1.bf16.msra.mxu0 0
    %1393 = vmatprep.subr.bf16.mxu0 0
    %1394 = vmatpush1.bf16.msra.mxu0 0
    %1395 = vmatprep.subr.bf16.mxu0 0
    %1396 = vmatpush1.bf16.msra.mxu0 0
    %1397 = vmatprep.subr.bf16.mxu0 0
    %1398 = vmatpush1.bf16.msra.mxu0 0
    %1399 = vmatprep.subr.bf16.mxu0 0
    %1400 = vmatpush1.bf16.msra.mxu0 0
    %1401 = vmatprep.subr.bf16.mxu0 0
    %1402 = vmatpush1.bf16.msra.mxu0 0
    %1403 = vmatprep.subr.bf16.mxu0 0
    %1404 = vmatpush1.bf16.msra.mxu0 0
    %1405 = vmatprep.mubr.bf16.mxu0 0
    %1406 = vmatmul.mubr.bf16.gmra.mrb[0].mxu0 %v1371
    %v1407 = vpop.f32.mrb[0].mxu0
    %v1408 = vadd.f32 %v1343, %v1407
    %v1409 = vpop.f32.mrb[0].mxu0
    %v1410 = vpop.f32.mrb[0].mxu0
    %v1411 = vadd.f32 %v1343, %v1410
    %v1412 = vpop.f32.mrb[0].mxu0
    %1413 = vdwg.mxu0
    %v1414 = vadd.f32 %v1257, %v1408
    %v1415 = vadd.f32 %v1258, %v1411
    %v1416 = vld [vmem:[%s15] sm:$0x1]
    %v1417 = vld [vmem:[%s16] sm:$0x1]
    %v1418 = vsel %vm185, %v1414, 0.0
    %1419 = vadd.xlane.f32.xlu0 %v1418
    %v1420 = vpop.xlane.xlu0 %1419
    %v1421 = vsel %vm185, %v1415, 0.0
    %1422 = vadd.xlane.f32.xlu0 %v1421
    %v1423 = vpop.xlane.xlu0 %1422
    %v1424 = vmul.f32 %v1420, %v1222
    %v1425 = vmul.f32 %v1423, %v1222
    %v1426 = vsub.f32 %v1414, %v1424
    %v1427 = vsub.f32 %v1415, %v1425
    %v1428 = vmul.f32 %v1426, %v1426
    %v1429 = vmul.f32 %v1427, %v1427
    %v1430 = vsel %vm185, %v1428, 0.0
    %1431 = vadd.xlane.f32.xlu0 %v1430
    %v1432 = vpop.xlane.xlu0 %1431
    %v1433 = vsel %vm185, %v1429, 0.0
    %1434 = vadd.xlane.f32.xlu0 %v1433
    %v1435 = vpop.xlane.xlu0 %1434
    %v1436 = vmul.f32 %v1432, %v1222
    %v1437 = vmul.f32 %v1435, %v1222
    %v1438 = vadd.f32 %v1436, 1e-05
    %v1439 = vadd.f32 %v1437, 1e-05
    %v1440 = vrsqrt.pop %v1438
    %v1441 = vrsqrt.pop %v1439
    %v1442 = vmul.f32 %v1426, %v1440
    %v1443 = vmul.f32 %v1427, %v1441
    %v1445 = vlaneseq
    %v1446 = vshrl.u32 %v1445, 7
    %v1447 = vsub.s32 0, %v1446
    %v1448 = vrot.slane %v1416, %v1447
    %v1450 = vmul.f32 %v1442, %v1448
    %v1451 = vmul.f32 %v1443, %v1448
    %v1453 = vlaneseq
    %v1454 = vshrl.u32 %v1453, 7
    %v1455 = vsub.s32 0, %v1454
    %v1456 = vrot.slane %v1417, %v1455
    %v1458 = vadd.f32 %v1450, %v1456
    %v1459 = vadd.f32 %v1451, %v1456
    %v1460 = vpack.c.bf16 %v1459, %v1458
    %s1461 = scalar_lea.vmem %s5, 16
    %v1462 = vld [vmem:[%s1461] sm:$0xf]
    %v1463 = vld [vmem:[%s1461 + $0x4] sm:$0xf]
    %v1464 = vld [vmem:[%s1461 + $0x8] sm:$0xf]
    %v1465 = vld [vmem:[%s1461 + $0xc] sm:$0xf]
    %s1466 = scalar_lea.vmem %s6, 1
    %v1467 = vld [vmem:[%s1466] sm:$0x1]
    %v1469 = vlaneseq
    %v1470 = vshrl.u32 %v1469, 7
    %v1471 = vsub.s32 0, %v1470
    %v1472 = vrot.slane %v1467, %v1471
    %v1478 = vunpack.c.l.b16 %v1462
    %v1479 = vunpack.c.l.b16 %v1463
    %v1480 = vunpack.c.l.b16 %v1464
    %v1481 = vunpack.c.l.b16 %v1465
    %v1482 = vpack.c.b16 %v1479, %v1478
    %v1483 = vpack.c.b16 %v1481, %v1480
    %v1487 = vsel %vm185, %v1460, 0
    %1489 = vmatprep.subr.bf16.mxu0 0
    %1490 = vmatpush1.bf16.msra.mxu0 %v1482
    %1491 = vmatprep.subr.bf16.mxu0 0
    %1492 = vmatpush1.bf16.msra.mxu0 %v1483
    %1493 = vmatprep.subr.bf16.mxu0 0
    %1494 = vmatpush1.bf16.msra.mxu0 0
    %1495 = vmatprep.subr.bf16.mxu0 0
    %1496 = vmatpush1.bf16.msra.mxu0 0
    %1497 = vmatprep.subr.bf16.mxu0 0
    %1498 = vmatpush1.bf16.msra.mxu0 0
    %1499 = vmatprep.subr.bf16.mxu0 0
    %1500 = vmatpush1.bf16.msra.mxu0 0
    %1501 = vmatprep.subr.bf16.mxu0 0
    %1502 = vmatpush1.bf16.msra.mxu0 0
    %1503 = vmatprep.subr.bf16.mxu0 0
    %1504 = vmatpush1.bf16.msra.mxu0 0
    %1505 = vmatprep.subr.bf16.mxu0 0
    %1506 = vmatpush1.bf16.msra.mxu0 0
    %1507 = vmatprep.subr.bf16.mxu0 0
    %1508 = vmatpush1.bf16.msra.mxu0 0
    %1509 = vmatprep.subr.bf16.mxu0 0
    %1510 = vmatpush1.bf16.msra.mxu0 0
    %1511 = vmatprep.subr.bf16.mxu0 0
    %1512 = vmatpush1.bf16.msra.mxu0 0
    %1513 = vmatprep.subr.bf16.mxu0 0
    %1514 = vmatpush1.bf16.msra.mxu0 0
    %1515 = vmatprep.subr.bf16.mxu0 0
    %1516 = vmatpush1.bf16.msra.mxu0 0
    %1517 = vmatprep.subr.bf16.mxu0 0
    %1518 = vmatpush1.bf16.msra.mxu0 0
    %1519 = vmatprep.subr.bf16.mxu0 0
    %1520 = vmatpush1.bf16.msra.mxu0 0
    %1521 = vmatprep.mubr.bf16.mxu0 0
    %1522 = vmatmul.mubr.bf16.gmra.mrb[0].mxu0 %v1487
    %v1523 = vpop.f32.mrb[0].mxu0
    %v1524 = vadd.f32 %v1472, %v1523
    %v1525 = vpop.f32.mrb[0].mxu0
    %v1526 = vpop.f32.mrb[0].mxu0
    %v1527 = vadd.f32 %v1472, %v1526
    %v1528 = vpop.f32.mrb[0].mxu0
    %1529 = vdwg.mxu0
    %v1530 = vpack.c.bf16 %v1524, %v1524
    %v1531 = vpack.c.bf16 %v1527, %v1527
    %1533 = vrot.lane.b32.xlu0 %v1530, 96
    %v1534 = vpop.permute.xlu0 %1533
    %v1536 = vsel %vm235, %v1530, 0
    %v1539 = vsel %vm235, %v1534, 0
    %1541 = vmatprep.subr.bf16.mxu0 0
    %1542 = vmatpush1.bf16.xpose.msra.mxu0 %v1539
    %1543 = vmatprep.subr.bf16.mxu0 0
    %1544 = vmatpush1.bf16.xpose.msra.mxu0 0
    %1545 = vmatprep.subr.bf16.mxu0 0
    %1546 = vmatpush1.bf16.xpose.msra.mxu0 0
    %1547 = vmatprep.subr.bf16.mxu0 0
    %1548 = vmatpush1.bf16.xpose.msra.mxu0 0
    %1549 = vmatprep.subr.bf16.mxu0 0
    %1550 = vmatpush1.bf16.xpose.msra.mxu0 0
    %1551 = vmatprep.subr.bf16.mxu0 0
    %1552 = vmatpush1.bf16.xpose.msra.mxu0 0
    %1553 = vmatprep.subr.bf16.mxu0 0
    %1554 = vmatpush1.bf16.xpose.msra.mxu0 0
    %1555 = vmatprep.subr.bf16.mxu0 0
    %1556 = vmatpush1.bf16.xpose.msra.mxu0 0
    %1557 = vmatprep.subr.bf16.mxu0 0
    %1558 = vmatpush1.bf16.xpose.msra.mxu0 0
    %1559 = vmatprep.subr.bf16.mxu0 0
    %1560 = vmatpush1.bf16.xpose.msra.mxu0 0
    %1561 = vmatprep.subr.bf16.mxu0 0
    %1562 = vmatpush1.bf16.xpose.msra.mxu0 0
    %1563 = vmatprep.subr.bf16.mxu0 0
    %1564 = vmatpush1.bf16.xpose.msra.mxu0 0
    %1565 = vmatprep.subr.bf16.mxu0 0
    %1566 = vmatpush1.bf16.xpose.msra.mxu0 0
    %1567 = vmatprep.subr.bf16.mxu0 0
    %1568 = vmatpush1.bf16.xpose.msra.mxu0 0
    %1569 = vmatprep.subr.bf16.mxu0 0
    %1570 = vmatpush1.bf16.xpose.msra.mxu0 0
    %1571 = vmatprep.subr.bf16.mxu0 0
    %1572 = vmatpush1.bf16.xpose.msra.mxu0 0
    %1573 = vmatprep.mubr.bf16.mxu0 0
    %1574 = vmatmul.mubr.bf16.gmra.mrb[0].mxu0 %v1536
    %v1575 = vpop.f32.mrb[0].mxu0
    %v1576 = vadd.f32 %v98, %v1575
    %v1577 = vpop.f32.mrb[0].mxu0
    %v1578 = vpop.f32.mrb[0].mxu0
    %v1579 = vpop.f32.mrb[0].mxu0
    %1580 = vdwg.mxu0
    %1582 = vrot.lane.b32.xlu0 %v1531, 96
    %v1583 = vpop.permute.xlu0 %1582
    %v1585 = vsel %vm235, %v1531, 0
    %v1588 = vsel %vm235, %v1583, 0
    %1590 = vmatprep.subr.bf16.mxu0 0
    %1591 = vmatpush1.bf16.xpose.msra.mxu0 %v1588
    %1592 = vmatprep.subr.bf16.mxu0 0
    %1593 = vmatpush1.bf16.xpose.msra.mxu0 0
    %1594 = vmatprep.subr.bf16.mxu0 0
    %1595 = vmatpush1.bf16.xpose.msra.mxu0 0
    %1596 = vmatprep.subr.bf16.mxu0 0
    %1597 = vmatpush1.bf16.xpose.msra.mxu0 0
    %1598 = vmatprep.subr.bf16.mxu0 0
    %1599 = vmatpush1.bf16.xpose.msra.mxu0 0
    %1600 = vmatprep.subr.bf16.mxu0 0
    %1601 = vmatpush1.bf16.xpose.msra.mxu0 0
    %1602 = vmatprep.subr.bf16.mxu0 0
    %1603 = vmatpush1.bf16.xpose.msra.mxu0 0
    %1604 = vmatprep.subr.bf16.mxu0 0
    %1605 = vmatpush1.bf16.xpose.msra.mxu0 0
    %1606 = vmatprep.subr.bf16.mxu0 0
    %1607 = vmatpush1.bf16.xpose.msra.mxu0 0
    %1608 = vmatprep.subr.bf16.mxu0 0
    %1609 = vmatpush1.bf16.xpose.msra.mxu0 0
    %1610 = vmatprep.subr.bf16.mxu0 0
    %1611 = vmatpush1.bf16.xpose.msra.mxu0 0
    %1612 = vmatprep.subr.bf16.mxu0 0
    %1613 = vmatpush1.bf16.xpose.msra.mxu0 0
    %1614 = vmatprep.subr.bf16.mxu0 0
    %1615 = vmatpush1.bf16.xpose.msra.mxu0 0
    %1616 = vmatprep.subr.bf16.mxu0 0
    %1617 = vmatpush1.bf16.xpose.msra.mxu0 0
    %1618 = vmatprep.subr.bf16.mxu0 0
    %1619 = vmatpush1.bf16.xpose.msra.mxu0 0
    %1620 = vmatprep.subr.bf16.mxu0 0
    %1621 = vmatpush1.bf16.xpose.msra.mxu0 0
    %1622 = vmatprep.mubr.bf16.mxu0 0
    %1623 = vmatmul.mubr.bf16.gmra.mrb[0].mxu0 %v1585
    %v1624 = vpop.f32.mrb[0].mxu0
    %v1625 = vadd.f32 %v98, %v1624
    %v1626 = vpop.f32.mrb[0].mxu0
    %v1627 = vpop.f32.mrb[0].mxu0
    %v1628 = vpop.f32.mrb[0].mxu0
    %1629 = vdwg.mxu0
    %v1630 = vsel %vm235, %v1576, -inf
    %1631 = vmax.xlane.f32.xlu0 %v1630
    %v1632 = vpop.xlane.xlu0 %1631
    %v1633 = vsel %vm235, %v1625, -inf
    %1634 = vmax.xlane.f32.xlu0 %v1633
    %v1635 = vpop.xlane.xlu0 %1634
    %v1636 = vsub.f32 %v1576, %v1632
    %v1637 = vsub.f32 %v1625, %v1635
    %v1638 = vmul.f32 %v1636, 1.442695
    %v1639 = vpow.pop %v1638
    %v1640 = vmul.f32 %v1637, 1.442695
    %v1641 = vpow.pop %v1640
    %v1642 = vsel %vm235, %v1639, 0.0
    %1643 = vadd.xlane.f32.xlu0 %v1642
    %v1644 = vpop.xlane.xlu0 %1643
    %v1645 = vsel %vm235, %v1641, 0.0
    %1646 = vadd.xlane.f32.xlu0 %v1645
    %v1647 = vpop.xlane.xlu0 %1646
    %v1648 = vrcp.pop %v1644
    %v1649 = vrcp.pop %v1647
    %v1650 = vmul.f32 %v1639, %v1648
    %v1651 = vmul.f32 %v1641, %v1649
    %v1652 = vpack.c.bf16 %v1650, %v1650
    %v1653 = vpack.c.bf16 %v1651, %v1651
    %1654 = vrot.lane.b32.xlu0 %v1530, 64
    %v1655 = vpop.permute.xlu0 %1654
    %v1657 = vsel %vm235, %v1652, 0
    %v1660 = vsel %vm360, %v1655, 0
    %1662 = vmatprep.subr.bf16.mxu0 0
    %1663 = vmatpush1.bf16.msra.mxu0 %v1660
    %1664 = vmatprep.subr.bf16.mxu0 0
    %1665 = vmatpush1.bf16.msra.mxu0 0
    %1666 = vmatprep.subr.bf16.mxu0 0
    %1667 = vmatpush1.bf16.msra.mxu0 0
    %1668 = vmatprep.subr.bf16.mxu0 0
    %1669 = vmatpush1.bf16.msra.mxu0 0
    %1670 = vmatprep.subr.bf16.mxu0 0
    %1671 = vmatpush1.bf16.msra.mxu0 0
    %1672 = vmatprep.subr.bf16.mxu0 0
    %1673 = vmatpush1.bf16.msra.mxu0 0
    %1674 = vmatprep.subr.bf16.mxu0 0
    %1675 = vmatpush1.bf16.msra.mxu0 0
    %1676 = vmatprep.subr.bf16.mxu0 0
    %1677 = vmatpush1.bf16.msra.mxu0 0
    %1678 = vmatprep.subr.bf16.mxu0 0
    %1679 = vmatpush1.bf16.msra.mxu0 0
    %1680 = vmatprep.subr.bf16.mxu0 0
    %1681 = vmatpush1.bf16.msra.mxu0 0
    %1682 = vmatprep.subr.bf16.mxu0 0
    %1683 = vmatpush1.bf16.msra.mxu0 0
    %1684 = vmatprep.subr.bf16.mxu0 0
    %1685 = vmatpush1.bf16.msra.mxu0 0
    %1686 = vmatprep.subr.bf16.mxu0 0
    %1687 = vmatpush1.bf16.msra.mxu0 0
    %1688 = vmatprep.subr.bf16.mxu0 0
    %1689 = vmatpush1.bf16.msra.mxu0 0
    %1690 = vmatprep.subr.bf16.mxu0 0
    %1691 = vmatpush1.bf16.msra.mxu0 0
    %1692 = vmatprep.subr.bf16.mxu0 0
    %1693 = vmatpush1.bf16.msra.mxu0 0
    %1694 = vmatprep.mubr.bf16.mxu0 0
    %1695 = vmatmul.mubr.bf16.gmra.mrb[0].mxu0 %v1657
    %v1696 = vpop.f32.mrb[0].mxu0
    %v1697 = vadd.f32 0.0, %v1696
    %v1698 = vpop.f32.mrb[0].mxu0
    %v1699 = vpop.f32.mrb[0].mxu0
    %v1700 = vpop.f32.mrb[0].mxu0
    %1701 = vdwg.mxu0
    %1702 = vrot.lane.b32.xlu0 %v1531, 64
    %v1703 = vpop.permute.xlu0 %1702
    %v1705 = vsel %vm235, %v1653, 0
    %v1708 = vsel %vm360, %v1703, 0
    %1710 = vmatprep.subr.bf16.mxu0 0
    %1711 = vmatpush1.bf16.msra.mxu0 %v1708
    %1712 = vmatprep.subr.bf16.mxu0 0
    %1713 = vmatpush1.bf16.msra.mxu0 0
    %1714 = vmatprep.subr.bf16.mxu0 0
    %1715 = vmatpush1.bf16.msra.mxu0 0
    %1716 = vmatprep.subr.bf16.mxu0 0
    %1717 = vmatpush1.bf16.msra.mxu0 0
    %1718 = vmatprep.subr.bf16.mxu0 0
    %1719 = vmatpush1.bf16.msra.mxu0 0
    %1720 = vmatprep.subr.bf16.mxu0 0
    %1721 = vmatpush1.bf16.msra.mxu0 0
    %1722 = vmatprep.subr.bf16.mxu0 0
    %1723 = vmatpush1.bf16.msra.mxu0 0
    %1724 = vmatprep.subr.bf16.mxu0 0
    %1725 = vmatpush1.bf16.msra.mxu0 0
    %1726 = vmatprep.subr.bf16.mxu0 0
    %1727 = vmatpush1.bf16.msra.mxu0 0
    %1728 = vmatprep.subr.bf16.mxu0 0
    %1729 = vmatpush1.bf16.msra.mxu0 0
    %1730 = vmatprep.subr.bf16.mxu0 0
    %1731 = vmatpush1.bf16.msra.mxu0 0
    %1732 = vmatprep.subr.bf16.mxu0 0
    %1733 = vmatpush1.bf16.msra.mxu0 0
    %1734 = vmatprep.subr.bf16.mxu0 0
    %1735 = vmatpush1.bf16.msra.mxu0 0
    %1736 = vmatprep.subr.bf16.mxu0 0
    %1737 = vmatpush1.bf16.msra.mxu0 0
    %1738 = vmatprep.subr.bf16.mxu0 0
    %1739 = vmatpush1.bf16.msra.mxu0 0
    %1740 = vmatprep.subr.bf16.mxu0 0
    %1741 = vmatpush1.bf16.msra.mxu0 0
    %1742 = vmatprep.mubr.bf16.mxu0 0
    %1743 = vmatmul.mubr.bf16.gmra.mrb[0].mxu0 %v1705
    %v1744 = vpop.f32.mrb[0].mxu0
    %v1745 = vadd.f32 0.0, %v1744
    %v1746 = vpop.f32.mrb[0].mxu0
    %v1747 = vpop.f32.mrb[0].mxu0
    %v1748 = vpop.f32.mrb[0].mxu0
    %1749 = vdwg.mxu0
    %1750 = vrot.lane.b32.xlu0 %v1530, 120
    %v1751 = vpop.permute.xlu0 %1750
    %1752 = vrot.lane.b32.xlu0 %v1530, 88
    %v1753 = vpop.permute.xlu0 %1752
    %v1755 = vsel %vm235, %v1751, 0
    %v1758 = vsel %vm235, %v1753, 0
    %1760 = vmatprep.subr.bf16.mxu0 0
    %1761 = vmatpush1.bf16.xpose.msra.mxu0 %v1758
    %1762 = vmatprep.subr.bf16.mxu0 0
    %1763 = vmatpush1.bf16.xpose.msra.mxu0 0
    %1764 = vmatprep.subr.bf16.mxu0 0
    %1765 = vmatpush1.bf16.xpose.msra.mxu0 0
    %1766 = vmatprep.subr.bf16.mxu0 0
    %1767 = vmatpush1.bf16.xpose.msra.mxu0 0
    %1768 = vmatprep.subr.bf16.mxu0 0
    %1769 = vmatpush1.bf16.xpose.msra.mxu0 0
    %1770 = vmatprep.subr.bf16.mxu0 0
    %1771 = vmatpush1.bf16.xpose.msra.mxu0 0
    %1772 = vmatprep.subr.bf16.mxu0 0
    %1773 = vmatpush1.bf16.xpose.msra.mxu0 0
    %1774 = vmatprep.subr.bf16.mxu0 0
    %1775 = vmatpush1.bf16.xpose.msra.mxu0 0
    %1776 = vmatprep.subr.bf16.mxu0 0
    %1777 = vmatpush1.bf16.xpose.msra.mxu0 0
    %1778 = vmatprep.subr.bf16.mxu0 0
    %1779 = vmatpush1.bf16.xpose.msra.mxu0 0
    %1780 = vmatprep.subr.bf16.mxu0 0
    %1781 = vmatpush1.bf16.xpose.msra.mxu0 0
    %1782 = vmatprep.subr.bf16.mxu0 0
    %1783 = vmatpush1.bf16.xpose.msra.mxu0 0
    %1784 = vmatprep.subr.bf16.mxu0 0
    %1785 = vmatpush1.bf16.xpose.msra.mxu0 0
    %1786 = vmatprep.subr.bf16.mxu0 0
    %1787 = vmatpush1.bf16.xpose.msra.mxu0 0
    %1788 = vmatprep.subr.bf16.mxu0 0
    %1789 = vmatpush1.bf16.xpose.msra.mxu0 0
    %1790 = vmatprep.subr.bf16.mxu0 0
    %1791 = vmatpush1.bf16.xpose.msra.mxu0 0
    %1792 = vmatprep.mubr.bf16.mxu0 0
    %1793 = vmatmul.mubr.bf16.gmra.mrb[0].mxu0 %v1755
    %v1794 = vpop.f32.mrb[0].mxu0
    %v1795 = vadd.f32 %v98, %v1794
    %v1796 = vpop.f32.mrb[0].mxu0
    %v1797 = vpop.f32.mrb[0].mxu0
    %v1798 = vpop.f32.mrb[0].mxu0
    %1799 = vdwg.mxu0
    %1800 = vrot.lane.b32.xlu0 %v1531, 120
    %v1801 = vpop.permute.xlu0 %1800
    %1802 = vrot.lane.b32.xlu0 %v1531, 88
    %v1803 = vpop.permute.xlu0 %1802
    %v1805 = vsel %vm235, %v1801, 0
    %v1808 = vsel %vm235, %v1803, 0
    %1810 = vmatprep.subr.bf16.mxu0 0
    %1811 = vmatpush1.bf16.xpose.msra.mxu0 %v1808
    %1812 = vmatprep.subr.bf16.mxu0 0
    %1813 = vmatpush1.bf16.xpose.msra.mxu0 0
    %1814 = vmatprep.subr.bf16.mxu0 0
    %1815 = vmatpush1.bf16.xpose.msra.mxu0 0
    %1816 = vmatprep.subr.bf16.mxu0 0
    %1817 = vmatpush1.bf16.xpose.msra.mxu0 0
    %1818 = vmatprep.subr.bf16.mxu0 0
    %1819 = vmatpush1.bf16.xpose.msra.mxu0 0
    %1820 = vmatprep.subr.bf16.mxu0 0
    %1821 = vmatpush1.bf16.xpose.msra.mxu0 0
    %1822 = vmatprep.subr.bf16.mxu0 0
    %1823 = vmatpush1.bf16.xpose.msra.mxu0 0
    %1824 = vmatprep.subr.bf16.mxu0 0
    %1825 = vmatpush1.bf16.xpose.msra.mxu0 0
    %1826 = vmatprep.subr.bf16.mxu0 0
    %1827 = vmatpush1.bf16.xpose.msra.mxu0 0
    %1828 = vmatprep.subr.bf16.mxu0 0
    %1829 = vmatpush1.bf16.xpose.msra.mxu0 0
    %1830 = vmatprep.subr.bf16.mxu0 0
    %1831 = vmatpush1.bf16.xpose.msra.mxu0 0
    %1832 = vmatprep.subr.bf16.mxu0 0
    %1833 = vmatpush1.bf16.xpose.msra.mxu0 0
    %1834 = vmatprep.subr.bf16.mxu0 0
    %1835 = vmatpush1.bf16.xpose.msra.mxu0 0
    %1836 = vmatprep.subr.bf16.mxu0 0
    %1837 = vmatpush1.bf16.xpose.msra.mxu0 0
    %1838 = vmatprep.subr.bf16.mxu0 0
    %1839 = vmatpush1.bf16.xpose.msra.mxu0 0
    %1840 = vmatprep.subr.bf16.mxu0 0
    %1841 = vmatpush1.bf16.xpose.msra.mxu0 0
    %1842 = vmatprep.mubr.bf16.mxu0 0
    %1843 = vmatmul.mubr.bf16.gmra.mrb[0].mxu0 %v1805
    %v1844 = vpop.f32.mrb[0].mxu0
    %v1845 = vadd.f32 %v98, %v1844
    %v1846 = vpop.f32.mrb[0].mxu0
    %v1847 = vpop.f32.mrb[0].mxu0
    %v1848 = vpop.f32.mrb[0].mxu0
    %1849 = vdwg.mxu0
    %v1850 = vsel %vm235, %v1795, -inf
    %1851 = vmax.xlane.f32.xlu0 %v1850
    %v1852 = vpop.xlane.xlu0 %1851
    %v1853 = vsel %vm235, %v1845, -inf
    %1854 = vmax.xlane.f32.xlu0 %v1853
    %v1855 = vpop.xlane.xlu0 %1854
    %v1856 = vsub.f32 %v1795, %v1852
    %v1857 = vsub.f32 %v1845, %v1855
    %v1858 = vmul.f32 %v1856, 1.442695
    %v1859 = vpow.pop %v1858
    %v1860 = vmul.f32 %v1857, 1.442695
    %v1861 = vpow.pop %v1860
    %v1862 = vsel %vm235, %v1859, 0.0
    %1863 = vadd.xlane.f32.xlu0 %v1862
    %v1864 = vpop.xlane.xlu0 %1863
    %v1865 = vsel %vm235, %v1861, 0.0
    %1866 = vadd.xlane.f32.xlu0 %v1865
    %v1867 = vpop.xlane.xlu0 %1866
    %v1868 = vrcp.pop %v1864
    %v1869 = vrcp.pop %v1867
    %v1870 = vmul.f32 %v1859, %v1868
    %v1871 = vmul.f32 %v1861, %v1869
    %v1872 = vpack.c.bf16 %v1870, %v1870
    %v1873 = vpack.c.bf16 %v1871, %v1871
    %1874 = vrot.lane.b32.xlu0 %v1530, 56
    %v1875 = vpop.permute.xlu0 %1874
    %v1877 = vsel %vm235, %v1872, 0
    %v1880 = vsel %vm360, %v1875, 0
    %1882 = vmatprep.subr.bf16.mxu0 0
    %1883 = vmatpush1.bf16.msra.mxu0 %v1880
    %1884 = vmatprep.subr.bf16.mxu0 0
    %1885 = vmatpush1.bf16.msra.mxu0 0
    %1886 = vmatprep.subr.bf16.mxu0 0
    %1887 = vmatpush1.bf16.msra.mxu0 0
    %1888 = vmatprep.subr.bf16.mxu0 0
    %1889 = vmatpush1.bf16.msra.mxu0 0
    %1890 = vmatprep.subr.bf16.mxu0 0
    %1891 = vmatpush1.bf16.msra.mxu0 0
    %1892 = vmatprep.subr.bf16.mxu0 0
    %1893 = vmatpush1.bf16.msra.mxu0 0
    %1894 = vmatprep.subr.bf16.mxu0 0
    %1895 = vmatpush1.bf16.msra.mxu0 0
    %1896 = vmatprep.subr.bf16.mxu0 0
    %1897 = vmatpush1.bf16.msra.mxu0 0
    %1898 = vmatprep.subr.bf16.mxu0 0
    %1899 = vmatpush1.bf16.msra.mxu0 0
    %1900 = vmatprep.subr.bf16.mxu0 0
    %1901 = vmatpush1.bf16.msra.mxu0 0
    %1902 = vmatprep.subr.bf16.mxu0 0
    %1903 = vmatpush1.bf16.msra.mxu0 0
    %1904 = vmatprep.subr.bf16.mxu0 0
    %1905 = vmatpush1.bf16.msra.mxu0 0
    %1906 = vmatprep.subr.bf16.mxu0 0
    %1907 = vmatpush1.bf16.msra.mxu0 0
    %1908 = vmatprep.subr.bf16.mxu0 0
    %1909 = vmatpush1.bf16.msra.mxu0 0
    %1910 = vmatprep.subr.bf16.mxu0 0
    %1911 = vmatpush1.bf16.msra.mxu0 0
    %1912 = vmatprep.subr.bf16.mxu0 0
    %1913 = vmatpush1.bf16.msra.mxu0 0
    %1914 = vmatprep.mubr.bf16.mxu0 0
    %1915 = vmatmul.mubr.bf16.gmra.mrb[0].mxu0 %v1877
    %v1916 = vpop.f32.mrb[0].mxu0
    %v1917 = vadd.f32 0.0, %v1916
    %v1918 = vpop.f32.mrb[0].mxu0
    %v1919 = vpop.f32.mrb[0].mxu0
    %v1920 = vpop.f32.mrb[0].mxu0
    %1921 = vdwg.mxu0
    %1922 = vrot.lane.b32.xlu0 %v1531, 56
    %v1923 = vpop.permute.xlu0 %1922
    %v1925 = vsel %vm235, %v1873, 0
    %v1928 = vsel %vm360, %v1923, 0
    %1930 = vmatprep.subr.bf16.mxu0 0
    %1931 = vmatpush1.bf16.msra.mxu0 %v1928
    %1932 = vmatprep.subr.bf16.mxu0 0
    %1933 = vmatpush1.bf16.msra.mxu0 0
    %1934 = vmatprep.subr.bf16.mxu0 0
    %1935 = vmatpush1.bf16.msra.mxu0 0
    %1936 = vmatprep.subr.bf16.mxu0 0
    %1937 = vmatpush1.bf16.msra.mxu0 0
    %1938 = vmatprep.subr.bf16.mxu0 0
    %1939 = vmatpush1.bf16.msra.mxu0 0
    %1940 = vmatprep.subr.bf16.mxu0 0
    %1941 = vmatpush1.bf16.msra.mxu0 0
    %1942 = vmatprep.subr.bf16.mxu0 0
    %1943 = vmatpush1.bf16.msra.mxu0 0
    %1944 = vmatprep.subr.bf16.mxu0 0
    %1945 = vmatpush1.bf16.msra.mxu0 0
    %1946 = vmatprep.subr.bf16.mxu0 0
    %1947 = vmatpush1.bf16.msra.mxu0 0
    %1948 = vmatprep.subr.bf16.mxu0 0
    %1949 = vmatpush1.bf16.msra.mxu0 0
    %1950 = vmatprep.subr.bf16.mxu0 0
    %1951 = vmatpush1.bf16.msra.mxu0 0
    %1952 = vmatprep.subr.bf16.mxu0 0
    %1953 = vmatpush1.bf16.msra.mxu0 0
    %1954 = vmatprep.subr.bf16.mxu0 0
    %1955 = vmatpush1.bf16.msra.mxu0 0
    %1956 = vmatprep.subr.bf16.mxu0 0
    %1957 = vmatpush1.bf16.msra.mxu0 0
    %1958 = vmatprep.subr.bf16.mxu0 0
    %1959 = vmatpush1.bf16.msra.mxu0 0
    %1960 = vmatprep.subr.bf16.mxu0 0
    %1961 = vmatpush1.bf16.msra.mxu0 0
    %1962 = vmatprep.mubr.bf16.mxu0 0
    %1963 = vmatmul.mubr.bf16.gmra.mrb[0].mxu0 %v1925
    %v1964 = vpop.f32.mrb[0].mxu0
    %v1965 = vadd.f32 0.0, %v1964
    %v1966 = vpop.f32.mrb[0].mxu0
    %v1967 = vpop.f32.mrb[0].mxu0
    %v1968 = vpop.f32.mrb[0].mxu0
    %1969 = vdwg.mxu0
    %1970 = vrot.lane.b32.xlu0 %v1530, 112
    %v1971 = vpop.permute.xlu0 %1970
    %1972 = vrot.lane.b32.xlu0 %v1530, 80
    %v1973 = vpop.permute.xlu0 %1972
    %v1975 = vsel %vm235, %v1971, 0
    %v1978 = vsel %vm235, %v1973, 0
    %1980 = vmatprep.subr.bf16.mxu0 0
    %1981 = vmatpush1.bf16.xpose.msra.mxu0 %v1978
    %1982 = vmatprep.subr.bf16.mxu0 0
    %1983 = vmatpush1.bf16.xpose.msra.mxu0 0
    %1984 = vmatprep.subr.bf16.mxu0 0
    %1985 = vmatpush1.bf16.xpose.msra.mxu0 0
    %1986 = vmatprep.subr.bf16.mxu0 0
    %1987 = vmatpush1.bf16.xpose.msra.mxu0 0
    %1988 = vmatprep.subr.bf16.mxu0 0
    %1989 = vmatpush1.bf16.xpose.msra.mxu0 0
    %1990 = vmatprep.subr.bf16.mxu0 0
    %1991 = vmatpush1.bf16.xpose.msra.mxu0 0
    %1992 = vmatprep.subr.bf16.mxu0 0
    %1993 = vmatpush1.bf16.xpose.msra.mxu0 0
    %1994 = vmatprep.subr.bf16.mxu0 0
    %1995 = vmatpush1.bf16.xpose.msra.mxu0 0
    %1996 = vmatprep.subr.bf16.mxu0 0
    %1997 = vmatpush1.bf16.xpose.msra.mxu0 0
    %1998 = vmatprep.subr.bf16.mxu0 0
    %1999 = vmatpush1.bf16.xpose.msra.mxu0 0
    %2000 = vmatprep.subr.bf16.mxu0 0
    %2001 = vmatpush1.bf16.xpose.msra.mxu0 0
    %2002 = vmatprep.subr.bf16.mxu0 0
    %2003 = vmatpush1.bf16.xpose.msra.mxu0 0
    %2004 = vmatprep.subr.bf16.mxu0 0
    %2005 = vmatpush1.bf16.xpose.msra.mxu0 0
    %2006 = vmatprep.subr.bf16.mxu0 0
    %2007 = vmatpush1.bf16.xpose.msra.mxu0 0
    %2008 = vmatprep.subr.bf16.mxu0 0
    %2009 = vmatpush1.bf16.xpose.msra.mxu0 0
    %2010 = vmatprep.subr.bf16.mxu0 0
    %2011 = vmatpush1.bf16.xpose.msra.mxu0 0
    %2012 = vmatprep.mubr.bf16.mxu0 0
    %2013 = vmatmul.mubr.bf16.gmra.mrb[0].mxu0 %v1975
    %v2014 = vpop.f32.mrb[0].mxu0
    %v2015 = vadd.f32 %v98, %v2014
    %v2016 = vpop.f32.mrb[0].mxu0
    %v2017 = vpop.f32.mrb[0].mxu0
    %v2018 = vpop.f32.mrb[0].mxu0
    %2019 = vdwg.mxu0
    %2020 = vrot.lane.b32.xlu0 %v1531, 112
    %v2021 = vpop.permute.xlu0 %2020
    %2022 = vrot.lane.b32.xlu0 %v1531, 80
    %v2023 = vpop.permute.xlu0 %2022
    %v2025 = vsel %vm235, %v2021, 0
    %v2028 = vsel %vm235, %v2023, 0
    %2030 = vmatprep.subr.bf16.mxu0 0
    %2031 = vmatpush1.bf16.xpose.msra.mxu0 %v2028
    %2032 = vmatprep.subr.bf16.mxu0 0
    %2033 = vmatpush1.bf16.xpose.msra.mxu0 0
    %2034 = vmatprep.subr.bf16.mxu0 0
    %2035 = vmatpush1.bf16.xpose.msra.mxu0 0
    %2036 = vmatprep.subr.bf16.mxu0 0
    %2037 = vmatpush1.bf16.xpose.msra.mxu0 0
    %2038 = vmatprep.subr.bf16.mxu0 0
    %2039 = vmatpush1.bf16.xpose.msra.mxu0 0
    %2040 = vmatprep.subr.bf16.mxu0 0
    %2041 = vmatpush1.bf16.xpose.msra.mxu0 0
    %2042 = vmatprep.subr.bf16.mxu0 0
    %2043 = vmatpush1.bf16.xpose.msra.mxu0 0
    %2044 = vmatprep.subr.bf16.mxu0 0
    %2045 = vmatpush1.bf16.xpose.msra.mxu0 0
    %2046 = vmatprep.subr.bf16.mxu0 0
    %2047 = vmatpush1.bf16.xpose.msra.mxu0 0
    %2048 = vmatprep.subr.bf16.mxu0 0
    %2049 = vmatpush1.bf16.xpose.msra.mxu0 0
    %2050 = vmatprep.subr.bf16.mxu0 0
    %2051 = vmatpush1.bf16.xpose.msra.mxu0 0
    %2052 = vmatprep.subr.bf16.mxu0 0
    %2053 = vmatpush1.bf16.xpose.msra.mxu0 0
    %2054 = vmatprep.subr.bf16.mxu0 0
    %2055 = vmatpush1.bf16.xpose.msra.mxu0 0
    %2056 = vmatprep.subr.bf16.mxu0 0
    %2057 = vmatpush1.bf16.xpose.msra.mxu0 0
    %2058 = vmatprep.subr.bf16.mxu0 0
    %2059 = vmatpush1.bf16.xpose.msra.mxu0 0
    %2060 = vmatprep.subr.bf16.mxu0 0
    %2061 = vmatpush1.bf16.xpose.msra.mxu0 0
    %2062 = vmatprep.mubr.bf16.mxu0 0
    %2063 = vmatmul.mubr.bf16.gmra.mrb[0].mxu0 %v2025
    %v2064 = vpop.f32.mrb[0].mxu0
    %v2065 = vadd.f32 %v98, %v2064
    %v2066 = vpop.f32.mrb[0].mxu0
    %v2067 = vpop.f32.mrb[0].mxu0
    %v2068 = vpop.f32.mrb[0].mxu0
    %2069 = vdwg.mxu0
    %v2070 = vsel %vm235, %v2015, -inf
    %2071 = vmax.xlane.f32.xlu0 %v2070
    %v2072 = vpop.xlane.xlu0 %2071
    %v2073 = vsel %vm235, %v2065, -inf
    %2074 = vmax.xlane.f32.xlu0 %v2073
    %v2075 = vpop.xlane.xlu0 %2074
    %v2076 = vsub.f32 %v2015, %v2072
    %v2077 = vsub.f32 %v2065, %v2075
    %v2078 = vmul.f32 %v2076, 1.442695
    %v2079 = vpow.pop %v2078
    %v2080 = vmul.f32 %v2077, 1.442695
    %v2081 = vpow.pop %v2080
    %v2082 = vsel %vm235, %v2079, 0.0
    %2083 = vadd.xlane.f32.xlu0 %v2082
    %v2084 = vpop.xlane.xlu0 %2083
    %v2085 = vsel %vm235, %v2081, 0.0
    %2086 = vadd.xlane.f32.xlu0 %v2085
    %v2087 = vpop.xlane.xlu0 %2086
    %v2088 = vrcp.pop %v2084
    %v2089 = vrcp.pop %v2087
    %v2090 = vmul.f32 %v2079, %v2088
    %v2091 = vmul.f32 %v2081, %v2089
    %v2092 = vpack.c.bf16 %v2090, %v2090
    %v2093 = vpack.c.bf16 %v2091, %v2091
    %2094 = vrot.lane.b32.xlu0 %v1530, 48
    %v2095 = vpop.permute.xlu0 %2094
    %v2097 = vsel %vm235, %v2092, 0
    %v2100 = vsel %vm360, %v2095, 0
    %2102 = vmatprep.subr.bf16.mxu0 0
    %2103 = vmatpush1.bf16.msra.mxu0 %v2100
    %2104 = vmatprep.subr.bf16.mxu0 0
    %2105 = vmatpush1.bf16.msra.mxu0 0
    %2106 = vmatprep.subr.bf16.mxu0 0
    %2107 = vmatpush1.bf16.msra.mxu0 0
    %2108 = vmatprep.subr.bf16.mxu0 0
    %2109 = vmatpush1.bf16.msra.mxu0 0
    %2110 = vmatprep.subr.bf16.mxu0 0
    %2111 = vmatpush1.bf16.msra.mxu0 0
    %2112 = vmatprep.subr.bf16.mxu0 0
    %2113 = vmatpush1.bf16.msra.mxu0 0
    %2114 = vmatprep.subr.bf16.mxu0 0
    %2115 = vmatpush1.bf16.msra.mxu0 0
    %2116 = vmatprep.subr.bf16.mxu0 0
    %2117 = vmatpush1.bf16.msra.mxu0 0
    %2118 = vmatprep.subr.bf16.mxu0 0
    %2119 = vmatpush1.bf16.msra.mxu0 0
    %2120 = vmatprep.subr.bf16.mxu0 0
    %2121 = vmatpush1.bf16.msra.mxu0 0
    %2122 = vmatprep.subr.bf16.mxu0 0
    %2123 = vmatpush1.bf16.msra.mxu0 0
    %2124 = vmatprep.subr.bf16.mxu0 0
    %2125 = vmatpush1.bf16.msra.mxu0 0
    %2126 = vmatprep.subr.bf16.mxu0 0
    %2127 = vmatpush1.bf16.msra.mxu0 0
    %2128 = vmatprep.subr.bf16.mxu0 0
    %2129 = vmatpush1.bf16.msra.mxu0 0
    %2130 = vmatprep.subr.bf16.mxu0 0
    %2131 = vmatpush1.bf16.msra.mxu0 0
    %2132 = vmatprep.subr.bf16.mxu0 0
    %2133 = vmatpush1.bf16.msra.mxu0 0
    %2134 = vmatprep.mubr.bf16.mxu0 0
    %2135 = vmatmul.mubr.bf16.gmra.mrb[0].mxu0 %v2097
    %v2136 = vpop.f32.mrb[0].mxu0
    %v2137 = vadd.f32 0.0, %v2136
    %v2138 = vpop.f32.mrb[0].mxu0
    %v2139 = vpop.f32.mrb[0].mxu0
    %v2140 = vpop.f32.mrb[0].mxu0
    %2141 = vdwg.mxu0
    %2142 = vrot.lane.b32.xlu0 %v1531, 48
    %v2143 = vpop.permute.xlu0 %2142
    %v2145 = vsel %vm235, %v2093, 0
    %v2148 = vsel %vm360, %v2143, 0
    %2150 = vmatprep.subr.bf16.mxu0 0
    %2151 = vmatpush1.bf16.msra.mxu0 %v2148
    %2152 = vmatprep.subr.bf16.mxu0 0
    %2153 = vmatpush1.bf16.msra.mxu0 0
    %2154 = vmatprep.subr.bf16.mxu0 0
    %2155 = vmatpush1.bf16.msra.mxu0 0
    %2156 = vmatprep.subr.bf16.mxu0 0
    %2157 = vmatpush1.bf16.msra.mxu0 0
    %2158 = vmatprep.subr.bf16.mxu0 0
    %2159 = vmatpush1.bf16.msra.mxu0 0
    %2160 = vmatprep.subr.bf16.mxu0 0
    %2161 = vmatpush1.bf16.msra.mxu0 0
    %2162 = vmatprep.subr.bf16.mxu0 0
    %2163 = vmatpush1.bf16.msra.mxu0 0
    %2164 = vmatprep.subr.bf16.mxu0 0
    %2165 = vmatpush1.bf16.msra.mxu0 0
    %2166 = vmatprep.subr.bf16.mxu0 0
    %2167 = vmatpush1.bf16.msra.mxu0 0
    %2168 = vmatprep.subr.bf16.mxu0 0
    %2169 = vmatpush1.bf16.msra.mxu0 0
    %2170 = vmatprep.subr.bf16.mxu0 0
    %2171 = vmatpush1.bf16.msra.mxu0 0
    %2172 = vmatprep.subr.bf16.mxu0 0
    %2173 = vmatpush1.bf16.msra.mxu0 0
    %2174 = vmatprep.subr.bf16.mxu0 0
    %2175 = vmatpush1.bf16.msra.mxu0 0
    %2176 = vmatprep.subr.bf16.mxu0 0
    %2177 = vmatpush1.bf16.msra.mxu0 0
    %2178 = vmatprep.subr.bf16.mxu0 0
    %2179 = vmatpush1.bf16.msra.mxu0 0
    %2180 = vmatprep.subr.bf16.mxu0 0
    %2181 = vmatpush1.bf16.msra.mxu0 0
    %2182 = vmatprep.mubr.bf16.mxu0 0
    %2183 = vmatmul.mubr.bf16.gmra.mrb[0].mxu0 %v2145
    %v2184 = vpop.f32.mrb[0].mxu0
    %v2185 = vadd.f32 0.0, %v2184
    %v2186 = vpop.f32.mrb[0].mxu0
    %v2187 = vpop.f32.mrb[0].mxu0
    %v2188 = vpop.f32.mrb[0].mxu0
    %2189 = vdwg.mxu0
    %2190 = vrot.lane.b32.xlu0 %v1530, 104
    %v2191 = vpop.permute.xlu0 %2190
    %2192 = vrot.lane.b32.xlu0 %v1530, 72
    %v2193 = vpop.permute.xlu0 %2192
    %v2195 = vsel %vm235, %v2191, 0
    %v2198 = vsel %vm235, %v2193, 0
    %2200 = vmatprep.subr.bf16.mxu0 0
    %2201 = vmatpush1.bf16.xpose.msra.mxu0 %v2198
    %2202 = vmatprep.subr.bf16.mxu0 0
    %2203 = vmatpush1.bf16.xpose.msra.mxu0 0
    %2204 = vmatprep.subr.bf16.mxu0 0
    %2205 = vmatpush1.bf16.xpose.msra.mxu0 0
    %2206 = vmatprep.subr.bf16.mxu0 0
    %2207 = vmatpush1.bf16.xpose.msra.mxu0 0
    %2208 = vmatprep.subr.bf16.mxu0 0
    %2209 = vmatpush1.bf16.xpose.msra.mxu0 0
    %2210 = vmatprep.subr.bf16.mxu0 0
    %2211 = vmatpush1.bf16.xpose.msra.mxu0 0
    %2212 = vmatprep.subr.bf16.mxu0 0
    %2213 = vmatpush1.bf16.xpose.msra.mxu0 0
    %2214 = vmatprep.subr.bf16.mxu0 0
    %2215 = vmatpush1.bf16.xpose.msra.mxu0 0
    %2216 = vmatprep.subr.bf16.mxu0 0
    %2217 = vmatpush1.bf16.xpose.msra.mxu0 0
    %2218 = vmatprep.subr.bf16.mxu0 0
    %2219 = vmatpush1.bf16.xpose.msra.mxu0 0
    %2220 = vmatprep.subr.bf16.mxu0 0
    %2221 = vmatpush1.bf16.xpose.msra.mxu0 0
    %2222 = vmatprep.subr.bf16.mxu0 0
    %2223 = vmatpush1.bf16.xpose.msra.mxu0 0
    %2224 = vmatprep.subr.bf16.mxu0 0
    %2225 = vmatpush1.bf16.xpose.msra.mxu0 0
    %2226 = vmatprep.subr.bf16.mxu0 0
    %2227 = vmatpush1.bf16.xpose.msra.mxu0 0
    %2228 = vmatprep.subr.bf16.mxu0 0
    %2229 = vmatpush1.bf16.xpose.msra.mxu0 0
    %2230 = vmatprep.subr.bf16.mxu0 0
    %2231 = vmatpush1.bf16.xpose.msra.mxu0 0
    %2232 = vmatprep.mubr.bf16.mxu0 0
    %2233 = vmatmul.mubr.bf16.gmra.mrb[0].mxu0 %v2195
    %v2234 = vpop.f32.mrb[0].mxu0
    %v2235 = vadd.f32 %v98, %v2234
    %v2236 = vpop.f32.mrb[0].mxu0
    %v2237 = vpop.f32.mrb[0].mxu0
    %v2238 = vpop.f32.mrb[0].mxu0
    %2239 = vdwg.mxu0
    %2240 = vrot.lane.b32.xlu0 %v1531, 104
    %v2241 = vpop.permute.xlu0 %2240
    %2242 = vrot.lane.b32.xlu0 %v1531, 72
    %v2243 = vpop.permute.xlu0 %2242
    %v2245 = vsel %vm235, %v2241, 0
    %v2248 = vsel %vm235, %v2243, 0
    %2250 = vmatprep.subr.bf16.mxu0 0
    %2251 = vmatpush1.bf16.xpose.msra.mxu0 %v2248
    %2252 = vmatprep.subr.bf16.mxu0 0
    %2253 = vmatpush1.bf16.xpose.msra.mxu0 0
    %2254 = vmatprep.subr.bf16.mxu0 0
    %2255 = vmatpush1.bf16.xpose.msra.mxu0 0
    %2256 = vmatprep.subr.bf16.mxu0 0
    %2257 = vmatpush1.bf16.xpose.msra.mxu0 0
    %2258 = vmatprep.subr.bf16.mxu0 0
    %2259 = vmatpush1.bf16.xpose.msra.mxu0 0
    %2260 = vmatprep.subr.bf16.mxu0 0
    %2261 = vmatpush1.bf16.xpose.msra.mxu0 0
    %2262 = vmatprep.subr.bf16.mxu0 0
    %2263 = vmatpush1.bf16.xpose.msra.mxu0 0
    %2264 = vmatprep.subr.bf16.mxu0 0
    %2265 = vmatpush1.bf16.xpose.msra.mxu0 0
    %2266 = vmatprep.subr.bf16.mxu0 0
    %2267 = vmatpush1.bf16.xpose.msra.mxu0 0
    %2268 = vmatprep.subr.bf16.mxu0 0
    %2269 = vmatpush1.bf16.xpose.msra.mxu0 0
    %2270 = vmatprep.subr.bf16.mxu0 0
    %2271 = vmatpush1.bf16.xpose.msra.mxu0 0
    %2272 = vmatprep.subr.bf16.mxu0 0
    %2273 = vmatpush1.bf16.xpose.msra.mxu0 0
    %2274 = vmatprep.subr.bf16.mxu0 0
    %2275 = vmatpush1.bf16.xpose.msra.mxu0 0
    %2276 = vmatprep.subr.bf16.mxu0 0
    %2277 = vmatpush1.bf16.xpose.msra.mxu0 0
    %2278 = vmatprep.subr.bf16.mxu0 0
    %2279 = vmatpush1.bf16.xpose.msra.mxu0 0
    %2280 = vmatprep.subr.bf16.mxu0 0
    %2281 = vmatpush1.bf16.xpose.msra.mxu0 0
    %2282 = vmatprep.mubr.bf16.mxu0 0
    %2283 = vmatmul.mubr.bf16.gmra.mrb[0].mxu0 %v2245
    %v2284 = vpop.f32.mrb[0].mxu0
    %v2285 = vadd.f32 %v98, %v2284
    %v2286 = vpop.f32.mrb[0].mxu0
    %v2287 = vpop.f32.mrb[0].mxu0
    %v2288 = vpop.f32.mrb[0].mxu0
    %2289 = vdwg.mxu0
    %v2290 = vsel %vm235, %v2235, -inf
    %2291 = vmax.xlane.f32.xlu0 %v2290
    %v2292 = vpop.xlane.xlu0 %2291
    %v2293 = vsel %vm235, %v2285, -inf
    %2294 = vmax.xlane.f32.xlu0 %v2293
    %v2295 = vpop.xlane.xlu0 %2294
    %v2296 = vsub.f32 %v2235, %v2292
    %v2297 = vsub.f32 %v2285, %v2295
    %v2298 = vmul.f32 %v2296, 1.442695
    %v2299 = vpow.pop %v2298
    %v2300 = vmul.f32 %v2297, 1.442695
    %v2301 = vpow.pop %v2300
    %v2302 = vsel %vm235, %v2299, 0.0
    %2303 = vadd.xlane.f32.xlu0 %v2302
    %v2304 = vpop.xlane.xlu0 %2303
    %v2305 = vsel %vm235, %v2301, 0.0
    %2306 = vadd.xlane.f32.xlu0 %v2305
    %v2307 = vpop.xlane.xlu0 %2306
    %v2308 = vrcp.pop %v2304
    %v2309 = vrcp.pop %v2307
    %v2310 = vmul.f32 %v2299, %v2308
    %v2311 = vmul.f32 %v2301, %v2309
    %v2312 = vpack.c.bf16 %v2310, %v2310
    %v2313 = vpack.c.bf16 %v2311, %v2311
    %2314 = vrot.lane.b32.xlu0 %v1530, 40
    %v2315 = vpop.permute.xlu0 %2314
    %v2317 = vsel %vm235, %v2312, 0
    %v2320 = vsel %vm360, %v2315, 0
    %2322 = vmatprep.subr.bf16.mxu0 0
    %2323 = vmatpush1.bf16.msra.mxu0 %v2320
    %2324 = vmatprep.subr.bf16.mxu0 0
    %2325 = vmatpush1.bf16.msra.mxu0 0
    %2326 = vmatprep.subr.bf16.mxu0 0
    %2327 = vmatpush1.bf16.msra.mxu0 0
    %2328 = vmatprep.subr.bf16.mxu0 0
    %2329 = vmatpush1.bf16.msra.mxu0 0
    %2330 = vmatprep.subr.bf16.mxu0 0
    %2331 = vmatpush1.bf16.msra.mxu0 0
    %2332 = vmatprep.subr.bf16.mxu0 0
    %2333 = vmatpush1.bf16.msra.mxu0 0
    %2334 = vmatprep.subr.bf16.mxu0 0
    %2335 = vmatpush1.bf16.msra.mxu0 0
    %2336 = vmatprep.subr.bf16.mxu0 0
    %2337 = vmatpush1.bf16.msra.mxu0 0
    %2338 = vmatprep.subr.bf16.mxu0 0
    %2339 = vmatpush1.bf16.msra.mxu0 0
    %2340 = vmatprep.subr.bf16.mxu0 0
    %2341 = vmatpush1.bf16.msra.mxu0 0
    %2342 = vmatprep.subr.bf16.mxu0 0
    %2343 = vmatpush1.bf16.msra.mxu0 0
    %2344 = vmatprep.subr.bf16.mxu0 0
    %2345 = vmatpush1.bf16.msra.mxu0 0
    %2346 = vmatprep.subr.bf16.mxu0 0
    %2347 = vmatpush1.bf16.msra.mxu0 0
    %2348 = vmatprep.subr.bf16.mxu0 0
    %2349 = vmatpush1.bf16.msra.mxu0 0
    %2350 = vmatprep.subr.bf16.mxu0 0
    %2351 = vmatpush1.bf16.msra.mxu0 0
    %2352 = vmatprep.subr.bf16.mxu0 0
    %2353 = vmatpush1.bf16.msra.mxu0 0
    %2354 = vmatprep.mubr.bf16.mxu0 0
    %2355 = vmatmul.mubr.bf16.gmra.mrb[0].mxu0 %v2317
    %v2356 = vpop.f32.mrb[0].mxu0
    %v2357 = vadd.f32 0.0, %v2356
    %v2358 = vpop.f32.mrb[0].mxu0
    %v2359 = vpop.f32.mrb[0].mxu0
    %v2360 = vpop.f32.mrb[0].mxu0
    %2361 = vdwg.mxu0
    %2362 = vrot.lane.b32.xlu0 %v1531, 40
    %v2363 = vpop.permute.xlu0 %2362
    %v2365 = vsel %vm235, %v2313, 0
    %v2368 = vsel %vm360, %v2363, 0
    %2370 = vmatprep.subr.bf16.mxu0 0
    %2371 = vmatpush1.bf16.msra.mxu0 %v2368
    %2372 = vmatprep.subr.bf16.mxu0 0
    %2373 = vmatpush1.bf16.msra.mxu0 0
    %2374 = vmatprep.subr.bf16.mxu0 0
    %2375 = vmatpush1.bf16.msra.mxu0 0
    %2376 = vmatprep.subr.bf16.mxu0 0
    %2377 = vmatpush1.bf16.msra.mxu0 0
    %2378 = vmatprep.subr.bf16.mxu0 0
    %2379 = vmatpush1.bf16.msra.mxu0 0
    %2380 = vmatprep.subr.bf16.mxu0 0
    %2381 = vmatpush1.bf16.msra.mxu0 0
    %2382 = vmatprep.subr.bf16.mxu0 0
    %2383 = vmatpush1.bf16.msra.mxu0 0
    %2384 = vmatprep.subr.bf16.mxu0 0
    %2385 = vmatpush1.bf16.msra.mxu0 0
    %2386 = vmatprep.subr.bf16.mxu0 0
    %2387 = vmatpush1.bf16.msra.mxu0 0
    %2388 = vmatprep.subr.bf16.mxu0 0
    %2389 = vmatpush1.bf16.msra.mxu0 0
    %2390 = vmatprep.subr.bf16.mxu0 0
    %2391 = vmatpush1.bf16.msra.mxu0 0
    %2392 = vmatprep.subr.bf16.mxu0 0
    %2393 = vmatpush1.bf16.msra.mxu0 0
    %2394 = vmatprep.subr.bf16.mxu0 0
    %2395 = vmatpush1.bf16.msra.mxu0 0
    %2396 = vmatprep.subr.bf16.mxu0 0
    %2397 = vmatpush1.bf16.msra.mxu0 0
    %2398 = vmatprep.subr.bf16.mxu0 0
    %2399 = vmatpush1.bf16.msra.mxu0 0
    %2400 = vmatprep.subr.bf16.mxu0 0
    %2401 = vmatpush1.bf16.msra.mxu0 0
    %2402 = vmatprep.mubr.bf16.mxu0 0
    %2403 = vmatmul.mubr.bf16.gmra.mrb[0].mxu0 %v2365
    %v2404 = vpop.f32.mrb[0].mxu0
    %v2405 = vadd.f32 0.0, %v2404
    %v2406 = vpop.f32.mrb[0].mxu0
    %v2407 = vpop.f32.mrb[0].mxu0
    %v2408 = vpop.f32.mrb[0].mxu0
    %2409 = vdwg.mxu0
    %2412 = vrot.lane.b32.xlu0 %v1917, 8
    %v2413 = vpop.permute.xlu0 %2412
    %2414 = vrot.lane.b32.xlu0 %v1965, 8
    %v2415 = vpop.permute.xlu0 %2414
    %2420 = vrot.lane.b32.xlu0 %v2137, 16
    %v2421 = vpop.permute.xlu0 %2420
    %2422 = vrot.lane.b32.xlu0 %v2185, 16
    %v2423 = vpop.permute.xlu0 %2422
    %2428 = vrot.lane.b32.xlu0 %v2357, 24
    %v2429 = vpop.permute.xlu0 %2428
    %2430 = vrot.lane.b32.xlu0 %v2405, 24
    %v2431 = vpop.permute.xlu0 %2430
    %v2434 = vsel %vm235, %v1697, %v2413
    %v2435 = vsel %vm235, %v1745, %v2415
    %v2436 = vsel %vm1138, %v2434, %v2421
    %v2437 = vsel %vm1138, %v2435, %v2423
    %v2438 = vsel %vm1141, %v2436, %v2429
    %v2439 = vsel %vm1141, %v2437, %v2431
    %v2440 = vpack.c.bf16 %v2439, %v2438
    %s2441 = scalar_lea.vmem %s7, 16
    %v2442 = vld [vmem:[%s2441] sm:$0xf]
    %v2443 = vld [vmem:[%s2441 + $0x4] sm:$0xf]
    %v2444 = vld [vmem:[%s2441 + $0x8] sm:$0xf]
    %v2445 = vld [vmem:[%s2441 + $0xc] sm:$0xf]
    %s2446 = scalar_lea.vmem %s8, 1
    %v2447 = vld [vmem:[%s2446] sm:$0x1]
    %v2449 = vlaneseq
    %v2450 = vshrl.u32 %v2449, 7
    %v2451 = vsub.s32 0, %v2450
    %v2452 = vrot.slane %v2447, %v2451
    %v2458 = vunpack.c.l.b16 %v2442
    %v2459 = vunpack.c.l.b16 %v2443
    %v2460 = vunpack.c.l.b16 %v2444
    %v2461 = vunpack.c.l.b16 %v2445
    %v2462 = vpack.c.b16 %v2459, %v2458
    %v2463 = vpack.c.b16 %v2461, %v2460
    %v2467 = vsel %vm185, %v2440, 0
    %2469 = vmatprep.subr.bf16.mxu0 0
    %2470 = vmatpush1.bf16.msra.mxu0 %v2462
    %2471 = vmatprep.subr.bf16.mxu0 0
    %2472 = vmatpush1.bf16.msra.mxu0 %v2463
    %2473 = vmatprep.subr.bf16.mxu0 0
    %2474 = vmatpush1.bf16.msra.mxu0 0
    %2475 = vmatprep.subr.bf16.mxu0 0
    %2476 = vmatpush1.bf16.msra.mxu0 0
    %2477 = vmatprep.subr.bf16.mxu0 0
    %2478 = vmatpush1.bf16.msra.mxu0 0
    %2479 = vmatprep.subr.bf16.mxu0 0
    %2480 = vmatpush1.bf16.msra.mxu0 0
    %2481 = vmatprep.subr.bf16.mxu0 0
    %2482 = vmatpush1.bf16.msra.mxu0 0
    %2483 = vmatprep.subr.bf16.mxu0 0
    %2484 = vmatpush1.bf16.msra.mxu0 0
    %2485 = vmatprep.subr.bf16.mxu0 0
    %2486 = vmatpush1.bf16.msra.mxu0 0
    %2487 = vmatprep.subr.bf16.mxu0 0
    %2488 = vmatpush1.bf16.msra.mxu0 0
    %2489 = vmatprep.subr.bf16.mxu0 0
    %2490 = vmatpush1.bf16.msra.mxu0 0
    %2491 = vmatprep.subr.bf16.mxu0 0
    %2492 = vmatpush1.bf16.msra.mxu0 0
    %2493 = vmatprep.subr.bf16.mxu0 0
    %2494 = vmatpush1.bf16.msra.mxu0 0
    %2495 = vmatprep.subr.bf16.mxu0 0
    %2496 = vmatpush1.bf16.msra.mxu0 0
    %2497 = vmatprep.subr.bf16.mxu0 0
    %2498 = vmatpush1.bf16.msra.mxu0 0
    %2499 = vmatprep.subr.bf16.mxu0 0
    %2500 = vmatpush1.bf16.msra.mxu0 0
    %2501 = vmatprep.mubr.bf16.mxu0 0
    %2502 = vmatmul.mubr.bf16.gmra.mrb[0].mxu0 %v2467
    %v2503 = vpop.f32.mrb[0].mxu0
    %v2504 = vadd.f32 %v2452, %v2503
    %v2505 = vpop.f32.mrb[0].mxu0
    %v2506 = vpop.f32.mrb[0].mxu0
    %v2507 = vadd.f32 %v2452, %v2506
    %v2508 = vpop.f32.mrb[0].mxu0
    %2509 = vdwg.mxu0
    %v2510 = vadd.f32 %v1458, %v2504
    %v2511 = vadd.f32 %v1459, %v2507
    %s2512 = scalar_lea.vmem %s13, 1
    %v2513 = vld [vmem:[%s2512] sm:$0x1]
    %s2514 = scalar_lea.vmem %s14, 1
    %v2515 = vld [vmem:[%s2514] sm:$0x1]
    %v2516 = vsel %vm185, %v2510, 0.0
    %2517 = vadd.xlane.f32.xlu0 %v2516
    %v2518 = vpop.xlane.xlu0 %2517
    %v2519 = vsel %vm185, %v2511, 0.0
    %2520 = vadd.xlane.f32.xlu0 %v2519
    %v2521 = vpop.xlane.xlu0 %2520
    %v2522 = vmul.f32 %v2518, %v1222
    %v2523 = vmul.f32 %v2521, %v1222
    %v2524 = vsub.f32 %v2510, %v2522
    %v2525 = vsub.f32 %v2511, %v2523
    %v2526 = vmul.f32 %v2524, %v2524
    %v2527 = vmul.f32 %v2525, %v2525
    %v2528 = vsel %vm185, %v2526, 0.0
    %2529 = vadd.xlane.f32.xlu0 %v2528
    %v2530 = vpop.xlane.xlu0 %2529
    %v2531 = vsel %vm185, %v2527, 0.0
    %2532 = vadd.xlane.f32.xlu0 %v2531
    %v2533 = vpop.xlane.xlu0 %2532
    %v2534 = vmul.f32 %v2530, %v1222
    %v2535 = vmul.f32 %v2533, %v1222
    %v2536 = vadd.f32 %v2534, 1e-05
    %v2537 = vadd.f32 %v2535, 1e-05
    %v2538 = vrsqrt.pop %v2536
    %v2539 = vrsqrt.pop %v2537
    %v2540 = vmul.f32 %v2524, %v2538
    %v2541 = vmul.f32 %v2525, %v2539
    %v2543 = vlaneseq
    %v2544 = vshrl.u32 %v2543, 7
    %v2545 = vsub.s32 0, %v2544
    %v2546 = vrot.slane %v2513, %v2545
    %v2548 = vmul.f32 %v2540, %v2546
    %v2549 = vmul.f32 %v2541, %v2546
    %v2551 = vlaneseq
    %v2552 = vshrl.u32 %v2551, 7
    %v2553 = vsub.s32 0, %v2552
    %v2554 = vrot.slane %v2515, %v2553
    %v2556 = vadd.f32 %v2548, %v2554
    %v2557 = vadd.f32 %v2549, %v2554
    %v2558 = vpack.c.bf16 %v2557, %v2556
    %s2559 = scalar_lea.vmem %s9, 16
    %v2560 = vld [vmem:[%s2559] sm:$0xf]
    %v2561 = vld [vmem:[%s2559 + $0x4] sm:$0xf]
    %v2562 = vld [vmem:[%s2559 + $0x8] sm:$0xf]
    %v2563 = vld [vmem:[%s2559 + $0xc] sm:$0xf]
    %s2564 = scalar_lea.vmem [#allocation5], 1
    %v2565 = vld [vmem:[%s2564] sm:$0x1]
    %v2567 = vlaneseq
    %v2568 = vshrl.u32 %v2567, 7
    %v2569 = vsub.s32 0, %v2568
    %v2570 = vrot.slane %v2565, %v2569
    %v2576 = vunpack.c.l.b16 %v2560
    %v2577 = vunpack.c.l.b16 %v2561
    %v2578 = vunpack.c.l.b16 %v2562
    %v2579 = vunpack.c.l.b16 %v2563
    %v2580 = vpack.c.b16 %v2577, %v2576
    %v2581 = vpack.c.b16 %v2579, %v2578
    %v2585 = vsel %vm185, %v2558, 0
    %2587 = vmatprep.subr.bf16.mxu0 0
    %2588 = vmatpush1.bf16.msra.mxu0 %v2580
    %2589 = vmatprep.subr.bf16.mxu0 0
    %2590 = vmatpush1.bf16.msra.mxu0 %v2581
    %2591 = vmatprep.subr.bf16.mxu0 0
    %2592 = vmatpush1.bf16.msra.mxu0 0
    %2593 = vmatprep.subr.bf16.mxu0 0
    %2594 = vmatpush1.bf16.msra.mxu0 0
    %2595 = vmatprep.subr.bf16.mxu0 0
    %2596 = vmatpush1.bf16.msra.mxu0 0
    %2597 = vmatprep.subr.bf16.mxu0 0
    %2598 = vmatpush1.bf16.msra.mxu0 0
    %2599 = vmatprep.subr.bf16.mxu0 0
    %2600 = vmatpush1.bf16.msra.mxu0 0
    %2601 = vmatprep.subr.bf16.mxu0 0
    %2602 = vmatpush1.bf16.msra.mxu0 0
    %2603 = vmatprep.subr.bf16.mxu0 0
    %2604 = vmatpush1.bf16.msra.mxu0 0
    %2605 = vmatprep.subr.bf16.mxu0 0
    %2606 = vmatpush1.bf16.msra.mxu0 0
    %2607 = vmatprep.subr.bf16.mxu0 0
    %2608 = vmatpush1.bf16.msra.mxu0 0
    %2609 = vmatprep.subr.bf16.mxu0 0
    %2610 = vmatpush1.bf16.msra.mxu0 0
    %2611 = vmatprep.subr.bf16.mxu0 0
    %2612 = vmatpush1.bf16.msra.mxu0 0
    %2613 = vmatprep.subr.bf16.mxu0 0
    %2614 = vmatpush1.bf16.msra.mxu0 0
    %2615 = vmatprep.subr.bf16.mxu0 0
    %2616 = vmatpush1.bf16.msra.mxu0 0
    %2617 = vmatprep.subr.bf16.mxu0 0
    %2618 = vmatpush1.bf16.msra.mxu0 0
    %2619 = vmatprep.mubr.bf16.mxu0 0
    %2620 = vmatmul.mubr.bf16.gmra.mrb[0].mxu0 %v2585
    %v2621 = vpop.f32.mrb[0].mxu0
    %v2622 = vadd.f32 %v2570, %v2621
    %v2623 = vpop.f32.mrb[0].mxu0
    %v2624 = vpop.f32.mrb[0].mxu0
    %v2625 = vadd.f32 %v2570, %v2624
    %v2626 = vpop.f32.mrb[0].mxu0
    %2627 = vdwg.mxu0
    %v2628 = vmax.f32 %v2622, 0.0
    %v2629 = vmax.f32 %v2625, 0.0
    %v2630 = vpack.c.bf16 %v2629, %v2628
    %s2631 = scalar_lea.vmem %s11, 32
    %v2632 = vld [vmem:[%s2631] sm:$0xf]
    %v2633 = vld [vmem:[%s2631 + $0x4] sm:$0xf]
    %v2634 = vld [vmem:[%s2631 + $0x8] sm:$0xf]
    %v2635 = vld [vmem:[%s2631 + $0xc] sm:$0xf]
    %v2636 = vld [vmem:[%s2631 + $0x10] sm:$0xf]
    %v2637 = vld [vmem:[%s2631 + $0x14] sm:$0xf]
    %v2638 = vld [vmem:[%s2631 + $0x18] sm:$0xf]
    %v2639 = vld [vmem:[%s2631 + $0x1c] sm:$0xf]
    %s2640 = scalar_lea.vmem %s12, 1
    %v2641 = vld [vmem:[%s2640] sm:$0x1]
    %v2643 = vlaneseq
    %v2644 = vshrl.u32 %v2643, 7
    %v2645 = vsub.s32 0, %v2644
    %v2646 = vrot.slane %v2641, %v2645
    %v2656 = vunpack.c.l.b16 %v2632
    %v2657 = vunpack.c.l.b16 %v2633
    %v2658 = vunpack.c.l.b16 %v2634
    %v2659 = vunpack.c.l.b16 %v2635
    %v2660 = vunpack.c.l.b16 %v2636
    %v2661 = vunpack.c.l.b16 %v2637
    %v2662 = vunpack.c.l.b16 %v2638
    %v2663 = vunpack.c.l.b16 %v2639
    %v2664 = vpack.c.b16 %v2657, %v2656
    %v2665 = vpack.c.b16 %v2659, %v2658
    %v2666 = vpack.c.b16 %v2661, %v2660
    %v2667 = vpack.c.b16 %v2663, %v2662
    %v2673 = vsel %vm1369, %v2630, 0
    %2675 = vmatprep.subr.bf16.mxu0 0
    %2676 = vmatpush1.bf16.msra.mxu0 %v2664
    %2677 = vmatprep.subr.bf16.mxu0 0
    %2678 = vmatpush1.bf16.msra.mxu0 %v2665
    %2679 = vmatprep.subr.bf16.mxu0 0
    %2680 = vmatpush1.bf16.msra.mxu0 %v2666
    %2681 = vmatprep.subr.bf16.mxu0 0
    %2682 = vmatpush1.bf16.msra.mxu0 %v2667
    %2683 = vmatprep.subr.bf16.mxu0 0
    %2684 = vmatpush1.bf16.msra.mxu0 0
    %2685 = vmatprep.subr.bf16.mxu0 0
    %2686 = vmatpush1.bf16.msra.mxu0 0
    %2687 = vmatprep.subr.bf16.mxu0 0
    %2688 = vmatpush1.bf16.msra.mxu0 0
    %2689 = vmatprep.subr.bf16.mxu0 0
    %2690 = vmatpush1.bf16.msra.mxu0 0
    %2691 = vmatprep.subr.bf16.mxu0 0
    %2692 = vmatpush1.bf16.msra.mxu0 0
    %2693 = vmatprep.subr.bf16.mxu0 0
    %2694 = vmatpush1.bf16.msra.mxu0 0
    %2695 = vmatprep.subr.bf16.mxu0 0
    %2696 = vmatpush1.bf16.msra.mxu0 0
    %2697 = vmatprep.subr.bf16.mxu0 0
    %2698 = vmatpush1.bf16.msra.mxu0 0
    %2699 = vmatprep.subr.bf16.mxu0 0
    %2700 = vmatpush1.bf16.msra.mxu0 0
    %2701 = vmatprep.subr.bf16.mxu0 0
    %2702 = vmatpush1.bf16.msra.mxu0 0
    %2703 = vmatprep.subr.bf16.mxu0 0
    %2704 = vmatpush1.bf16.msra.mxu0 0
    %2705 = vmatprep.subr.bf16.mxu0 0
    %2706 = vmatpush1.bf16.msra.mxu0 0
    %2707 = vmatprep.mubr.bf16.mxu0 0
    %2708 = vmatmul.mubr.bf16.gmra.mrb[0].mxu0 %v2673
    %v2709 = vpop.f32.mrb[0].mxu0
    %v2710 = vadd.f32 %v2646, %v2709
    %v2711 = vpop.f32.mrb[0].mxu0
    %v2712 = vpop.f32.mrb[0].mxu0
    %v2713 = vadd.f32 %v2646, %v2712
    %v2714 = vpop.f32.mrb[0].mxu0
    %2715 = vdwg.mxu0
    %v2716 = vadd.f32 %v2556, %v2710
    %v2717 = vadd.f32 %v2557, %v2713
    %s2718 = scalar_lea.vmem %s15, 1
    %v2719 = vld [vmem:[%s2718] sm:$0x1]
    %s2720 = scalar_lea.vmem %s16, 1
    %v2721 = vld [vmem:[%s2720] sm:$0x1]
    %v2722 = vsel %vm185, %v2716, 0.0
    %2723 = vadd.xlane.f32.xlu0 %v2722
    %v2724 = vpop.xlane.xlu0 %2723
    %v2725 = vsel %vm185, %v2717, 0.0
    %2726 = vadd.xlane.f32.xlu0 %v2725
    %v2727 = vpop.xlane.xlu0 %2726
    %v2728 = vmul.f32 %v2724, %v1222
    %v2729 = vmul.f32 %v2727, %v1222
    %v2730 = vsub.f32 %v2716, %v2728
    %v2731 = vsub.f32 %v2717, %v2729
    %v2732 = vmul.f32 %v2730, %v2730
    %v2733 = vmul.f32 %v2731, %v2731
    %v2734 = vsel %vm185, %v2732, 0.0
    %2735 = vadd.xlane.f32.xlu0 %v2734
    %v2736 = vpop.xlane.xlu0 %2735
    %v2737 = vsel %vm185, %v2733, 0.0
    %2738 = vadd.xlane.f32.xlu0 %v2737
    %v2739 = vpop.xlane.xlu0 %2738
    %v2740 = vmul.f32 %v2736, %v1222
    %v2741 = vmul.f32 %v2739, %v1222
    %v2742 = vadd.f32 %v2740, 1e-05
    %v2743 = vadd.f32 %v2741, 1e-05
    %v2744 = vrsqrt.pop %v2742
    %v2745 = vrsqrt.pop %v2743
    %v2746 = vmul.f32 %v2730, %v2744
    %v2747 = vmul.f32 %v2731, %v2745
    %v2749 = vlaneseq
    %v2750 = vshrl.u32 %v2749, 7
    %v2751 = vsub.s32 0, %v2750
    %v2752 = vrot.slane %v2719, %v2751
    %v2754 = vmul.f32 %v2746, %v2752
    %v2755 = vmul.f32 %v2747, %v2752
    %v2757 = vlaneseq
    %v2758 = vshrl.u32 %v2757, 7
    %v2759 = vsub.s32 0, %v2758
    %v2760 = vrot.slane %v2721, %v2759
    %v2762 = vadd.f32 %v2754, %v2760
    %v2763 = vadd.f32 %v2755, %v2760
    %v2764 = vld [vmem:[%s17] sm:$0x1]
    %v2765 = vld [vmem:[%s18] sm:$0x1]
    %v2766 = vsel %vm185, %v2762, 0.0
    %2767 = vadd.xlane.f32.xlu0 %v2766
    %v2768 = vpop.xlane.xlu0 %2767
    %v2769 = vsel %vm185, %v2763, 0.0
    %2770 = vadd.xlane.f32.xlu0 %v2769
    %v2771 = vpop.xlane.xlu0 %2770
    %v2772 = vmul.f32 %v2768, %v1222
    %v2773 = vmul.f32 %v2771, %v1222
    %v2774 = vsub.f32 %v2762, %v2772
    %v2775 = vsub.f32 %v2763, %v2773
    %v2776 = vmul.f32 %v2774, %v2774
    %v2777 = vmul.f32 %v2775, %v2775
    %v2778 = vsel %vm185, %v2776, 0.0
    %2779 = vadd.xlane.f32.xlu0 %v2778
    %v2780 = vpop.xlane.xlu0 %2779
    %v2781 = vsel %vm185, %v2777, 0.0
    %2782 = vadd.xlane.f32.xlu0 %v2781
    %v2783 = vpop.xlane.xlu0 %2782
    %v2784 = vmul.f32 %v2780, %v1222
    %v2785 = vmul.f32 %v2783, %v1222
    %v2786 = vadd.f32 %v2784, 1e-05
    %v2787 = vadd.f32 %v2785, 1e-05
    %v2788 = vrsqrt.pop %v2786
    %v2789 = vrsqrt.pop %v2787
    %v2790 = vmul.f32 %v2774, %v2788
    %v2791 = vmul.f32 %v2775, %v2789
    %v2793 = vlaneseq
    %v2794 = vshrl.u32 %v2793, 7
    %v2795 = vsub.s32 0, %v2794
    %v2796 = vrot.slane %v2764, %v2795
    %v2798 = vmul.f32 %v2790, %v2796
    %v2799 = vmul.f32 %v2791, %v2796
    %v2801 = vlaneseq
    %v2802 = vshrl.u32 %v2801, 7
    %v2803 = vsub.s32 0, %v2802
    %v2804 = vrot.slane %v2765, %v2803
    %v2806 = vadd.f32 %v2798, %v2804
    %v2807 = vadd.f32 %v2799, %v2804
    %2808 = vxpose.xlu0.b32.start [1/16] %v2806, 128
    %2809 = vxpose.xlu0.b32.cont [2/16] %v2807, 128
    %2810 = vxpose.xlu0.b32.cont [3/16] 0.0, 128
    %2811 = vxpose.xlu0.b32.cont [4/16] 0.0, 128
    %2812 = vxpose.xlu0.b32.cont [5/16] 0.0, 128
    %2813 = vxpose.xlu0.b32.cont [6/16] 0.0, 128
    %2814 = vxpose.xlu0.b32.cont [7/16] 0.0, 128
    %2815 = vxpose.xlu0.b32.cont [8/16] 0.0, 128
    %2816 = vxpose.xlu0.b32.cont [9/16] 0.0, 128
    %2817 = vxpose.xlu0.b32.cont [10/16] 0.0, 128
    %2818 = vxpose.xlu0.b32.cont [11/16] 0.0, 128
    %2819 = vxpose.xlu0.b32.cont [12/16] 0.0, 128
    %2820 = vxpose.xlu0.b32.cont [13/16] 0.0, 128
    %2821 = vxpose.xlu0.b32.cont [14/16] 0.0, 128
    %2822 = vxpose.xlu0.b32.cont [15/16] 0.0, 128
    %2823 = vxpose.xlu0.b32.end [16/16] 0.0, 128
    %v2824 = vpop.trf.xlu0
    %v2825 = vpop.trf.xlu0
    %v2826 = vpop.trf.xlu0
    %v2827 = vpop.trf.xlu0
    %v2828 = vpop.trf.xlu0
    %v2829 = vpop.trf.xlu0
    %v2830 = vpop.trf.xlu0
    %v2831 = vpop.trf.xlu0
    %v2832 = vpop.trf.xlu0
    %v2833 = vpop.trf.xlu0
    %v2834 = vpop.trf.xlu0
    %v2835 = vpop.trf.xlu0
    %v2836 = vpop.trf.xlu0
    %v2837 = vpop.trf.xlu0
    %v2838 = vpop.trf.xlu0
    %v2839 = vpop.trf.xlu0
    %v2840 = vpack.c.bf16 %v2825, %v2824
    %v2841 = vpack.c.bf16 %v2827, %v2826
    %v2842 = vld [vmem:[%s19] sm:$0x3]
    %v2843 = vld [vmem:[%s20] sm:$0x7]
    %2845 = vset.pattern.permute.xlu0 0
    %2846 = vperm.xlu0 %2845, %v2843
    %v2847 = vpop.permute.xlu0 %2846
    %v2850 = vsel %vm185, %v2842, 0
    %2852 = vmatprep.subr.bf16.mxu0 0
    %2853 = vmatpush1.bf16.msra.mxu0 %v2840
    %2854 = vmatprep.subr.bf16.mxu0 0
    %2855 = vmatpush1.bf16.msra.mxu0 %v2841
    %2856 = vmatprep.subr.bf16.mxu0 0
    %2857 = vmatpush1.bf16.msra.mxu0 0
    %2858 = vmatprep.subr.bf16.mxu0 0
    %2859 = vmatpush1.bf16.msra.mxu0 0
    %2860 = vmatprep.subr.bf16.mxu0 0
    %2861 = vmatpush1.bf16.msra.mxu0 0
    %2862 = vmatprep.subr.bf16.mxu0 0
    %2863 = vmatpush1.bf16.msra.mxu0 0
    %2864 = vmatprep.subr.bf16.mxu0 0
    %2865 = vmatpush1.bf16.msra.mxu0 0
    %2866 = vmatprep.subr.bf16.mxu0 0
    %2867 = vmatpush1.bf16.msra.mxu0 0
    %2868 = vmatprep.subr.bf16.mxu0 0
    %2869 = vmatpush1.bf16.msra.mxu0 0
    %2870 = vmatprep.subr.bf16.mxu0 0
    %2871 = vmatpush1.bf16.msra.mxu0 0
    %2872 = vmatprep.subr.bf16.mxu0 0
    %2873 = vmatpush1.bf16.msra.mxu0 0
    %2874 = vmatprep.subr.bf16.mxu0 0
    %2875 = vmatpush1.bf16.msra.mxu0 0
    %2876 = vmatprep.subr.bf16.mxu0 0
    %2877 = vmatpush1.bf16.msra.mxu0 0
    %2878 = vmatprep.subr.bf16.mxu0 0
    %2879 = vmatpush1.bf16.msra.mxu0 0
    %2880 = vmatprep.subr.bf16.mxu0 0
    %2881 = vmatpush1.bf16.msra.mxu0 0
    %2882 = vmatprep.subr.bf16.mxu0 0
    %2883 = vmatpush1.bf16.msra.mxu0 0
    %2884 = vmatprep.mubr.bf16.mxu0 0
    %2885 = vmatmul.mubr.bf16.gmra.mrb[0].mxu0 %v2850
    %v2886 = vpop.f32.mrb[0].mxu0
    %v2887 = vadd.f32 %v2847, %v2886
    %v2888 = vpop.f32.mrb[0].mxu0
    %v2889 = vpop.f32.mrb[0].mxu0
    %v2890 = vpop.f32.mrb[0].mxu0
    %2891 = vdwg.mxu0
    %vm2892 = vcmask 124928
    %2893 = vst.msk [vmem:[#allocation7] sm:$0x7] %vm2892, %v2887
    // Predicated region
    $region94: #{tpu_custom_call.1} parent=1 // pred_check
      _
    $region95: #{tpu_custom_call.1} parent=1 // pred_check_branch
      %2895 = sbr.rel (0) target = $region97
    $region96: #{tpu_custom_call.1} parent=1 // pred_region
      %s2897 = ssub.s32 64, 64
      %2898 = vsyncadd [#allocation4], %s2897
      %s2900 = sshll.u32 [#allocation7], 4
      %s2901 = int_to_ptr.vmem [resolvable:$true] %s2900
      %2903 = dma.vmem_to_hbm [thread:$0]  %s2901, 64, %s21, [#allocation4]
    $region97: #{tpu_custom_call.1} parent=1 // pred_fallthru
      _
    // Predicated region
    $region98: #{tpu_custom_call.1} parent=1 // pred_check
      _
    $region99: #{tpu_custom_call.1} parent=1 // pred_check_branch
      %2905 = sbr.rel (0) target = $region101
    $region100: #{tpu_custom_call.1} parent=1 // pred_region
      %2906 = dma.done [#allocation4], 64
    $region101: #{tpu_custom_call.1} parent=1 // pred_fallthru
      _
    %2907 = vsyncpa [#allocation3], 1
    %2908 = vsyncpa [#allocation6], 1
    %2909 = vsyncpa [#allocation4], 1

</llo_original>
